<compile_context>
chip_gen: v7x
topology: tpu7x:2x2x1
jax: 0.10.0
libtpu: 0.0.40
codegen_flags: <defaults>
</compile_context>

<pallas_src>
import functools

import jax
import jax.numpy as jnp
from jax.experimental import pallas as pl
from jax.experimental.pallas import tpu as pltpu


# ----------------------------------------------------------------------------
# Parameter-load-time lowering of convolutions to dense matmuls (exact).
# ----------------------------------------------------------------------------
def _conv_lowering_matrix(w, in_h, in_w, stride):
    """Dense E with flatten_hwc(conv2d(x, w, stride)) == flatten_hwc(x) @ E.

    Row order (h, w, in_c); column order (oh, ow, out_c).  Built from one-hot
    selection matrices with HIGHEST precision, so it is bit-exact in f32.
    """
    oc, ic, kh, kw = w.shape
    oh = (in_h - kh) // stride + 1
    ow = (in_w - kw) // stride + 1
    sh = (jnp.arange(in_h)[:, None, None] ==
          (stride * jnp.arange(oh)[None, :, None] + jnp.arange(kh)[None, None, :])
          ).astype(jnp.float32)                                   # (in_h, OH, KH)
    sw = (jnp.arange(in_w)[:, None, None] ==
          (stride * jnp.arange(ow)[None, :, None] + jnp.arange(kw)[None, None, :])
          ).astype(jnp.float32)                                   # (in_w, OW, KW)
    e = jnp.einsum("hoa,wpb,qiab->hwiopq", sh, sw, w.astype(jnp.float32),
                   precision=jax.lax.Precision.HIGHEST)
    return e.reshape(in_h * in_w * ic, oh * ow * oc), (oh, ow)


def prepare_params(params, input_hw, strides=(4, 2, 1)):
    """One-time transformation of PyTorch-layout weights into the bf16 matmul
    operands consumed by the fused Pallas kernel (zero per-call cost)."""
    hi = jax.lax.Precision.HIGHEST
    h, w = input_hw
    s1, s2, s3 = strides
    w1, b1 = params["w1"].astype(jnp.float32), params["b1"].astype(jnp.float32)
    w2, b2 = params["w2"].astype(jnp.float32), params["b2"].astype(jnp.float32)
    w3, b3 = params["w3"].astype(jnp.float32), params["b3"].astype(jnp.float32)

    oc1, c_in, kh1, kw1 = w1.shape
    oh1 = (h - kh1) // s1 + 1
    ow1 = (w - kw1) // s1 + 1

    # conv1 as a per-output-row strip matmul.  The kernel slices row strips of
    # the NHCW-flattened input, so w1e rows are ordered (kh, c, w); columns are
    # (ow1, oc1) = 128 lanes (lane-dense, full MXU columns).
    sw1 = (jnp.arange(w)[:, None, None] ==
           (s1 * jnp.arange(ow1)[None, :, None] + jnp.arange(kw1)[None, None, :])
           ).astype(jnp.float32)                                  # (W, OW1, KW1)
    w1e = jnp.einsum("wob,qiab->aiwoq", sw1, w1, precision=hi)    # (KH1,C,W,OW1,OC1)
    w1e = w1e.reshape(kh1 * c_in * w, ow1 * oc1)
    b1e = jnp.tile(b1, ow1).reshape(1, ow1 * oc1)

    # conv2 / conv3 lowering matrices, kept FLAT so conv2 is a single matmul
    # over K = OH1*OW1*OC1 (feedback item: no per-row accumulation loop).
    oc2 = w2.shape[0]
    e2, (oh2, ow2) = _conv_lowering_matrix(w2, oh1, ow1, s2)      # (OH1*OW1*OC1, .)
    b2e = jnp.tile(b2, oh2 * ow2).reshape(1, oh2 * ow2 * oc2)

    oc3 = w3.shape[0]
    e3, (oh3, ow3) = _conv_lowering_matrix(w3, oh2, ow2, s3)
    b3e = jnp.tile(b3, oh3 * ow3).reshape(1, oh3 * ow3 * oc3)

    # fc1: permute rows once so PyTorch's (C, H, W) flatten order matches our
    # (H, W, C) activation column order (identity when spatial is 1x1).
    wf1 = params["wf1"].astype(jnp.float32)
    bf1 = params["bf1"].astype(jnp.float32)
    wf2 = params["wf2"].astype(jnp.float32)
    bf2 = params["bf2"].astype(jnp.float32)
    assert wf1.shape[0] == oh3 * ow3 * oc3, (wf1.shape, oh3, ow3, oc3)
    hh, ww_, cc = jnp.meshgrid(jnp.arange(oh3), jnp.arange(ow3), jnp.arange(oc3),
                               indexing="ij")
    perm = (cc * (oh3 * ow3) + hh * ow3 + ww_).reshape(-1)
    wf1p = wf1[perm, :]

    bf16 = jnp.bfloat16
    return {
        # static geometry used by the wrapper / kernel closure
        "kh1": int(kh1), "stride1": int(s1), "c_in": int(c_in),
        "in_h": int(h), "in_w": int(w), "oh1": int(oh1),
        "blk1": int(ow1 * oc1),
        # bf16 matmul operands (halves weight DMA; native MXU bf16 path)
        "w1e": w1e.astype(bf16), "e2": e2.astype(bf16), "e3": e3.astype(bf16),
        "wf1p": wf1p.astype(bf16), "wf2": wf2.astype(bf16),
        # f32 biases (bias-add / ReLU stay in f32 on the VPU)
        "b1e": b1e, "b2e": b2e, "b3e": b3e,
        "bf1e": bf1.reshape(1, -1), "bf2e": bf2.reshape(1, -1),
    }


# ----------------------------------------------------------------------------
# The single fused Pallas kernel: everything lives in VMEM.
# ----------------------------------------------------------------------------
def _dqn_fused_kernel(x_ref, w1e_ref, b1_ref, e2_ref, b2_ref, e3_ref, b3_ref,
                      wf1_ref, bf1_ref, wf2_ref, bf2_ref, o_ref, a1_ref,
                      *, oh1, blk1, row_stride, row_k):
    f32 = jnp.float32
    bf16 = jnp.bfloat16

    # conv1: per-output-row strip matmuls.  Each strip is a static slice of the
    # NHCW-flattened input already sitting in VMEM (no wrapper-side gather, no
    # duplicated HBM traffic).  Results land in a lane-aligned scratch so the
    # conv2 input is a single contiguous (bt, OH1*OW1*OC1) operand.
    w1 = w1e_ref[...]                      # (row_k, 128) bf16, reused oh1 times
    b1 = b1_ref[...]                       # (1, 128) f32
    for h in range(oh1):                   # oh1 = 8, unrolled at trace time
        start = h * row_stride
        strip = x_ref[:, start:start + row_k].astype(bf16)        # (bt, row_k)
        y = jnp.dot(strip, w1, preferred_element_type=f32)        # (bt, 128)
        a1_ref[:, h * blk1:(h + 1) * blk1] = jnp.maximum(y + b1, 0.0)

    # conv2: ONE matmul over K = OH1*OW1*OC1 (was 8 tiny accumulating dots).
    a1 = a1_ref[...].astype(bf16)                                  # (bt, oh1*128)
    a2 = jnp.maximum(
        jnp.dot(a1, e2_ref[...], preferred_element_type=f32) + b2_ref[...], 0.0)

    # conv3 (lowering matrix), fc1, fc2 — plain 2-D MXU dots on VMEM residents,
    # bf16 operands / f32 accumulation, bias+ReLU in f32.
    a3 = jnp.maximum(
        jnp.dot(a2.astype(bf16), e3_ref[...], preferred_element_type=f32)
        + b3_ref[...], 0.0)
    a4 = jnp.maximum(
        jnp.dot(a3.astype(bf16), wf1_ref[...], preferred_element_type=f32)
        + bf1_ref[...], 0.0)
    q = jnp.dot(a4.astype(bf16), wf2_ref[...], preferred_element_type=f32) \
        + bf2_ref[...]
    o_ref[...] = q.astype(o_ref.dtype)


def _pick_batch_tile(batch):
    # Batch tiles must either equal the full batch or be a multiple of 8 (the
    # (8,128) BlockSpec rule).  With larger training batches this grids the
    # work so the VMEM-resident weights are fetched once and reused.
    if batch <= 8 or batch % 8 != 0:
        return batch
    for t in (256, 128, 64, 32, 16, 8):
        if t <= batch and batch % t == 0:
            return t
    return batch


def _fused_forward(x2d, prepped, batch):
    n_actions = prepped["wf2"].shape[1]
    oh1, blk1 = prepped["oh1"], prepped["blk1"]
    row_stride = prepped["stride1"] * prepped["c_in"] * prepped["in_w"]
    row_k = prepped["kh1"] * prepped["c_in"] * prepped["in_w"]

    bt = _pick_batch_tile(batch)
    assert batch % bt == 0, (batch, bt)
    grid = (batch // bt,)

    kernel = functools.partial(_dqn_fused_kernel, oh1=oh1, blk1=blk1,
                               row_stride=row_stride, row_k=row_k)

    def const_spec(shape):
        # Constant block index: weights/biases are DMA'd into VMEM once and
        # reused across every grid step (amortizes the ~1 MiB weight fetch).
        return pl.BlockSpec(shape, lambda i: (0, 0))

    operands = (x2d, prepped["w1e"], prepped["b1e"], prepped["e2"], prepped["b2e"],
                prepped["e3"], prepped["b3e"], prepped["wf1p"], prepped["bf1e"],
                prepped["wf2"], prepped["bf2e"])
    in_specs = [pl.BlockSpec((bt, x2d.shape[1]), lambda i: (i, 0))]
    in_specs += [const_spec(op.shape) for op in operands[1:]]

    return pl.pallas_call(
        kernel,
        out_shape=jax.ShapeDtypeStruct((batch, n_actions), jnp.float32),
        grid=grid,
        in_specs=in_specs,
        out_specs=pl.BlockSpec((bt, n_actions), lambda i: (i, 0)),
        scratch_shapes=[pltpu.VMEM((bt, oh1 * blk1), jnp.float32)],
        compiler_params=pltpu.CompilerParams(
            # Batch tiles are independent -> shard across v7x's two TensorCores
            # (no effect on single-TC v5e/v6e).  Total VMEM footprint ~1 MiB,
            # so no vmem_limit_bytes override is needed at this size.
            dimension_semantics=("parallel",)),
    )(*operands)


def deep_q_forward(state, prepped):
    """state: (N, C, H, W) float32 (PyTorch NCHW).  Returns (N, n_actions)."""
    n, c, h, w = state.shape
    assert c == prepped["c_in"] and h == prepped["in_h"] and w == prepped["in_w"]
    # Only per-call XLA glue: a tiny NCHW -> NHCW relayout (no duplication).
    # The overlapping conv1 row-strip gather happens inside the kernel.
    x2d = jnp.transpose(state, (0, 2, 1, 3)).reshape(n, h * c * w)
    return _fused_forward(x2d.astype(jnp.float32), prepped, n)


# ----------------------------------------------------------------------------
# Pure-JAX reference (PyTorch semantics) + parameter init.
# ----------------------------------------------------------------------------
def reference_forward(state, params):
    hi = jax.lax.Precision.HIGHEST

    def conv(x, w, b, s):
        y = jax.lax.conv_general_dilated(
            x, w, (s, s), "VALID",
            dimension_numbers=("NCHW", "OIHW", "NCHW"), precision=hi)
        return jax.nn.relu(y + b[None, :, None, None])

    x = conv(state, params["w1"], params["b1"], 4)
    x = conv(x, params["w2"], params["b2"], 2)
    x = conv(x, params["w3"], params["b3"], 1)
    x = x.reshape(x.shape[0], -1)                       # PyTorch x.view(N, -1) on NCHW
    x = jax.nn.relu(jnp.dot(x, params["wf1"], precision=hi) + params["bf1"])
    return jnp.dot(x, params["wf2"], precision=hi) + params["bf2"]


def init_params(key, input_channels, flat_dim, n_actions):
    ks = jax.random.split(key, 10)
    scale = 0.05
    return {
        "w1": scale * jax.random.normal(ks[0], (16, input_channels, 8, 8), jnp.float32),
        "b1": scale * jax.random.normal(ks[1], (16,), jnp.float32),
        "w2": scale * jax.random.normal(ks[2], (32, 16, 4, 4), jnp.float32),
        "b2": scale * jax.random.normal(ks[3], (32,), jnp.float32),
        "w3": scale * jax.random.normal(ks[4], (64, 32, 3, 3), jnp.float32),
        "b3": scale * jax.random.normal(ks[5], (64,), jnp.float32),
        # Linear stored as (in, out) so forward is x @ W + b (== PyTorch x @ W.T + b).
        "wf1": scale * jax.random.normal(ks[6], (flat_dim, 256), jnp.float32),
        "bf1": scale * jax.random.normal(ks[7], (256,), jnp.float32),
        "wf2": scale * jax.random.normal(ks[8], (256, n_actions), jnp.float32),
        "bf2": scale * jax.random.normal(ks[9], (n_actions,), jnp.float32),
    }


if __name__ == "__main__":
    # Conv stack: 36 -> conv1(8,s4) -> 8 -> conv2(4,s2) -> 3 -> conv3(3,s1) -> 1.
    batch, in_ch, spatial, n_actions = 2, 4, 36, 6
    flat_dim = 64 * 1 * 1

    key = jax.random.PRNGKey(0)
    k_x, k_p = jax.random.split(key)
    state = jax.random.normal(k_x, (batch, in_ch, spatial, spatial), jnp.float32)
    params = init_params(k_p, in_ch, flat_dim, n_actions)

    # One-time weight lowering (bf16), then a jitted forward whose per-call
    # device work is the tiny input relayout + ONE fused Pallas kernel.
    prepped = prepare_params(params, (spatial, spatial))
    forward = jax.jit(lambda s: deep_q_forward(s, prepped))

    q_values = jax.block_until_ready(forward(state))
    assert q_values.shape == (batch, n_actions), q_values.shape

    ref = jax.block_until_ready(reference_forward(state, params))
    # bf16 matmul operands (f32 accumulation) => expect ~1e-2-scale deviation
    # from the full-f32 reference; this tolerance still catches layout bugs.
    max_err = float(jnp.max(jnp.abs(q_values - ref)))
    assert jnp.allclose(q_values, ref, atol=2e-2, rtol=2e-2), (
        "Pallas output mismatch vs reference, max abs diff = " + str(max_err))

    print("KERNEL_OK")
</pallas_src>

<mosaic_0001>
module attributes {stable_mosaic.version = 11 : i64} {
  func.func @_dqn_fused_kernel(%arg0: i32, %arg1: memref<2x5184xf32, #tpu.memory_space<vmem>>, %arg2: memref<1152x128xbf16, #tpu.memory_space<vmem>>, %arg3: memref<1x128xf32, #tpu.memory_space<vmem>>, %arg4: memref<1024x288xbf16, #tpu.memory_space<vmem>>, %arg5: memref<1x288xf32, #tpu.memory_space<vmem>>, %arg6: memref<288x64xbf16, #tpu.memory_space<vmem>>, %arg7: memref<1x64xf32, #tpu.memory_space<vmem>>, %arg8: memref<64x256xbf16, #tpu.memory_space<vmem>>, %arg9: memref<1x256xf32, #tpu.memory_space<vmem>>, %arg10: memref<256x6xbf16, #tpu.memory_space<vmem>>, %arg11: memref<1x6xf32, #tpu.memory_space<vmem>>, %arg12: memref<2x6xf32, #tpu.memory_space<vmem>>, %arg13: memref<2x1024xf32, #tpu.memory_space<vmem>>) attributes {dimension_semantics = [#tpu.dimension_semantics<parallel>], iteration_bounds = array<i64: 1>, scalar_prefetch = 0 : i64, scratch_operands = 1 : i64, tpu.core_type = #tpu.core_type<tc>, window_params = [{transform_indices = @transform_0, window_bounds = array<i64: 2, 5184>}, {pipeline_mode = #tpu.pipeline_mode<synchronous>, transform_indices = @transform_1, window_bounds = array<i64: 1152, 128>}, {pipeline_mode = #tpu.pipeline_mode<synchronous>, transform_indices = @transform_2, window_bounds = array<i64: 1, 128>}, {pipeline_mode = #tpu.pipeline_mode<synchronous>, transform_indices = @transform_3, window_bounds = array<i64: 1024, 288>}, {pipeline_mode = #tpu.pipeline_mode<synchronous>, transform_indices = @transform_4, window_bounds = array<i64: 1, 288>}, {pipeline_mode = #tpu.pipeline_mode<synchronous>, transform_indices = @transform_5, window_bounds = array<i64: 288, 64>}, {pipeline_mode = #tpu.pipeline_mode<synchronous>, transform_indices = @transform_6, window_bounds = array<i64: 1, 64>}, {pipeline_mode = #tpu.pipeline_mode<synchronous>, transform_indices = @transform_7, window_bounds = array<i64: 64, 256>}, {pipeline_mode = #tpu.pipeline_mode<synchronous>, transform_indices = @transform_8, window_bounds = array<i64: 1, 256>}, {pipeline_mode = #tpu.pipeline_mode<synchronous>, transform_indices = @transform_9, window_bounds = array<i64: 256, 6>}, {pipeline_mode = #tpu.pipeline_mode<synchronous>, transform_indices = @transform_10, window_bounds = array<i64: 1, 6>}, {transform_indices = @transform_11, window_bounds = array<i64: 2, 6>}]} {
    %c0 = arith.constant 0 : index
    %c0_0 = arith.constant 0 : index
    %0 = vector.load %arg2[%c0, %c0_0] : memref<1152x128xbf16, #tpu.memory_space<vmem>>, vector<1152x128xbf16>
    %c0_1 = arith.constant 0 : index
    %c0_2 = arith.constant 0 : index
    %1 = vector.load %arg3[%c0_1, %c0_2] : memref<1x128xf32, #tpu.memory_space<vmem>>, vector<1x128xf32>
    %c0_3 = arith.constant 0 : index
    %c0_4 = arith.constant 0 : index
    %2 = vector.load %arg1[%c0_3, %c0_4] : memref<2x5184xf32, #tpu.memory_space<vmem>>, vector<2x1152xf32>
    %3 = arith.truncf %2 : vector<2x1152xf32> to vector<2x1152xbf16>
    %cst = arith.constant dense<0.000000e+00> : vector<2x128xf32>
    %4 = tpu.matmul %3, %0, %cst {dimension_numbers = #tpu.dot_dimension_numbers<[1], [0], [0], [1], [0, 0, 1, 1], [], []>} : vector<2x1152xbf16>, vector<1152x128xbf16>, vector<2x128xf32> -> vector<2x128xf32>
    %5 = vector.broadcast %1 : vector<1x128xf32> to vector<2x128xf32>
    %6 = arith.addf %4, %5 : vector<2x128xf32>
    %cst_5 = arith.constant 0.000000e+00 : f32
    %7 = vector.broadcast %cst_5 : f32 to vector<2x128xf32>
    %8 = arith.maximumf %6, %7 : vector<2x128xf32>
    %c0_6 = arith.constant 0 : index
    %c0_7 = arith.constant 0 : index
    %9 = vector.load %arg13[%c0_6, %c0_7] : memref<2x1024xf32, #tpu.memory_space<vmem>>, vector<2x128xf32>
    tpu.vector_store %arg13[%c0_6, %c0_7], %8 {strides = array<i32>} : memref<2x1024xf32, #tpu.memory_space<vmem>>, vector<2x128xf32>,
    %c0_8 = arith.constant 0 : index
    %c576 = arith.constant 576 : index
    %10 = vector.load %arg1[%c0_8, %c576] : memref<2x5184xf32, #tpu.memory_space<vmem>>, vector<2x1152xf32>
    %11 = arith.truncf %10 : vector<2x1152xf32> to vector<2x1152xbf16>
    %cst_9 = arith.constant dense<0.000000e+00> : vector<2x128xf32>
    %12 = tpu.matmul %11, %0, %cst_9 {dimension_numbers = #tpu.dot_dimension_numbers<[1], [0], [0], [1], [0, 0, 1, 1], [], []>} : vector<2x1152xbf16>, vector<1152x128xbf16>, vector<2x128xf32> -> vector<2x128xf32>
    %13 = vector.broadcast %1 : vector<1x128xf32> to vector<2x128xf32>
    %14 = arith.addf %12, %13 : vector<2x128xf32>
    %cst_10 = arith.constant 0.000000e+00 : f32
    %15 = vector.broadcast %cst_10 : f32 to vector<2x128xf32>
    %16 = arith.maximumf %14, %15 : vector<2x128xf32>
    %c0_11 = arith.constant 0 : index
    %c128 = arith.constant 128 : index
    %17 = vector.load %arg13[%c0_11, %c128] : memref<2x1024xf32, #tpu.memory_space<vmem>>, vector<2x128xf32>
    tpu.vector_store %arg13[%c0_11, %c128], %16 {strides = array<i32>} : memref<2x1024xf32, #tpu.memory_space<vmem>>, vector<2x128xf32>,
    %c0_12 = arith.constant 0 : index
    %c1152 = arith.constant 1152 : index
    %18 = vector.load %arg1[%c0_12, %c1152] : memref<2x5184xf32, #tpu.memory_space<vmem>>, vector<2x1152xf32>
    %19 = arith.truncf %18 : vector<2x1152xf32> to vector<2x1152xbf16>
    %cst_13 = arith.constant dense<0.000000e+00> : vector<2x128xf32>
    %20 = tpu.matmul %19, %0, %cst_13 {dimension_numbers = #tpu.dot_dimension_numbers<[1], [0], [0], [1], [0, 0, 1, 1], [], []>} : vector<2x1152xbf16>, vector<1152x128xbf16>, vector<2x128xf32> -> vector<2x128xf32>
    %21 = vector.broadcast %1 : vector<1x128xf32> to vector<2x128xf32>
    %22 = arith.addf %20, %21 : vector<2x128xf32>
    %cst_14 = arith.constant 0.000000e+00 : f32
    %23 = vector.broadcast %cst_14 : f32 to vector<2x128xf32>
    %24 = arith.maximumf %22, %23 : vector<2x128xf32>
    %c0_15 = arith.constant 0 : index
    %c256 = arith.constant 256 : index
    %25 = vector.load %arg13[%c0_15, %c256] : memref<2x1024xf32, #tpu.memory_space<vmem>>, vector<2x128xf32>
    tpu.vector_store %arg13[%c0_15, %c256], %24 {strides = array<i32>} : memref<2x1024xf32, #tpu.memory_space<vmem>>, vector<2x128xf32>,
    %c0_16 = arith.constant 0 : index
    %c1728 = arith.constant 1728 : index
    %26 = vector.load %arg1[%c0_16, %c1728] : memref<2x5184xf32, #tpu.memory_space<vmem>>, vector<2x1152xf32>
    %27 = arith.truncf %26 : vector<2x1152xf32> to vector<2x1152xbf16>
    %cst_17 = arith.constant dense<0.000000e+00> : vector<2x128xf32>
    %28 = tpu.matmul %27, %0, %cst_17 {dimension_numbers = #tpu.dot_dimension_numbers<[1], [0], [0], [1], [0, 0, 1, 1], [], []>} : vector<2x1152xbf16>, vector<1152x128xbf16>, vector<2x128xf32> -> vector<2x128xf32>
    %29 = vector.broadcast %1 : vector<1x128xf32> to vector<2x128xf32>
    %30 = arith.addf %28, %29 : vector<2x128xf32>
    %cst_18 = arith.constant 0.000000e+00 : f32
    %31 = vector.broadcast %cst_18 : f32 to vector<2x128xf32>
    %32 = arith.maximumf %30, %31 : vector<2x128xf32>
    %c0_19 = arith.constant 0 : index
    %c384 = arith.constant 384 : index
    %33 = vector.load %arg13[%c0_19, %c384] : memref<2x1024xf32, #tpu.memory_space<vmem>>, vector<2x128xf32>
    tpu.vector_store %arg13[%c0_19, %c384], %32 {strides = array<i32>} : memref<2x1024xf32, #tpu.memory_space<vmem>>, vector<2x128xf32>,
    %c0_20 = arith.constant 0 : index
    %c2304 = arith.constant 2304 : index
    %34 = vector.load %arg1[%c0_20, %c2304] : memref<2x5184xf32, #tpu.memory_space<vmem>>, vector<2x1152xf32>
    %35 = arith.truncf %34 : vector<2x1152xf32> to vector<2x1152xbf16>
    %cst_21 = arith.constant dense<0.000000e+00> : vector<2x128xf32>
    %36 = tpu.matmul %35, %0, %cst_21 {dimension_numbers = #tpu.dot_dimension_numbers<[1], [0], [0], [1], [0, 0, 1, 1], [], []>} : vector<2x1152xbf16>, vector<1152x128xbf16>, vector<2x128xf32> -> vector<2x128xf32>
    %37 = vector.broadcast %1 : vector<1x128xf32> to vector<2x128xf32>
    %38 = arith.addf %36, %37 : vector<2x128xf32>
    %cst_22 = arith.constant 0.000000e+00 : f32
    %39 = vector.broadcast %cst_22 : f32 to vector<2x128xf32>
    %40 = arith.maximumf %38, %39 : vector<2x128xf32>
    %c0_23 = arith.constant 0 : index
    %c512 = arith.constant 512 : index
    %41 = vector.load %arg13[%c0_23, %c512] : memref<2x1024xf32, #tpu.memory_space<vmem>>, vector<2x128xf32>
    tpu.vector_store %arg13[%c0_23, %c512], %40 {strides = array<i32>} : memref<2x1024xf32, #tpu.memory_space<vmem>>, vector<2x128xf32>,
    %c0_24 = arith.constant 0 : index
    %c2880 = arith.constant 2880 : index
    %42 = vector.load %arg1[%c0_24, %c2880] : memref<2x5184xf32, #tpu.memory_space<vmem>>, vector<2x1152xf32>
    %43 = arith.truncf %42 : vector<2x1152xf32> to vector<2x1152xbf16>
    %cst_25 = arith.constant dense<0.000000e+00> : vector<2x128xf32>
    %44 = tpu.matmul %43, %0, %cst_25 {dimension_numbers = #tpu.dot_dimension_numbers<[1], [0], [0], [1], [0, 0, 1, 1], [], []>} : vector<2x1152xbf16>, vector<1152x128xbf16>, vector<2x128xf32> -> vector<2x128xf32>
    %45 = vector.broadcast %1 : vector<1x128xf32> to vector<2x128xf32>
    %46 = arith.addf %44, %45 : vector<2x128xf32>
    %cst_26 = arith.constant 0.000000e+00 : f32
    %47 = vector.broadcast %cst_26 : f32 to vector<2x128xf32>
    %48 = arith.maximumf %46, %47 : vector<2x128xf32>
    %c0_27 = arith.constant 0 : index
    %c640 = arith.constant 640 : index
    %49 = vector.load %arg13[%c0_27, %c640] : memref<2x1024xf32, #tpu.memory_space<vmem>>, vector<2x128xf32>
    tpu.vector_store %arg13[%c0_27, %c640], %48 {strides = array<i32>} : memref<2x1024xf32, #tpu.memory_space<vmem>>, vector<2x128xf32>,
    %c0_28 = arith.constant 0 : index
    %c3456 = arith.constant 3456 : index
    %50 = vector.load %arg1[%c0_28, %c3456] : memref<2x5184xf32, #tpu.memory_space<vmem>>, vector<2x1152xf32>
    %51 = arith.truncf %50 : vector<2x1152xf32> to vector<2x1152xbf16>
    %cst_29 = arith.constant dense<0.000000e+00> : vector<2x128xf32>
    %52 = tpu.matmul %51, %0, %cst_29 {dimension_numbers = #tpu.dot_dimension_numbers<[1], [0], [0], [1], [0, 0, 1, 1], [], []>} : vector<2x1152xbf16>, vector<1152x128xbf16>, vector<2x128xf32> -> vector<2x128xf32>
    %53 = vector.broadcast %1 : vector<1x128xf32> to vector<2x128xf32>
    %54 = arith.addf %52, %53 : vector<2x128xf32>
    %cst_30 = arith.constant 0.000000e+00 : f32
    %55 = vector.broadcast %cst_30 : f32 to vector<2x128xf32>
    %56 = arith.maximumf %54, %55 : vector<2x128xf32>
    %c0_31 = arith.constant 0 : index
    %c768 = arith.constant 768 : index
    %57 = vector.load %arg13[%c0_31, %c768] : memref<2x1024xf32, #tpu.memory_space<vmem>>, vector<2x128xf32>
    tpu.vector_store %arg13[%c0_31, %c768], %56 {strides = array<i32>} : memref<2x1024xf32, #tpu.memory_space<vmem>>, vector<2x128xf32>,
    %c0_32 = arith.constant 0 : index
    %c4032 = arith.constant 4032 : index
    %58 = vector.load %arg1[%c0_32, %c4032] : memref<2x5184xf32, #tpu.memory_space<vmem>>, vector<2x1152xf32>
    %59 = arith.truncf %58 : vector<2x1152xf32> to vector<2x1152xbf16>
    %cst_33 = arith.constant dense<0.000000e+00> : vector<2x128xf32>
    %60 = tpu.matmul %59, %0, %cst_33 {dimension_numbers = #tpu.dot_dimension_numbers<[1], [0], [0], [1], [0, 0, 1, 1], [], []>} : vector<2x1152xbf16>, vector<1152x128xbf16>, vector<2x128xf32> -> vector<2x128xf32>
    %61 = vector.broadcast %1 : vector<1x128xf32> to vector<2x128xf32>
    %62 = arith.addf %60, %61 : vector<2x128xf32>
    %cst_34 = arith.constant 0.000000e+00 : f32
    %63 = vector.broadcast %cst_34 : f32 to vector<2x128xf32>
    %64 = arith.maximumf %62, %63 : vector<2x128xf32>
    %c0_35 = arith.constant 0 : index
    %c896 = arith.constant 896 : index
    %65 = vector.load %arg13[%c0_35, %c896] : memref<2x1024xf32, #tpu.memory_space<vmem>>, vector<2x128xf32>
    tpu.vector_store %arg13[%c0_35, %c896], %64 {strides = array<i32>} : memref<2x1024xf32, #tpu.memory_space<vmem>>, vector<2x128xf32>,
    %c0_36 = arith.constant 0 : index
    %c0_37 = arith.constant 0 : index
    %66 = vector.load %arg13[%c0_36, %c0_37] : memref<2x1024xf32, #tpu.memory_space<vmem>>, vector<2x1024xf32>
    %67 = arith.truncf %66 : vector<2x1024xf32> to vector<2x1024xbf16>
    %c0_38 = arith.constant 0 : index
    %c0_39 = arith.constant 0 : index
    %68 = vector.load %arg4[%c0_38, %c0_39] : memref<1024x288xbf16, #tpu.memory_space<vmem>>, vector<1024x288xbf16>
    %cst_40 = arith.constant dense<0.000000e+00> : vector<2x288xf32>
    %69 = tpu.matmul %67, %68, %cst_40 {dimension_numbers = #tpu.dot_dimension_numbers<[1], [0], [0], [1], [0, 0, 1, 1], [], []>} : vector<2x1024xbf16>, vector<1024x288xbf16>, vector<2x288xf32> -> vector<2x288xf32>
    %c0_41 = arith.constant 0 : index
    %c0_42 = arith.constant 0 : index
    %70 = vector.load %arg5[%c0_41, %c0_42] : memref<1x288xf32, #tpu.memory_space<vmem>>, vector<1x288xf32>
    %71 = vector.broadcast %70 : vector<1x288xf32> to vector<2x288xf32>
    %72 = arith.addf %69, %71 : vector<2x288xf32>
    %cst_43 = arith.constant 0.000000e+00 : f32
    %73 = vector.broadcast %cst_43 : f32 to vector<2x288xf32>
    %74 = arith.maximumf %72, %73 : vector<2x288xf32>
    %75 = arith.truncf %74 : vector<2x288xf32> to vector<2x288xbf16>
    %c0_44 = arith.constant 0 : index
    %c0_45 = arith.constant 0 : index
    %76 = vector.load %arg6[%c0_44, %c0_45] : memref<288x64xbf16, #tpu.memory_space<vmem>>, vector<288x64xbf16>
    %cst_46 = arith.constant dense<0.000000e+00> : vector<2x64xf32>
    %77 = tpu.matmul %75, %76, %cst_46 {dimension_numbers = #tpu.dot_dimension_numbers<[1], [0], [0], [1], [0, 0, 1, 1], [], []>} : vector<2x288xbf16>, vector<288x64xbf16>, vector<2x64xf32> -> vector<2x64xf32>
    %c0_47 = arith.constant 0 : index
    %c0_48 = arith.constant 0 : index
    %78 = vector.load %arg7[%c0_47, %c0_48] : memref<1x64xf32, #tpu.memory_space<vmem>>, vector<1x64xf32>
    %79 = vector.broadcast %78 : vector<1x64xf32> to vector<2x64xf32>
    %80 = arith.addf %77, %79 : vector<2x64xf32>
    %cst_49 = arith.constant 0.000000e+00 : f32
    %81 = vector.broadcast %cst_49 : f32 to vector<2x64xf32>
    %82 = arith.maximumf %80, %81 : vector<2x64xf32>
    %83 = arith.truncf %82 : vector<2x64xf32> to vector<2x64xbf16>
    %c0_50 = arith.constant 0 : index
    %c0_51 = arith.constant 0 : index
    %84 = vector.load %arg8[%c0_50, %c0_51] : memref<64x256xbf16, #tpu.memory_space<vmem>>, vector<64x256xbf16>
    %cst_52 = arith.constant dense<0.000000e+00> : vector<2x256xf32>
    %85 = tpu.matmul %83, %84, %cst_52 {dimension_numbers = #tpu.dot_dimension_numbers<[1], [0], [0], [1], [0, 0, 1, 1], [], []>} : vector<2x64xbf16>, vector<64x256xbf16>, vector<2x256xf32> -> vector<2x256xf32>
    %c0_53 = arith.constant 0 : index
    %c0_54 = arith.constant 0 : index
    %86 = vector.load %arg9[%c0_53, %c0_54] : memref<1x256xf32, #tpu.memory_space<vmem>>, vector<1x256xf32>
    %87 = vector.broadcast %86 : vector<1x256xf32> to vector<2x256xf32>
    %88 = arith.addf %85, %87 : vector<2x256xf32>
    %cst_55 = arith.constant 0.000000e+00 : f32
    %89 = vector.broadcast %cst_55 : f32 to vector<2x256xf32>
    %90 = arith.maximumf %88, %89 : vector<2x256xf32>
    %91 = arith.truncf %90 : vector<2x256xf32> to vector<2x256xbf16>
    %c0_56 = arith.constant 0 : index
    %c0_57 = arith.constant 0 : index
    %92 = vector.load %arg10[%c0_56, %c0_57] : memref<256x6xbf16, #tpu.memory_space<vmem>>, vector<256x6xbf16>
    %cst_58 = arith.constant dense<0.000000e+00> : vector<2x6xf32>
    %93 = tpu.matmul %91, %92, %cst_58 {dimension_numbers = #tpu.dot_dimension_numbers<[1], [0], [0], [1], [0, 0, 1, 1], [], []>} : vector<2x256xbf16>, vector<256x6xbf16>, vector<2x6xf32> -> vector<2x6xf32>
    %c0_59 = arith.constant 0 : index
    %c0_60 = arith.constant 0 : index
    %94 = vector.load %arg11[%c0_59, %c0_60] : memref<1x6xf32, #tpu.memory_space<vmem>>, vector<1x6xf32>
    %95 = vector.broadcast %94 : vector<1x6xf32> to vector<2x6xf32>
    %96 = arith.addf %93, %95 : vector<2x6xf32>
    %c0_61 = arith.constant 0 : index
    %c0_62 = arith.constant 0 : index
    %97 = vector.load %arg12[%c0_61, %c0_62] : memref<2x6xf32, #tpu.memory_space<vmem>>, vector<2x6xf32>
    tpu.vector_store %arg12[%c0_61, %c0_62], %96 {strides = array<i32>} : memref<2x6xf32, #tpu.memory_space<vmem>>, vector<2x6xf32>,
    return
  }
  func.func @transform_0(%arg0: i32) -> (i32, i32) {
    %c0_i32 = arith.constant 0 : i32
    %c0_i32_0 = arith.constant 0 : i32
    return %arg0, %c0_i32 : i32, i32
  }
  func.func @transform_1(%arg0: i32) -> (i32, i32) {
    %c0_i32 = arith.constant 0 : i32
    %c0_i32_0 = arith.constant 0 : i32
    %c0_i32_1 = arith.constant 0 : i32
    return %c0_i32, %c0_i32_0 : i32, i32
  }
  func.func @transform_2(%arg0: i32) -> (i32, i32) {
    %c0_i32 = arith.constant 0 : i32
    %c0_i32_0 = arith.constant 0 : i32
    %c0_i32_1 = arith.constant 0 : i32
    return %c0_i32, %c0_i32_0 : i32, i32
  }
  func.func @transform_3(%arg0: i32) -> (i32, i32) {
    %c0_i32 = arith.constant 0 : i32
    %c0_i32_0 = arith.constant 0 : i32
    %c0_i32_1 = arith.constant 0 : i32
    return %c0_i32, %c0_i32_0 : i32, i32
  }
  func.func @transform_4(%arg0: i32) -> (i32, i32) {
    %c0_i32 = arith.constant 0 : i32
    %c0_i32_0 = arith.constant 0 : i32
    %c0_i32_1 = arith.constant 0 : i32
    return %c0_i32, %c0_i32_0 : i32, i32
  }
  func.func @transform_5(%arg0: i32) -> (i32, i32) {
    %c0_i32 = arith.constant 0 : i32
    %c0_i32_0 = arith.constant 0 : i32
    %c0_i32_1 = arith.constant 0 : i32
    return %c0_i32, %c0_i32_0 : i32, i32
  }
  func.func @transform_6(%arg0: i32) -> (i32, i32) {
    %c0_i32 = arith.constant 0 : i32
    %c0_i32_0 = arith.constant 0 : i32
    %c0_i32_1 = arith.constant 0 : i32
    return %c0_i32, %c0_i32_0 : i32, i32
  }
  func.func @transform_7(%arg0: i32) -> (i32, i32) {
    %c0_i32 = arith.constant 0 : i32
    %c0_i32_0 = arith.constant 0 : i32
    %c0_i32_1 = arith.constant 0 : i32
    return %c0_i32, %c0_i32_0 : i32, i32
  }
  func.func @transform_8(%arg0: i32) -> (i32, i32) {
    %c0_i32 = arith.constant 0 : i32
    %c0_i32_0 = arith.constant 0 : i32
    %c0_i32_1 = arith.constant 0 : i32
    return %c0_i32, %c0_i32_0 : i32, i32
  }
  func.func @transform_9(%arg0: i32) -> (i32, i32) {
    %c0_i32 = arith.constant 0 : i32
    %c0_i32_0 = arith.constant 0 : i32
    %c0_i32_1 = arith.constant 0 : i32
    return %c0_i32, %c0_i32_0 : i32, i32
  }
  func.func @transform_10(%arg0: i32) -> (i32, i32) {
    %c0_i32 = arith.constant 0 : i32
    %c0_i32_0 = arith.constant 0 : i32
    %c0_i32_1 = arith.constant 0 : i32
    return %c0_i32, %c0_i32_0 : i32, i32
  }
  func.func @transform_11(%arg0: i32) -> (i32, i32) {
    %c0_i32 = arith.constant 0 : i32
    %c0_i32_0 = arith.constant 0 : i32
    return %arg0, %c0_i32 : i32, i32
  }
}

</mosaic_0001>

<llo_original>
// kernel: _lambda_.1
$region0: #{_lambda_.1}
  #allocation0 [shape = 'u32[]', space=smem, size = 0x4, offset = 0x4, fixed_abs, tag = 'smem constant byte address 0x4 - core index']
  #allocation1 [shape = 'u32[144,128]{1,0:T(1,128)}', space=vmem, size = 0x12000, scoped, tag = 'internal scratch']
  #allocation2 [shape = 'f32[2,1024]{1,0:T(2,128)}', space=vmem, size = 0x2000, scoped, tag = 'scratch operand']
  %s0 = inlined_call_operand.vmem [shape: f32[2,5184], index: 0, kind: input, shape index: {}]
  %s1 = inlined_call_operand.vmem [shape: bf16[1152,128], index: 1, kind: input, shape index: {}]
  %s2 = inlined_call_operand.vmem [shape: f32[1,128], index: 2, kind: input, shape index: {}]
  %s3 = inlined_call_operand.vmem [shape: bf16[1024,288], index: 3, kind: input, shape index: {}]
  %s4 = inlined_call_operand.vmem [shape: f32[1,288], index: 4, kind: input, shape index: {}]
  %s5 = inlined_call_operand.vmem [shape: bf16[288,64], index: 5, kind: input, shape index: {}]
  %s6 = inlined_call_operand.vmem [shape: f32[1,64], index: 6, kind: input, shape index: {}]
  %s7 = inlined_call_operand.vmem [shape: bf16[64,256], index: 7, kind: input, shape index: {}]
  %s8 = inlined_call_operand.vmem [shape: f32[1,256], index: 8, kind: input, shape index: {}]
  %s9 = inlined_call_operand.vmem [shape: bf16[256,6], index: 9, kind: input, shape index: {}]
  %s10 = inlined_call_operand.vmem [shape: f32[1,6], index: 10, kind: input, shape index: {}]
  %s11 = inlined_call_operand.hbm [shape: f32[2,6], index: 11, kind: output, shape index: {}]
  %s12 = sld [smem:[#allocation0]]
  $region54: #{_lambda_.1} parent=0
    _
  %s14 = ssub.s32 1, %s12
  %s15 = scalar_select 0, %s14, %s12
  $region1: #{_lambda_.1} parent=0
    #allocation3 [shape = 'u8[1024]{0}', space=vmem, size = 0x400, scoped, tag = 'output window, operand 0, single buffered']
    #allocation4 [shape = 's32[1]{0}', space=sflag, size = 0x4, scoped, tag = 'scoped memory for _lambda_.1']
    %16 = vsyncpa [#allocation4], 0
    // Predicated region
    $region2: #{_lambda_.1} parent=1 // pred_check
      _
    $region3: #{_lambda_.1} parent=1 // pred_check_branch
      %18 = sbr.rel (0) target = $region5
    $region4: #{_lambda_.1} parent=1 // pred_region
      _
    $region5: #{_lambda_.1} parent=1 // pred_fallthru
      _
    // Predicated region
    $region6: #{_lambda_.1} parent=1 // pred_check
      _
    $region7: #{_lambda_.1} parent=1 // pred_check_branch
      %20 = sbr.rel (0) target = $region9
    $region8: #{_lambda_.1} parent=1 // pred_region
      _
    $region9: #{_lambda_.1} parent=1 // pred_fallthru
      _
    // Predicated region
    $region10: #{_lambda_.1} parent=1 // pred_check
      _
    $region11: #{_lambda_.1} parent=1 // pred_check_branch
      %22 = sbr.rel (0) target = $region13
    $region12: #{_lambda_.1} parent=1 // pred_region
      _
    $region13: #{_lambda_.1} parent=1 // pred_fallthru
      _
    // Predicated region
    $region14: #{_lambda_.1} parent=1 // pred_check
      _
    $region15: #{_lambda_.1} parent=1 // pred_check_branch
      %24 = sbr.rel (0) target = $region17
    $region16: #{_lambda_.1} parent=1 // pred_region
      _
    $region17: #{_lambda_.1} parent=1 // pred_fallthru
      _
    // Predicated region
    $region18: #{_lambda_.1} parent=1 // pred_check
      _
    $region19: #{_lambda_.1} parent=1 // pred_check_branch
      %26 = sbr.rel (0) target = $region21
    $region20: #{_lambda_.1} parent=1 // pred_region
      _
    $region21: #{_lambda_.1} parent=1 // pred_fallthru
      _
    // Predicated region
    $region22: #{_lambda_.1} parent=1 // pred_check
      _
    $region23: #{_lambda_.1} parent=1 // pred_check_branch
      %28 = sbr.rel (0) target = $region25
    $region24: #{_lambda_.1} parent=1 // pred_region
      _
    $region25: #{_lambda_.1} parent=1 // pred_fallthru
      _
    // Predicated region
    $region26: #{_lambda_.1} parent=1 // pred_check
      _
    $region27: #{_lambda_.1} parent=1 // pred_check_branch
      %30 = sbr.rel (0) target = $region29
    $region28: #{_lambda_.1} parent=1 // pred_region
      _
    $region29: #{_lambda_.1} parent=1 // pred_fallthru
      _
    // Predicated region
    $region30: #{_lambda_.1} parent=1 // pred_check
      _
    $region31: #{_lambda_.1} parent=1 // pred_check_branch
      %32 = sbr.rel (0) target = $region33
    $region32: #{_lambda_.1} parent=1 // pred_region
      _
    $region33: #{_lambda_.1} parent=1 // pred_fallthru
      _
    // Predicated region
    $region34: #{_lambda_.1} parent=1 // pred_check
      _
    $region35: #{_lambda_.1} parent=1 // pred_check_branch
      %34 = sbr.rel (0) target = $region37
    $region36: #{_lambda_.1} parent=1 // pred_region
      _
    $region37: #{_lambda_.1} parent=1 // pred_fallthru
      _
    // Predicated region
    $region38: #{_lambda_.1} parent=1 // pred_check
      _
    $region39: #{_lambda_.1} parent=1 // pred_check_branch
      %36 = sbr.rel (0) target = $region41
    $region40: #{_lambda_.1} parent=1 // pred_region
      _
    $region41: #{_lambda_.1} parent=1 // pred_fallthru
      _
    // Predicated region
    $region42: #{_lambda_.1} parent=1 // pred_check
      _
    $region43: #{_lambda_.1} parent=1 // pred_check_branch
      %38 = sbr.rel (0) target = $region45
    $region44: #{_lambda_.1} parent=1 // pred_region
      _
    $region45: #{_lambda_.1} parent=1 // pred_fallthru
      _
    %v40 = vld [vmem:[%s1] sm:$0xf]
    %v41 = vld [vmem:[%s1 + $0x4] sm:$0xf]
    %v42 = vld [vmem:[%s1 + $0x8] sm:$0xf]
    %v43 = vld [vmem:[%s1 + $0xc] sm:$0xf]
    %v44 = vld [vmem:[%s1 + $0x10] sm:$0xf]
    %v45 = vld [vmem:[%s1 + $0x14] sm:$0xf]
    %v46 = vld [vmem:[%s1 + $0x18] sm:$0xf]
    %v47 = vld [vmem:[%s1 + $0x1c] sm:$0xf]
    %v48 = vld [vmem:[%s1 + $0x20] sm:$0xf]
    %v49 = vld [vmem:[%s1 + $0x24] sm:$0xf]
    %v50 = vld [vmem:[%s1 + $0x28] sm:$0xf]
    %v51 = vld [vmem:[%s1 + $0x2c] sm:$0xf]
    %v52 = vld [vmem:[%s1 + $0x30] sm:$0xf]
    %v53 = vld [vmem:[%s1 + $0x34] sm:$0xf]
    %v54 = vld [vmem:[%s1 + $0x38] sm:$0xf]
    %v55 = vld [vmem:[%s1 + $0x3c] sm:$0xf]
    %v56 = vld [vmem:[%s1 + $0x40] sm:$0xf]
    %v57 = vld [vmem:[%s1 + $0x44] sm:$0xf]
    %v58 = vld [vmem:[%s1 + $0x48] sm:$0xf]
    %v59 = vld [vmem:[%s1 + $0x4c] sm:$0xf]
    %v60 = vld [vmem:[%s1 + $0x50] sm:$0xf]
    %v61 = vld [vmem:[%s1 + $0x54] sm:$0xf]
    %v62 = vld [vmem:[%s1 + $0x58] sm:$0xf]
    %v63 = vld [vmem:[%s1 + $0x5c] sm:$0xf]
    %v64 = vld [vmem:[%s1 + $0x60] sm:$0xf]
    %v65 = vld [vmem:[%s1 + $0x64] sm:$0xf]
    %v66 = vld [vmem:[%s1 + $0x68] sm:$0xf]
    %v67 = vld [vmem:[%s1 + $0x6c] sm:$0xf]
    %v68 = vld [vmem:[%s1 + $0x70] sm:$0xf]
    %v69 = vld [vmem:[%s1 + $0x74] sm:$0xf]
    %v70 = vld [vmem:[%s1 + $0x78] sm:$0xf]
    %v71 = vld [vmem:[%s1 + $0x7c] sm:$0xf]
    %v72 = vld [vmem:[%s1 + $0x80] sm:$0xf]
    %v73 = vld [vmem:[%s1 + $0x84] sm:$0xf]
    %v74 = vld [vmem:[%s1 + $0x88] sm:$0xf]
    %v75 = vld [vmem:[%s1 + $0x8c] sm:$0xf]
    %v76 = vld [vmem:[%s1 + $0x90] sm:$0xf]
    %v77 = vld [vmem:[%s1 + $0x94] sm:$0xf]
    %v78 = vld [vmem:[%s1 + $0x98] sm:$0xf]
    %v79 = vld [vmem:[%s1 + $0x9c] sm:$0xf]
    %v80 = vld [vmem:[%s1 + $0xa0] sm:$0xf]
    %v81 = vld [vmem:[%s1 + $0xa4] sm:$0xf]
    %v82 = vld [vmem:[%s1 + $0xa8] sm:$0xf]
    %v83 = vld [vmem:[%s1 + $0xac] sm:$0xf]
    %v84 = vld [vmem:[%s1 + $0xb0] sm:$0xf]
    %v85 = vld [vmem:[%s1 + $0xb4] sm:$0xf]
    %v86 = vld [vmem:[%s1 + $0xb8] sm:$0xf]
    %v87 = vld [vmem:[%s1 + $0xbc] sm:$0xf]
    %v88 = vld [vmem:[%s1 + $0xc0] sm:$0xf]
    %v89 = vld [vmem:[%s1 + $0xc4] sm:$0xf]
    %v90 = vld [vmem:[%s1 + $0xc8] sm:$0xf]
    %v91 = vld [vmem:[%s1 + $0xcc] sm:$0xf]
    %v92 = vld [vmem:[%s1 + $0xd0] sm:$0xf]
    %v93 = vld [vmem:[%s1 + $0xd4] sm:$0xf]
    %v94 = vld [vmem:[%s1 + $0xd8] sm:$0xf]
    %v95 = vld [vmem:[%s1 + $0xdc] sm:$0xf]
    %v96 = vld [vmem:[%s1 + $0xe0] sm:$0xf]
    %v97 = vld [vmem:[%s1 + $0xe4] sm:$0xf]
    %v98 = vld [vmem:[%s1 + $0xe8] sm:$0xf]
    %v99 = vld [vmem:[%s1 + $0xec] sm:$0xf]
    %v100 = vld [vmem:[%s1 + $0xf0] sm:$0xf]
    %v101 = vld [vmem:[%s1 + $0xf4] sm:$0xf]
    %v102 = vld [vmem:[%s1 + $0xf8] sm:$0xf]
    %v103 = vld [vmem:[%s1 + $0xfc] sm:$0xf]
    %v104 = vld [vmem:[%s1 + $0x100] sm:$0xf]
    %v105 = vld [vmem:[%s1 + $0x104] sm:$0xf]
    %v106 = vld [vmem:[%s1 + $0x108] sm:$0xf]
    %v107 = vld [vmem:[%s1 + $0x10c] sm:$0xf]
    %v108 = vld [vmem:[%s1 + $0x110] sm:$0xf]
    %v109 = vld [vmem:[%s1 + $0x114] sm:$0xf]
    %v110 = vld [vmem:[%s1 + $0x118] sm:$0xf]
    %v111 = vld [vmem:[%s1 + $0x11c] sm:$0xf]
    %v112 = vld [vmem:[%s1 + $0x120] sm:$0xf]
    %v113 = vld [vmem:[%s1 + $0x124] sm:$0xf]
    %v114 = vld [vmem:[%s1 + $0x128] sm:$0xf]
    %v115 = vld [vmem:[%s1 + $0x12c] sm:$0xf]
    %v116 = vld [vmem:[%s1 + $0x130] sm:$0xf]
    %v117 = vld [vmem:[%s1 + $0x134] sm:$0xf]
    %v118 = vld [vmem:[%s1 + $0x138] sm:$0xf]
    %v119 = vld [vmem:[%s1 + $0x13c] sm:$0xf]
    %v120 = vld [vmem:[%s1 + $0x140] sm:$0xf]
    %v121 = vld [vmem:[%s1 + $0x144] sm:$0xf]
    %v122 = vld [vmem:[%s1 + $0x148] sm:$0xf]
    %v123 = vld [vmem:[%s1 + $0x14c] sm:$0xf]
    %v124 = vld [vmem:[%s1 + $0x150] sm:$0xf]
    %v125 = vld [vmem:[%s1 + $0x154] sm:$0xf]
    %v126 = vld [vmem:[%s1 + $0x158] sm:$0xf]
    %v127 = vld [vmem:[%s1 + $0x15c] sm:$0xf]
    %v128 = vld [vmem:[%s1 + $0x160] sm:$0xf]
    %v129 = vld [vmem:[%s1 + $0x164] sm:$0xf]
    %v130 = vld [vmem:[%s1 + $0x168] sm:$0xf]
    %v131 = vld [vmem:[%s1 + $0x16c] sm:$0xf]
    %v132 = vld [vmem:[%s1 + $0x170] sm:$0xf]
    %v133 = vld [vmem:[%s1 + $0x174] sm:$0xf]
    %v134 = vld [vmem:[%s1 + $0x178] sm:$0xf]
    %v135 = vld [vmem:[%s1 + $0x17c] sm:$0xf]
    %v136 = vld [vmem:[%s1 + $0x180] sm:$0xf]
    %v137 = vld [vmem:[%s1 + $0x184] sm:$0xf]
    %v138 = vld [vmem:[%s1 + $0x188] sm:$0xf]
    %v139 = vld [vmem:[%s1 + $0x18c] sm:$0xf]
    %v140 = vld [vmem:[%s1 + $0x190] sm:$0xf]
    %v141 = vld [vmem:[%s1 + $0x194] sm:$0xf]
    %v142 = vld [vmem:[%s1 + $0x198] sm:$0xf]
    %v143 = vld [vmem:[%s1 + $0x19c] sm:$0xf]
    %v144 = vld [vmem:[%s1 + $0x1a0] sm:$0xf]
    %v145 = vld [vmem:[%s1 + $0x1a4] sm:$0xf]
    %v146 = vld [vmem:[%s1 + $0x1a8] sm:$0xf]
    %v147 = vld [vmem:[%s1 + $0x1ac] sm:$0xf]
    %v148 = vld [vmem:[%s1 + $0x1b0] sm:$0xf]
    %v149 = vld [vmem:[%s1 + $0x1b4] sm:$0xf]
    %v150 = vld [vmem:[%s1 + $0x1b8] sm:$0xf]
    %v151 = vld [vmem:[%s1 + $0x1bc] sm:$0xf]
    %v152 = vld [vmem:[%s1 + $0x1c0] sm:$0xf]
    %v153 = vld [vmem:[%s1 + $0x1c4] sm:$0xf]
    %v154 = vld [vmem:[%s1 + $0x1c8] sm:$0xf]
    %v155 = vld [vmem:[%s1 + $0x1cc] sm:$0xf]
    %v156 = vld [vmem:[%s1 + $0x1d0] sm:$0xf]
    %v157 = vld [vmem:[%s1 + $0x1d4] sm:$0xf]
    %v158 = vld [vmem:[%s1 + $0x1d8] sm:$0xf]
    %v159 = vld [vmem:[%s1 + $0x1dc] sm:$0xf]
    %v160 = vld [vmem:[%s1 + $0x1e0] sm:$0xf]
    %v161 = vld [vmem:[%s1 + $0x1e4] sm:$0xf]
    %v162 = vld [vmem:[%s1 + $0x1e8] sm:$0xf]
    %v163 = vld [vmem:[%s1 + $0x1ec] sm:$0xf]
    %v164 = vld [vmem:[%s1 + $0x1f0] sm:$0xf]
    %v165 = vld [vmem:[%s1 + $0x1f4] sm:$0xf]
    %v166 = vld [vmem:[%s1 + $0x1f8] sm:$0xf]
    %v167 = vld [vmem:[%s1 + $0x1fc] sm:$0xf]
    %v168 = vld [vmem:[%s1 + $0x200] sm:$0xf]
    %v169 = vld [vmem:[%s1 + $0x204] sm:$0xf]
    %v170 = vld [vmem:[%s1 + $0x208] sm:$0xf]
    %v171 = vld [vmem:[%s1 + $0x20c] sm:$0xf]
    %v172 = vld [vmem:[%s1 + $0x210] sm:$0xf]
    %v173 = vld [vmem:[%s1 + $0x214] sm:$0xf]
    %v174 = vld [vmem:[%s1 + $0x218] sm:$0xf]
    %v175 = vld [vmem:[%s1 + $0x21c] sm:$0xf]
    %v176 = vld [vmem:[%s1 + $0x220] sm:$0xf]
    %v177 = vld [vmem:[%s1 + $0x224] sm:$0xf]
    %v178 = vld [vmem:[%s1 + $0x228] sm:$0xf]
    %v179 = vld [vmem:[%s1 + $0x22c] sm:$0xf]
    %v180 = vld [vmem:[%s1 + $0x230] sm:$0xf]
    %v181 = vld [vmem:[%s1 + $0x234] sm:$0xf]
    %v182 = vld [vmem:[%s1 + $0x238] sm:$0xf]
    %v183 = vld [vmem:[%s1 + $0x23c] sm:$0xf]
    %v184 = vld [vmem:[%s2] sm:$0x1]
    %v185 = vld [vmem:[%s0] sm:$0xff]
    %v186 = vld [vmem:[%s0 + $0x8] sm:$0xff]
    %v187 = vld [vmem:[%s0 + $0x10] sm:$0x3]
    %v191 = vcombine.high %v185, %v185
    %v193 = vunpack.c.l.s4 1983009808
    %v194 = vunpack.c.0.s8 %v193
    %v195 = vlaneseq
    %v196 = vshrl.u32 %v195, 7
    %v197 = vsub.s32 %v194, %v196
    %v198 = vrot.slane %v185, %v197
    %v200 = vunpack.c.l.s4 1983009808
    %v201 = vunpack.c.0.s8 %v200
    %v202 = vlaneseq
    %v203 = vshrl.u32 %v202, 7
    %v204 = vsub.s32 %v201, %v203
    %v205 = vrot.slane %v191, %v204
    %v206 = vcombine.high %v198, %v198
    %v207 = vcombine.high %v205, %v205
    %v208 = vcombine.high %v186, %v186
    %v210 = vunpack.c.l.s4 1983009808
    %v211 = vunpack.c.0.s8 %v210
    %v212 = vlaneseq
    %v213 = vshrl.u32 %v212, 7
    %v214 = vsub.s32 %v211, %v213
    %v215 = vrot.slane %v186, %v214
    %v217 = vunpack.c.l.s4 1983009808
    %v218 = vunpack.c.0.s8 %v217
    %v219 = vlaneseq
    %v220 = vshrl.u32 %v219, 7
    %v221 = vsub.s32 %v218, %v220
    %v222 = vrot.slane %v208, %v221
    %v223 = vcombine.high %v215, %v215
    %v224 = vcombine.high %v222, %v222
    %v226 = vunpack.c.l.s4 1983009808
    %v227 = vunpack.c.0.s8 %v226
    %v228 = vlaneseq
    %v229 = vshrl.u32 %v228, 7
    %v230 = vsub.s32 %v227, %v229
    %v231 = vrot.slane %v187, %v230
    %v241 = vpack.c.bf16 %v198, %v198
    %v242 = vpack.c.bf16 %v206, %v206
    %v243 = vpack.c.bf16 %v205, %v205
    %v244 = vpack.c.bf16 %v207, %v207
    %v245 = vpack.c.bf16 %v215, %v215
    %v246 = vpack.c.bf16 %v223, %v223
    %v247 = vpack.c.bf16 %v222, %v222
    %v248 = vpack.c.bf16 %v224, %v224
    %v249 = vpack.c.bf16 %v231, %v231
    %v251 = vlaneseq
    %v252 = vshrl.u32 %v251, 7
    %v253 = vsub.s32 0, %v252
    %v254 = vrot.slane %v184, %v253
    %v400 = vunpack.c.l.b16 %v40
    %v401 = vunpack.c.l.b16 %v41
    %v402 = vunpack.c.l.b16 %v42
    %v403 = vunpack.c.l.b16 %v43
    %v404 = vunpack.c.l.b16 %v44
    %v405 = vunpack.c.l.b16 %v45
    %v406 = vunpack.c.l.b16 %v46
    %v407 = vunpack.c.l.b16 %v47
    %v408 = vunpack.c.l.b16 %v48
    %v409 = vunpack.c.l.b16 %v49
    %v410 = vunpack.c.l.b16 %v50
    %v411 = vunpack.c.l.b16 %v51
    %v412 = vunpack.c.l.b16 %v52
    %v413 = vunpack.c.l.b16 %v53
    %v414 = vunpack.c.l.b16 %v54
    %v415 = vunpack.c.l.b16 %v55
    %v416 = vunpack.c.l.b16 %v56
    %v417 = vunpack.c.l.b16 %v57
    %v418 = vunpack.c.l.b16 %v58
    %v419 = vunpack.c.l.b16 %v59
    %v420 = vunpack.c.l.b16 %v60
    %v421 = vunpack.c.l.b16 %v61
    %v422 = vunpack.c.l.b16 %v62
    %v423 = vunpack.c.l.b16 %v63
    %v424 = vunpack.c.l.b16 %v64
    %v425 = vunpack.c.l.b16 %v65
    %v426 = vunpack.c.l.b16 %v66
    %v427 = vunpack.c.l.b16 %v67
    %v428 = vunpack.c.l.b16 %v68
    %v429 = vunpack.c.l.b16 %v69
    %v430 = vunpack.c.l.b16 %v70
    %v431 = vunpack.c.l.b16 %v71
    %v432 = vunpack.c.l.b16 %v72
    %v433 = vunpack.c.l.b16 %v73
    %v434 = vunpack.c.l.b16 %v74
    %v435 = vunpack.c.l.b16 %v75
    %v436 = vunpack.c.l.b16 %v76
    %v437 = vunpack.c.l.b16 %v77
    %v438 = vunpack.c.l.b16 %v78
    %v439 = vunpack.c.l.b16 %v79
    %v440 = vunpack.c.l.b16 %v80
    %v441 = vunpack.c.l.b16 %v81
    %v442 = vunpack.c.l.b16 %v82
    %v443 = vunpack.c.l.b16 %v83
    %v444 = vunpack.c.l.b16 %v84
    %v445 = vunpack.c.l.b16 %v85
    %v446 = vunpack.c.l.b16 %v86
    %v447 = vunpack.c.l.b16 %v87
    %v448 = vunpack.c.l.b16 %v88
    %v449 = vunpack.c.l.b16 %v89
    %v450 = vunpack.c.l.b16 %v90
    %v451 = vunpack.c.l.b16 %v91
    %v452 = vunpack.c.l.b16 %v92
    %v453 = vunpack.c.l.b16 %v93
    %v454 = vunpack.c.l.b16 %v94
    %v455 = vunpack.c.l.b16 %v95
    %v456 = vunpack.c.l.b16 %v96
    %v457 = vunpack.c.l.b16 %v97
    %v458 = vunpack.c.l.b16 %v98
    %v459 = vunpack.c.l.b16 %v99
    %v460 = vunpack.c.l.b16 %v100
    %v461 = vunpack.c.l.b16 %v101
    %v462 = vunpack.c.l.b16 %v102
    %v463 = vunpack.c.l.b16 %v103
    %v464 = vunpack.c.l.b16 %v104
    %v465 = vunpack.c.l.b16 %v105
    %v466 = vunpack.c.l.b16 %v106
    %v467 = vunpack.c.l.b16 %v107
    %v468 = vunpack.c.l.b16 %v108
    %v469 = vunpack.c.l.b16 %v109
    %v470 = vunpack.c.l.b16 %v110
    %v471 = vunpack.c.l.b16 %v111
    %v472 = vunpack.c.l.b16 %v112
    %v473 = vunpack.c.l.b16 %v113
    %v474 = vunpack.c.l.b16 %v114
    %v475 = vunpack.c.l.b16 %v115
    %v476 = vunpack.c.l.b16 %v116
    %v477 = vunpack.c.l.b16 %v117
    %v478 = vunpack.c.l.b16 %v118
    %v479 = vunpack.c.l.b16 %v119
    %v480 = vunpack.c.l.b16 %v120
    %v481 = vunpack.c.l.b16 %v121
    %v482 = vunpack.c.l.b16 %v122
    %v483 = vunpack.c.l.b16 %v123
    %v484 = vunpack.c.l.b16 %v124
    %v485 = vunpack.c.l.b16 %v125
    %v486 = vunpack.c.l.b16 %v126
    %v487 = vunpack.c.l.b16 %v127
    %v488 = vunpack.c.l.b16 %v128
    %v489 = vunpack.c.l.b16 %v129
    %v490 = vunpack.c.l.b16 %v130
    %v491 = vunpack.c.l.b16 %v131
    %v492 = vunpack.c.l.b16 %v132
    %v493 = vunpack.c.l.b16 %v133
    %v494 = vunpack.c.l.b16 %v134
    %v495 = vunpack.c.l.b16 %v135
    %v496 = vunpack.c.l.b16 %v136
    %v497 = vunpack.c.l.b16 %v137
    %v498 = vunpack.c.l.b16 %v138
    %v499 = vunpack.c.l.b16 %v139
    %v500 = vunpack.c.l.b16 %v140
    %v501 = vunpack.c.l.b16 %v141
    %v502 = vunpack.c.l.b16 %v142
    %v503 = vunpack.c.l.b16 %v143
    %v504 = vunpack.c.l.b16 %v144
    %v505 = vunpack.c.l.b16 %v145
    %v506 = vunpack.c.l.b16 %v146
    %v507 = vunpack.c.l.b16 %v147
    %v508 = vunpack.c.l.b16 %v148
    %v509 = vunpack.c.l.b16 %v149
    %v510 = vunpack.c.l.b16 %v150
    %v511 = vunpack.c.l.b16 %v151
    %v512 = vunpack.c.l.b16 %v152
    %v513 = vunpack.c.l.b16 %v153
    %v514 = vunpack.c.l.b16 %v154
    %v515 = vunpack.c.l.b16 %v155
    %v516 = vunpack.c.l.b16 %v156
    %v517 = vunpack.c.l.b16 %v157
    %v518 = vunpack.c.l.b16 %v158
    %v519 = vunpack.c.l.b16 %v159
    %v520 = vunpack.c.l.b16 %v160
    %v521 = vunpack.c.l.b16 %v161
    %v522 = vunpack.c.l.b16 %v162
    %v523 = vunpack.c.l.b16 %v163
    %v524 = vunpack.c.l.b16 %v164
    %v525 = vunpack.c.l.b16 %v165
    %v526 = vunpack.c.l.b16 %v166
    %v527 = vunpack.c.l.b16 %v167
    %v528 = vunpack.c.l.b16 %v168
    %v529 = vunpack.c.l.b16 %v169
    %v530 = vunpack.c.l.b16 %v170
    %v531 = vunpack.c.l.b16 %v171
    %v532 = vunpack.c.l.b16 %v172
    %v533 = vunpack.c.l.b16 %v173
    %v534 = vunpack.c.l.b16 %v174
    %v535 = vunpack.c.l.b16 %v175
    %v536 = vunpack.c.l.b16 %v176
    %v537 = vunpack.c.l.b16 %v177
    %v538 = vunpack.c.l.b16 %v178
    %v539 = vunpack.c.l.b16 %v179
    %v540 = vunpack.c.l.b16 %v180
    %v541 = vunpack.c.l.b16 %v181
    %v542 = vunpack.c.l.b16 %v182
    %v543 = vunpack.c.l.b16 %v183
    %v544 = vpack.c.b16 %v401, %v400
    %v545 = vpack.c.b16 %v403, %v402
    %v546 = vpack.c.b16 %v405, %v404
    %v547 = vpack.c.b16 %v407, %v406
    %v548 = vpack.c.b16 %v409, %v408
    %v549 = vpack.c.b16 %v411, %v410
    %v550 = vpack.c.b16 %v413, %v412
    %v551 = vpack.c.b16 %v415, %v414
    %v552 = vpack.c.b16 %v417, %v416
    %v553 = vpack.c.b16 %v419, %v418
    %v554 = vpack.c.b16 %v421, %v420
    %v555 = vpack.c.b16 %v423, %v422
    %v556 = vpack.c.b16 %v425, %v424
    %v557 = vpack.c.b16 %v427, %v426
    %v558 = vpack.c.b16 %v429, %v428
    %v559 = vpack.c.b16 %v431, %v430
    %v560 = vpack.c.b16 %v433, %v432
    %v561 = vpack.c.b16 %v435, %v434
    %v562 = vpack.c.b16 %v437, %v436
    %v563 = vpack.c.b16 %v439, %v438
    %v564 = vpack.c.b16 %v441, %v440
    %v565 = vpack.c.b16 %v443, %v442
    %v566 = vpack.c.b16 %v445, %v444
    %v567 = vpack.c.b16 %v447, %v446
    %v568 = vpack.c.b16 %v449, %v448
    %v569 = vpack.c.b16 %v451, %v450
    %v570 = vpack.c.b16 %v453, %v452
    %v571 = vpack.c.b16 %v455, %v454
    %v572 = vpack.c.b16 %v457, %v456
    %v573 = vpack.c.b16 %v459, %v458
    %v574 = vpack.c.b16 %v461, %v460
    %v575 = vpack.c.b16 %v463, %v462
    %v576 = vpack.c.b16 %v465, %v464
    %v577 = vpack.c.b16 %v467, %v466
    %v578 = vpack.c.b16 %v469, %v468
    %v579 = vpack.c.b16 %v471, %v470
    %v580 = vpack.c.b16 %v473, %v472
    %v581 = vpack.c.b16 %v475, %v474
    %v582 = vpack.c.b16 %v477, %v476
    %v583 = vpack.c.b16 %v479, %v478
    %v584 = vpack.c.b16 %v481, %v480
    %v585 = vpack.c.b16 %v483, %v482
    %v586 = vpack.c.b16 %v485, %v484
    %v587 = vpack.c.b16 %v487, %v486
    %v588 = vpack.c.b16 %v489, %v488
    %v589 = vpack.c.b16 %v491, %v490
    %v590 = vpack.c.b16 %v493, %v492
    %v591 = vpack.c.b16 %v495, %v494
    %v592 = vpack.c.b16 %v497, %v496
    %v593 = vpack.c.b16 %v499, %v498
    %v594 = vpack.c.b16 %v501, %v500
    %v595 = vpack.c.b16 %v503, %v502
    %v596 = vpack.c.b16 %v505, %v504
    %v597 = vpack.c.b16 %v507, %v506
    %v598 = vpack.c.b16 %v509, %v508
    %v599 = vpack.c.b16 %v511, %v510
    %v600 = vpack.c.b16 %v513, %v512
    %v601 = vpack.c.b16 %v515, %v514
    %v602 = vpack.c.b16 %v517, %v516
    %v603 = vpack.c.b16 %v519, %v518
    %v604 = vpack.c.b16 %v521, %v520
    %v605 = vpack.c.b16 %v523, %v522
    %v606 = vpack.c.b16 %v525, %v524
    %v607 = vpack.c.b16 %v527, %v526
    %v608 = vpack.c.b16 %v529, %v528
    %v609 = vpack.c.b16 %v531, %v530
    %v610 = vpack.c.b16 %v533, %v532
    %v611 = vpack.c.b16 %v535, %v534
    %v612 = vpack.c.b16 %v537, %v536
    %v613 = vpack.c.b16 %v539, %v538
    %v614 = vpack.c.b16 %v541, %v540
    %v615 = vpack.c.b16 %v543, %v542
    %688 = vmatprep.subr.bf16.mxu0 0
    %689 = vmatpush1.bf16.msra.mxu0 %v544
    %690 = vmatprep.subr.bf16.mxu0 0
    %691 = vmatpush1.bf16.msra.mxu0 %v545
    %692 = vmatprep.subr.bf16.mxu0 0
    %693 = vmatpush1.bf16.msra.mxu0 %v546
    %694 = vmatprep.subr.bf16.mxu0 0
    %695 = vmatpush1.bf16.msra.mxu0 %v547
    %696 = vmatprep.subr.bf16.mxu0 0
    %697 = vmatpush1.bf16.msra.mxu0 %v548
    %698 = vmatprep.subr.bf16.mxu0 0
    %699 = vmatpush1.bf16.msra.mxu0 %v549
    %700 = vmatprep.subr.bf16.mxu0 0
    %701 = vmatpush1.bf16.msra.mxu0 %v550
    %702 = vmatprep.subr.bf16.mxu0 0
    %703 = vmatpush1.bf16.msra.mxu0 %v551
    %704 = vmatprep.subr.bf16.mxu0 0
    %705 = vmatpush1.bf16.msra.mxu0 %v552
    %706 = vmatprep.subr.bf16.mxu0 0
    %707 = vmatpush1.bf16.msra.mxu0 %v553
    %708 = vmatprep.subr.bf16.mxu0 0
    %709 = vmatpush1.bf16.msra.mxu0 %v554
    %710 = vmatprep.subr.bf16.mxu0 0
    %711 = vmatpush1.bf16.msra.mxu0 %v555
    %712 = vmatprep.subr.bf16.mxu0 0
    %713 = vmatpush1.bf16.msra.mxu0 %v556
    %714 = vmatprep.subr.bf16.mxu0 0
    %715 = vmatpush1.bf16.msra.mxu0 %v557
    %716 = vmatprep.subr.bf16.mxu0 0
    %717 = vmatpush1.bf16.msra.mxu0 %v558
    %718 = vmatprep.subr.bf16.mxu0 0
    %719 = vmatpush1.bf16.msra.mxu0 %v559
    %720 = vmatprep.mubr.bf16.mxu0 %v242
    %721 = vmatmul.mubr.bf16.gmra.mrb[0].mxu0 %v241
    %v722 = vpop.f32.mrb[0].mxu0
    %v723 = vadd.f32 %v254, %v722
    %v724 = vpop.f32.mrb[0].mxu0
    %v725 = vpop.f32.mrb[0].mxu0
    %v726 = vpop.f32.mrb[0].mxu0
    %727 = vdwg.mxu0
    %728 = vmatprep.subr.bf16.mxu0 0
    %729 = vmatpush1.bf16.msra.mxu0 %v560
    %730 = vmatprep.subr.bf16.mxu0 0
    %731 = vmatpush1.bf16.msra.mxu0 %v561
    %732 = vmatprep.subr.bf16.mxu0 0
    %733 = vmatpush1.bf16.msra.mxu0 %v562
    %734 = vmatprep.subr.bf16.mxu0 0
    %735 = vmatpush1.bf16.msra.mxu0 %v563
    %736 = vmatprep.subr.bf16.mxu0 0
    %737 = vmatpush1.bf16.msra.mxu0 %v564
    %738 = vmatprep.subr.bf16.mxu0 0
    %739 = vmatpush1.bf16.msra.mxu0 %v565
    %740 = vmatprep.subr.bf16.mxu0 0
    %741 = vmatpush1.bf16.msra.mxu0 %v566
    %742 = vmatprep.subr.bf16.mxu0 0
    %743 = vmatpush1.bf16.msra.mxu0 %v567
    %744 = vmatprep.subr.bf16.mxu0 0
    %745 = vmatpush1.bf16.msra.mxu0 %v568
    %746 = vmatprep.subr.bf16.mxu0 0
    %747 = vmatpush1.bf16.msra.mxu0 %v569
    %748 = vmatprep.subr.bf16.mxu0 0
    %749 = vmatpush1.bf16.msra.mxu0 %v570
    %750 = vmatprep.subr.bf16.mxu0 0
    %751 = vmatpush1.bf16.msra.mxu0 %v571
    %752 = vmatprep.subr.bf16.mxu0 0
    %753 = vmatpush1.bf16.msra.mxu0 %v572
    %754 = vmatprep.subr.bf16.mxu0 0
    %755 = vmatpush1.bf16.msra.mxu0 %v573
    %756 = vmatprep.subr.bf16.mxu0 0
    %757 = vmatpush1.bf16.msra.mxu0 %v574
    %758 = vmatprep.subr.bf16.mxu0 0
    %759 = vmatpush1.bf16.msra.mxu0 %v575
    %760 = vmatprep.mubr.bf16.mxu0 %v244
    %761 = vmatmul.mubr.bf16.gmra.mrb[0].mxu0 %v243
    %v762 = vpop.f32.mrb[0].mxu0
    %v763 = vadd.f32 %v723, %v762
    %v764 = vpop.f32.mrb[0].mxu0
    %v765 = vpop.f32.mrb[0].mxu0
    %v766 = vpop.f32.mrb[0].mxu0
    %767 = vdwg.mxu0
    %768 = vmatprep.subr.bf16.mxu0 0
    %769 = vmatpush1.bf16.msra.mxu0 %v576
    %770 = vmatprep.subr.bf16.mxu0 0
    %771 = vmatpush1.bf16.msra.mxu0 %v577
    %772 = vmatprep.subr.bf16.mxu0 0
    %773 = vmatpush1.bf16.msra.mxu0 %v578
    %774 = vmatprep.subr.bf16.mxu0 0
    %775 = vmatpush1.bf16.msra.mxu0 %v579
    %776 = vmatprep.subr.bf16.mxu0 0
    %777 = vmatpush1.bf16.msra.mxu0 %v580
    %778 = vmatprep.subr.bf16.mxu0 0
    %779 = vmatpush1.bf16.msra.mxu0 %v581
    %780 = vmatprep.subr.bf16.mxu0 0
    %781 = vmatpush1.bf16.msra.mxu0 %v582
    %782 = vmatprep.subr.bf16.mxu0 0
    %783 = vmatpush1.bf16.msra.mxu0 %v583
    %784 = vmatprep.subr.bf16.mxu0 0
    %785 = vmatpush1.bf16.msra.mxu0 %v584
    %786 = vmatprep.subr.bf16.mxu0 0
    %787 = vmatpush1.bf16.msra.mxu0 %v585
    %788 = vmatprep.subr.bf16.mxu0 0
    %789 = vmatpush1.bf16.msra.mxu0 %v586
    %790 = vmatprep.subr.bf16.mxu0 0
    %791 = vmatpush1.bf16.msra.mxu0 %v587
    %792 = vmatprep.subr.bf16.mxu0 0
    %793 = vmatpush1.bf16.msra.mxu0 %v588
    %794 = vmatprep.subr.bf16.mxu0 0
    %795 = vmatpush1.bf16.msra.mxu0 %v589
    %796 = vmatprep.subr.bf16.mxu0 0
    %797 = vmatpush1.bf16.msra.mxu0 %v590
    %798 = vmatprep.subr.bf16.mxu0 0
    %799 = vmatpush1.bf16.msra.mxu0 %v591
    %800 = vmatprep.mubr.bf16.mxu0 %v246
    %801 = vmatmul.mubr.bf16.gmra.mrb[0].mxu0 %v245
    %v802 = vpop.f32.mrb[0].mxu0
    %v803 = vadd.f32 %v763, %v802
    %v804 = vpop.f32.mrb[0].mxu0
    %v805 = vpop.f32.mrb[0].mxu0
    %v806 = vpop.f32.mrb[0].mxu0
    %807 = vdwg.mxu0
    %808 = vmatprep.subr.bf16.mxu0 0
    %809 = vmatpush1.bf16.msra.mxu0 %v592
    %810 = vmatprep.subr.bf16.mxu0 0
    %811 = vmatpush1.bf16.msra.mxu0 %v593
    %812 = vmatprep.subr.bf16.mxu0 0
    %813 = vmatpush1.bf16.msra.mxu0 %v594
    %814 = vmatprep.subr.bf16.mxu0 0
    %815 = vmatpush1.bf16.msra.mxu0 %v595
    %816 = vmatprep.subr.bf16.mxu0 0
    %817 = vmatpush1.bf16.msra.mxu0 %v596
    %818 = vmatprep.subr.bf16.mxu0 0
    %819 = vmatpush1.bf16.msra.mxu0 %v597
    %820 = vmatprep.subr.bf16.mxu0 0
    %821 = vmatpush1.bf16.msra.mxu0 %v598
    %822 = vmatprep.subr.bf16.mxu0 0
    %823 = vmatpush1.bf16.msra.mxu0 %v599
    %824 = vmatprep.subr.bf16.mxu0 0
    %825 = vmatpush1.bf16.msra.mxu0 %v600
    %826 = vmatprep.subr.bf16.mxu0 0
    %827 = vmatpush1.bf16.msra.mxu0 %v601
    %828 = vmatprep.subr.bf16.mxu0 0
    %829 = vmatpush1.bf16.msra.mxu0 %v602
    %830 = vmatprep.subr.bf16.mxu0 0
    %831 = vmatpush1.bf16.msra.mxu0 %v603
    %832 = vmatprep.subr.bf16.mxu0 0
    %833 = vmatpush1.bf16.msra.mxu0 %v604
    %834 = vmatprep.subr.bf16.mxu0 0
    %835 = vmatpush1.bf16.msra.mxu0 %v605
    %836 = vmatprep.subr.bf16.mxu0 0
    %837 = vmatpush1.bf16.msra.mxu0 %v606
    %838 = vmatprep.subr.bf16.mxu0 0
    %839 = vmatpush1.bf16.msra.mxu0 %v607
    %840 = vmatprep.mubr.bf16.mxu0 %v248
    %841 = vmatmul.mubr.bf16.gmra.mrb[0].mxu0 %v247
    %v842 = vpop.f32.mrb[0].mxu0
    %v843 = vadd.f32 %v803, %v842
    %v844 = vpop.f32.mrb[0].mxu0
    %v845 = vpop.f32.mrb[0].mxu0
    %v846 = vpop.f32.mrb[0].mxu0
    %847 = vdwg.mxu0
    %848 = vmatprep.subr.bf16.mxu0 0
    %849 = vmatpush1.bf16.msra.mxu0 %v608
    %850 = vmatprep.subr.bf16.mxu0 0
    %851 = vmatpush1.bf16.msra.mxu0 %v609
    %852 = vmatprep.subr.bf16.mxu0 0
    %853 = vmatpush1.bf16.msra.mxu0 %v610
    %854 = vmatprep.subr.bf16.mxu0 0
    %855 = vmatpush1.bf16.msra.mxu0 %v611
    %856 = vmatprep.subr.bf16.mxu0 0
    %857 = vmatpush1.bf16.msra.mxu0 %v612
    %858 = vmatprep.subr.bf16.mxu0 0
    %859 = vmatpush1.bf16.msra.mxu0 %v613
    %860 = vmatprep.subr.bf16.mxu0 0
    %861 = vmatpush1.bf16.msra.mxu0 %v614
    %862 = vmatprep.subr.bf16.mxu0 0
    %863 = vmatpush1.bf16.msra.mxu0 %v615
    %864 = vmatprep.subr.bf16.mxu0 0
    %865 = vmatpush1.bf16.msra.mxu0 0
    %866 = vmatprep.subr.bf16.mxu0 0
    %867 = vmatpush1.bf16.msra.mxu0 0
    %868 = vmatprep.subr.bf16.mxu0 0
    %869 = vmatpush1.bf16.msra.mxu0 0
    %870 = vmatprep.subr.bf16.mxu0 0
    %871 = vmatpush1.bf16.msra.mxu0 0
    %872 = vmatprep.subr.bf16.mxu0 0
    %873 = vmatpush1.bf16.msra.mxu0 0
    %874 = vmatprep.subr.bf16.mxu0 0
    %875 = vmatpush1.bf16.msra.mxu0 0
    %876 = vmatprep.subr.bf16.mxu0 0
    %877 = vmatpush1.bf16.msra.mxu0 0
    %878 = vmatprep.subr.bf16.mxu0 0
    %879 = vmatpush1.bf16.msra.mxu0 0
    %880 = vmatprep.mubr.bf16.mxu0 0
    %881 = vmatmul.mubr.bf16.gmra.mrb[0].mxu0 %v249
    %v882 = vpop.f32.mrb[0].mxu0
    %v883 = vadd.f32 %v843, %v882
    %v884 = vpop.f32.mrb[0].mxu0
    %v885 = vpop.f32.mrb[0].mxu0
    %v886 = vpop.f32.mrb[0].mxu0
    %887 = vdwg.mxu0
    %v888 = vmax.f32 %v883, 0.0
    %889 = vst [vmem:[#allocation2] sm:$0x3] %v888
    %v890 = vld [vmem:[%s0 + $0x8] sm:$0xff]
    %v891 = vld [vmem:[%s0 + $0x10] sm:$0xff]
    %v892 = vld [vmem:[%s0 + $0x18] sm:$0xf]
    %v896 = vcombine.high %v890, %v890
    %v898 = vunpack.c.l.s4 1983009808
    %v899 = vunpack.c.0.s8 %v898
    %v900 = vlaneseq
    %v901 = vshrl.u32 %v900, 7
    %v902 = vsub.s32 %v899, %v901
    %v903 = vrot.slane %v890, %v902
    %v905 = vunpack.c.l.s4 1983009808
    %v906 = vunpack.c.0.s8 %v905
    %v907 = vlaneseq
    %v908 = vshrl.u32 %v907, 7
    %v909 = vsub.s32 %v906, %v908
    %v910 = vrot.slane %v896, %v909
    %v911 = vcombine.high %v903, %v903
    %v912 = vcombine.high %v910, %v910
    %v913 = vcombine.high %v891, %v891
    %v915 = vunpack.c.l.s4 1983009808
    %v916 = vunpack.c.0.s8 %v915
    %v917 = vlaneseq
    %v918 = vshrl.u32 %v917, 7
    %v919 = vsub.s32 %v916, %v918
    %v920 = vrot.slane %v891, %v919
    %v922 = vunpack.c.l.s4 1983009808
    %v923 = vunpack.c.0.s8 %v922
    %v924 = vlaneseq
    %v925 = vshrl.u32 %v924, 7
    %v926 = vsub.s32 %v923, %v925
    %v927 = vrot.slane %v913, %v926
    %v928 = vcombine.high %v920, %v920
    %v929 = vcombine.high %v927, %v927
    %v931 = vunpack.c.l.s4 1983009808
    %v932 = vunpack.c.0.s8 %v931
    %v933 = vlaneseq
    %v934 = vshrl.u32 %v933, 7
    %v935 = vsub.s32 %v932, %v934
    %v936 = vrot.slane %v892, %v935
    %v937 = vcombine.high %v936, %v936
    %v948 = vpack.c.bf16 %v903, %v903
    %v949 = vpack.c.bf16 %v911, %v911
    %v950 = vpack.c.bf16 %v910, %v910
    %v951 = vpack.c.bf16 %v912, %v912
    %v952 = vpack.c.bf16 %v920, %v920
    %v953 = vpack.c.bf16 %v928, %v928
    %v954 = vpack.c.bf16 %v927, %v927
    %v955 = vpack.c.bf16 %v929, %v929
    %v956 = vpack.c.bf16 %v936, %v936
    %v957 = vpack.c.bf16 %v937, %v937
    %968 = vrot.lane.b32.xlu0 %v948, 64
    %v969 = vpop.permute.xlu0 %968
    %970 = vrot.lane.b32.xlu0 %v949, 64
    %v971 = vpop.permute.xlu0 %970
    %972 = vrot.lane.b32.xlu0 %v950, 64
    %v973 = vpop.permute.xlu0 %972
    %974 = vrot.lane.b32.xlu0 %v951, 64
    %v975 = vpop.permute.xlu0 %974
    %976 = vrot.lane.b32.xlu0 %v952, 64
    %v977 = vpop.permute.xlu0 %976
    %978 = vrot.lane.b32.xlu0 %v953, 64
    %v979 = vpop.permute.xlu0 %978
    %980 = vrot.lane.b32.xlu0 %v954, 64
    %v981 = vpop.permute.xlu0 %980
    %982 = vrot.lane.b32.xlu0 %v955, 64
    %v983 = vpop.permute.xlu0 %982
    %984 = vrot.lane.b32.xlu0 %v956, 64
    %v985 = vpop.permute.xlu0 %984
    %986 = vrot.lane.b32.xlu0 %v957, 64
    %v987 = vpop.permute.xlu0 %986
    %vm988 = vcmask 523264
    %v989 = vsel %vm988, %v969, %v971
    %v990 = vsel %vm988, %v971, %v973
    %v991 = vsel %vm988, %v973, %v975
    %v992 = vsel %vm988, %v975, %v977
    %v993 = vsel %vm988, %v977, %v979
    %v994 = vsel %vm988, %v979, %v981
    %v995 = vsel %vm988, %v981, %v983
    %v996 = vsel %vm988, %v983, %v985
    %v997 = vsel %vm988, %v985, %v987
    %1007 = vmatprep.subr.bf16.mxu0 0
    %1008 = vmatpush1.bf16.msra.mxu0 %v544
    %1009 = vmatprep.subr.bf16.mxu0 0
    %1010 = vmatpush1.bf16.msra.mxu0 %v545
    %1011 = vmatprep.subr.bf16.mxu0 0
    %1012 = vmatpush1.bf16.msra.mxu0 %v546
    %1013 = vmatprep.subr.bf16.mxu0 0
    %1014 = vmatpush1.bf16.msra.mxu0 %v547
    %1015 = vmatprep.subr.bf16.mxu0 0
    %1016 = vmatpush1.bf16.msra.mxu0 %v548
    %1017 = vmatprep.subr.bf16.mxu0 0
    %1018 = vmatpush1.bf16.msra.mxu0 %v549
    %1019 = vmatprep.subr.bf16.mxu0 0
    %1020 = vmatpush1.bf16.msra.mxu0 %v550
    %1021 = vmatprep.subr.bf16.mxu0 0
    %1022 = vmatpush1.bf16.msra.mxu0 %v551
    %1023 = vmatprep.subr.bf16.mxu0 0
    %1024 = vmatpush1.bf16.msra.mxu0 %v552
    %1025 = vmatprep.subr.bf16.mxu0 0
    %1026 = vmatpush1.bf16.msra.mxu0 %v553
    %1027 = vmatprep.subr.bf16.mxu0 0
    %1028 = vmatpush1.bf16.msra.mxu0 %v554
    %1029 = vmatprep.subr.bf16.mxu0 0
    %1030 = vmatpush1.bf16.msra.mxu0 %v555
    %1031 = vmatprep.subr.bf16.mxu0 0
    %1032 = vmatpush1.bf16.msra.mxu0 %v556
    %1033 = vmatprep.subr.bf16.mxu0 0
    %1034 = vmatpush1.bf16.msra.mxu0 %v557
    %1035 = vmatprep.subr.bf16.mxu0 0
    %1036 = vmatpush1.bf16.msra.mxu0 %v558
    %1037 = vmatprep.subr.bf16.mxu0 0
    %1038 = vmatpush1.bf16.msra.mxu0 %v559
    %1039 = vmatprep.mubr.bf16.mxu0 %v990
    %1040 = vmatmul.mubr.bf16.gmra.mrb[0].mxu0 %v989
    %v1041 = vpop.f32.mrb[0].mxu0
    %v1042 = vadd.f32 %v254, %v1041
    %v1043 = vpop.f32.mrb[0].mxu0
    %v1044 = vpop.f32.mrb[0].mxu0
    %v1045 = vpop.f32.mrb[0].mxu0
    %1046 = vdwg.mxu0
    %1047 = vmatprep.subr.bf16.mxu0 0
    %1048 = vmatpush1.bf16.msra.mxu0 %v560
    %1049 = vmatprep.subr.bf16.mxu0 0
    %1050 = vmatpush1.bf16.msra.mxu0 %v561
    %1051 = vmatprep.subr.bf16.mxu0 0
    %1052 = vmatpush1.bf16.msra.mxu0 %v562
    %1053 = vmatprep.subr.bf16.mxu0 0
    %1054 = vmatpush1.bf16.msra.mxu0 %v563
    %1055 = vmatprep.subr.bf16.mxu0 0
    %1056 = vmatpush1.bf16.msra.mxu0 %v564
    %1057 = vmatprep.subr.bf16.mxu0 0
    %1058 = vmatpush1.bf16.msra.mxu0 %v565
    %1059 = vmatprep.subr.bf16.mxu0 0
    %1060 = vmatpush1.bf16.msra.mxu0 %v566
    %1061 = vmatprep.subr.bf16.mxu0 0
    %1062 = vmatpush1.bf16.msra.mxu0 %v567
    %1063 = vmatprep.subr.bf16.mxu0 0
    %1064 = vmatpush1.bf16.msra.mxu0 %v568
    %1065 = vmatprep.subr.bf16.mxu0 0
    %1066 = vmatpush1.bf16.msra.mxu0 %v569
    %1067 = vmatprep.subr.bf16.mxu0 0
    %1068 = vmatpush1.bf16.msra.mxu0 %v570
    %1069 = vmatprep.subr.bf16.mxu0 0
    %1070 = vmatpush1.bf16.msra.mxu0 %v571
    %1071 = vmatprep.subr.bf16.mxu0 0
    %1072 = vmatpush1.bf16.msra.mxu0 %v572
    %1073 = vmatprep.subr.bf16.mxu0 0
    %1074 = vmatpush1.bf16.msra.mxu0 %v573
    %1075 = vmatprep.subr.bf16.mxu0 0
    %1076 = vmatpush1.bf16.msra.mxu0 %v574
    %1077 = vmatprep.subr.bf16.mxu0 0
    %1078 = vmatpush1.bf16.msra.mxu0 %v575
    %1079 = vmatprep.mubr.bf16.mxu0 %v992
    %1080 = vmatmul.mubr.bf16.gmra.mrb[0].mxu0 %v991
    %v1081 = vpop.f32.mrb[0].mxu0
    %v1082 = vadd.f32 %v1042, %v1081
    %v1083 = vpop.f32.mrb[0].mxu0
    %v1084 = vpop.f32.mrb[0].mxu0
    %v1085 = vpop.f32.mrb[0].mxu0
    %1086 = vdwg.mxu0
    %1087 = vmatprep.subr.bf16.mxu0 0
    %1088 = vmatpush1.bf16.msra.mxu0 %v576
    %1089 = vmatprep.subr.bf16.mxu0 0
    %1090 = vmatpush1.bf16.msra.mxu0 %v577
    %1091 = vmatprep.subr.bf16.mxu0 0
    %1092 = vmatpush1.bf16.msra.mxu0 %v578
    %1093 = vmatprep.subr.bf16.mxu0 0
    %1094 = vmatpush1.bf16.msra.mxu0 %v579
    %1095 = vmatprep.subr.bf16.mxu0 0
    %1096 = vmatpush1.bf16.msra.mxu0 %v580
    %1097 = vmatprep.subr.bf16.mxu0 0
    %1098 = vmatpush1.bf16.msra.mxu0 %v581
    %1099 = vmatprep.subr.bf16.mxu0 0
    %1100 = vmatpush1.bf16.msra.mxu0 %v582
    %1101 = vmatprep.subr.bf16.mxu0 0
    %1102 = vmatpush1.bf16.msra.mxu0 %v583
    %1103 = vmatprep.subr.bf16.mxu0 0
    %1104 = vmatpush1.bf16.msra.mxu0 %v584
    %1105 = vmatprep.subr.bf16.mxu0 0
    %1106 = vmatpush1.bf16.msra.mxu0 %v585
    %1107 = vmatprep.subr.bf16.mxu0 0
    %1108 = vmatpush1.bf16.msra.mxu0 %v586
    %1109 = vmatprep.subr.bf16.mxu0 0
    %1110 = vmatpush1.bf16.msra.mxu0 %v587
    %1111 = vmatprep.subr.bf16.mxu0 0
    %1112 = vmatpush1.bf16.msra.mxu0 %v588
    %1113 = vmatprep.subr.bf16.mxu0 0
    %1114 = vmatpush1.bf16.msra.mxu0 %v589
    %1115 = vmatprep.subr.bf16.mxu0 0
    %1116 = vmatpush1.bf16.msra.mxu0 %v590
    %1117 = vmatprep.subr.bf16.mxu0 0
    %1118 = vmatpush1.bf16.msra.mxu0 %v591
    %1119 = vmatprep.mubr.bf16.mxu0 %v994
    %1120 = vmatmul.mubr.bf16.gmra.mrb[0].mxu0 %v993
    %v1121 = vpop.f32.mrb[0].mxu0
    %v1122 = vadd.f32 %v1082, %v1121
    %v1123 = vpop.f32.mrb[0].mxu0
    %v1124 = vpop.f32.mrb[0].mxu0
    %v1125 = vpop.f32.mrb[0].mxu0
    %1126 = vdwg.mxu0
    %1127 = vmatprep.subr.bf16.mxu0 0
    %1128 = vmatpush1.bf16.msra.mxu0 %v592
    %1129 = vmatprep.subr.bf16.mxu0 0
    %1130 = vmatpush1.bf16.msra.mxu0 %v593
    %1131 = vmatprep.subr.bf16.mxu0 0
    %1132 = vmatpush1.bf16.msra.mxu0 %v594
    %1133 = vmatprep.subr.bf16.mxu0 0
    %1134 = vmatpush1.bf16.msra.mxu0 %v595
    %1135 = vmatprep.subr.bf16.mxu0 0
    %1136 = vmatpush1.bf16.msra.mxu0 %v596
    %1137 = vmatprep.subr.bf16.mxu0 0
    %1138 = vmatpush1.bf16.msra.mxu0 %v597
    %1139 = vmatprep.subr.bf16.mxu0 0
    %1140 = vmatpush1.bf16.msra.mxu0 %v598
    %1141 = vmatprep.subr.bf16.mxu0 0
    %1142 = vmatpush1.bf16.msra.mxu0 %v599
    %1143 = vmatprep.subr.bf16.mxu0 0
    %1144 = vmatpush1.bf16.msra.mxu0 %v600
    %1145 = vmatprep.subr.bf16.mxu0 0
    %1146 = vmatpush1.bf16.msra.mxu0 %v601
    %1147 = vmatprep.subr.bf16.mxu0 0
    %1148 = vmatpush1.bf16.msra.mxu0 %v602
    %1149 = vmatprep.subr.bf16.mxu0 0
    %1150 = vmatpush1.bf16.msra.mxu0 %v603
    %1151 = vmatprep.subr.bf16.mxu0 0
    %1152 = vmatpush1.bf16.msra.mxu0 %v604
    %1153 = vmatprep.subr.bf16.mxu0 0
    %1154 = vmatpush1.bf16.msra.mxu0 %v605
    %1155 = vmatprep.subr.bf16.mxu0 0
    %1156 = vmatpush1.bf16.msra.mxu0 %v606
    %1157 = vmatprep.subr.bf16.mxu0 0
    %1158 = vmatpush1.bf16.msra.mxu0 %v607
    %1159 = vmatprep.mubr.bf16.mxu0 %v996
    %1160 = vmatmul.mubr.bf16.gmra.mrb[0].mxu0 %v995
    %v1161 = vpop.f32.mrb[0].mxu0
    %v1162 = vadd.f32 %v1122, %v1161
    %v1163 = vpop.f32.mrb[0].mxu0
    %v1164 = vpop.f32.mrb[0].mxu0
    %v1165 = vpop.f32.mrb[0].mxu0
    %1166 = vdwg.mxu0
    %1167 = vmatprep.subr.bf16.mxu0 0
    %1168 = vmatpush1.bf16.msra.mxu0 %v608
    %1169 = vmatprep.subr.bf16.mxu0 0
    %1170 = vmatpush1.bf16.msra.mxu0 %v609
    %1171 = vmatprep.subr.bf16.mxu0 0
    %1172 = vmatpush1.bf16.msra.mxu0 %v610
    %1173 = vmatprep.subr.bf16.mxu0 0
    %1174 = vmatpush1.bf16.msra.mxu0 %v611
    %1175 = vmatprep.subr.bf16.mxu0 0
    %1176 = vmatpush1.bf16.msra.mxu0 %v612
    %1177 = vmatprep.subr.bf16.mxu0 0
    %1178 = vmatpush1.bf16.msra.mxu0 %v613
    %1179 = vmatprep.subr.bf16.mxu0 0
    %1180 = vmatpush1.bf16.msra.mxu0 %v614
    %1181 = vmatprep.subr.bf16.mxu0 0
    %1182 = vmatpush1.bf16.msra.mxu0 %v615
    %1183 = vmatprep.subr.bf16.mxu0 0
    %1184 = vmatpush1.bf16.msra.mxu0 0
    %1185 = vmatprep.subr.bf16.mxu0 0
    %1186 = vmatpush1.bf16.msra.mxu0 0
    %1187 = vmatprep.subr.bf16.mxu0 0
    %1188 = vmatpush1.bf16.msra.mxu0 0
    %1189 = vmatprep.subr.bf16.mxu0 0
    %1190 = vmatpush1.bf16.msra.mxu0 0
    %1191 = vmatprep.subr.bf16.mxu0 0
    %1192 = vmatpush1.bf16.msra.mxu0 0
    %1193 = vmatprep.subr.bf16.mxu0 0
    %1194 = vmatpush1.bf16.msra.mxu0 0
    %1195 = vmatprep.subr.bf16.mxu0 0
    %1196 = vmatpush1.bf16.msra.mxu0 0
    %1197 = vmatprep.subr.bf16.mxu0 0
    %1198 = vmatpush1.bf16.msra.mxu0 0
    %1199 = vmatprep.mubr.bf16.mxu0 0
    %1200 = vmatmul.mubr.bf16.gmra.mrb[0].mxu0 %v997
    %v1201 = vpop.f32.mrb[0].mxu0
    %v1202 = vadd.f32 %v1162, %v1201
    %v1203 = vpop.f32.mrb[0].mxu0
    %v1204 = vpop.f32.mrb[0].mxu0
    %v1205 = vpop.f32.mrb[0].mxu0
    %1206 = vdwg.mxu0
    %v1207 = vmax.f32 %v1202, 0.0
    %1208 = vst [vmem:[#allocation2 + $0x2] sm:$0x3] %v1207
    %v1209 = vld [vmem:[%s0 + $0x12] sm:$0xff]
    %v1210 = vld [vmem:[%s0 + $0x1a] sm:$0xff]
    %v1211 = vld [vmem:[%s0 + $0x22] sm:$0x3]
    %v1215 = vcombine.high %v1209, %v1209
    %v1217 = vunpack.c.l.s4 1983009808
    %v1218 = vunpack.c.0.s8 %v1217
    %v1219 = vlaneseq
    %v1220 = vshrl.u32 %v1219, 7
    %v1221 = vsub.s32 %v1218, %v1220
    %v1222 = vrot.slane %v1209, %v1221
    %v1224 = vunpack.c.l.s4 1983009808
    %v1225 = vunpack.c.0.s8 %v1224
    %v1226 = vlaneseq
    %v1227 = vshrl.u32 %v1226, 7
    %v1228 = vsub.s32 %v1225, %v1227
    %v1229 = vrot.slane %v1215, %v1228
    %v1230 = vcombine.high %v1222, %v1222
    %v1231 = vcombine.high %v1229, %v1229
    %v1232 = vcombine.high %v1210, %v1210
    %v1234 = vunpack.c.l.s4 1983009808
    %v1235 = vunpack.c.0.s8 %v1234
    %v1236 = vlaneseq
    %v1237 = vshrl.u32 %v1236, 7
    %v1238 = vsub.s32 %v1235, %v1237
    %v1239 = vrot.slane %v1210, %v1238
    %v1241 = vunpack.c.l.s4 1983009808
    %v1242 = vunpack.c.0.s8 %v1241
    %v1243 = vlaneseq
    %v1244 = vshrl.u32 %v1243, 7
    %v1245 = vsub.s32 %v1242, %v1244
    %v1246 = vrot.slane %v1232, %v1245
    %v1247 = vcombine.high %v1239, %v1239
    %v1248 = vcombine.high %v1246, %v1246
    %v1250 = vunpack.c.l.s4 1983009808
    %v1251 = vunpack.c.0.s8 %v1250
    %v1252 = vlaneseq
    %v1253 = vshrl.u32 %v1252, 7
    %v1254 = vsub.s32 %v1251, %v1253
    %v1255 = vrot.slane %v1211, %v1254
    %v1265 = vpack.c.bf16 %v1222, %v1222
    %v1266 = vpack.c.bf16 %v1230, %v1230
    %v1267 = vpack.c.bf16 %v1229, %v1229
    %v1268 = vpack.c.bf16 %v1231, %v1231
    %v1269 = vpack.c.bf16 %v1239, %v1239
    %v1270 = vpack.c.bf16 %v1247, %v1247
    %v1271 = vpack.c.bf16 %v1246, %v1246
    %v1272 = vpack.c.bf16 %v1248, %v1248
    %v1273 = vpack.c.bf16 %v1255, %v1255
    %1274 = vmatprep.subr.bf16.mxu0 0
    %1275 = vmatpush1.bf16.msra.mxu0 %v544
    %1276 = vmatprep.subr.bf16.mxu0 0
    %1277 = vmatpush1.bf16.msra.mxu0 %v545
    %1278 = vmatprep.subr.bf16.mxu0 0
    %1279 = vmatpush1.bf16.msra.mxu0 %v546
    %1280 = vmatprep.subr.bf16.mxu0 0
    %1281 = vmatpush1.bf16.msra.mxu0 %v547
    %1282 = vmatprep.subr.bf16.mxu0 0
    %1283 = vmatpush1.bf16.msra.mxu0 %v548
    %1284 = vmatprep.subr.bf16.mxu0 0
    %1285 = vmatpush1.bf16.msra.mxu0 %v549
    %1286 = vmatprep.subr.bf16.mxu0 0
    %1287 = vmatpush1.bf16.msra.mxu0 %v550
    %1288 = vmatprep.subr.bf16.mxu0 0
    %1289 = vmatpush1.bf16.msra.mxu0 %v551
    %1290 = vmatprep.subr.bf16.mxu0 0
    %1291 = vmatpush1.bf16.msra.mxu0 %v552
    %1292 = vmatprep.subr.bf16.mxu0 0
    %1293 = vmatpush1.bf16.msra.mxu0 %v553
    %1294 = vmatprep.subr.bf16.mxu0 0
    %1295 = vmatpush1.bf16.msra.mxu0 %v554
    %1296 = vmatprep.subr.bf16.mxu0 0
    %1297 = vmatpush1.bf16.msra.mxu0 %v555
    %1298 = vmatprep.subr.bf16.mxu0 0
    %1299 = vmatpush1.bf16.msra.mxu0 %v556
    %1300 = vmatprep.subr.bf16.mxu0 0
    %1301 = vmatpush1.bf16.msra.mxu0 %v557
    %1302 = vmatprep.subr.bf16.mxu0 0
    %1303 = vmatpush1.bf16.msra.mxu0 %v558
    %1304 = vmatprep.subr.bf16.mxu0 0
    %1305 = vmatpush1.bf16.msra.mxu0 %v559
    %1306 = vmatprep.mubr.bf16.mxu0 %v1266
    %1307 = vmatmul.mubr.bf16.gmra.mrb[0].mxu0 %v1265
    %v1308 = vpop.f32.mrb[0].mxu0
    %v1309 = vadd.f32 %v254, %v1308
    %v1310 = vpop.f32.mrb[0].mxu0
    %v1311 = vpop.f32.mrb[0].mxu0
    %v1312 = vpop.f32.mrb[0].mxu0
    %1313 = vdwg.mxu0
    %1314 = vmatprep.subr.bf16.mxu0 0
    %1315 = vmatpush1.bf16.msra.mxu0 %v560
    %1316 = vmatprep.subr.bf16.mxu0 0
    %1317 = vmatpush1.bf16.msra.mxu0 %v561
    %1318 = vmatprep.subr.bf16.mxu0 0
    %1319 = vmatpush1.bf16.msra.mxu0 %v562
    %1320 = vmatprep.subr.bf16.mxu0 0
    %1321 = vmatpush1.bf16.msra.mxu0 %v563
    %1322 = vmatprep.subr.bf16.mxu0 0
    %1323 = vmatpush1.bf16.msra.mxu0 %v564
    %1324 = vmatprep.subr.bf16.mxu0 0
    %1325 = vmatpush1.bf16.msra.mxu0 %v565
    %1326 = vmatprep.subr.bf16.mxu0 0
    %1327 = vmatpush1.bf16.msra.mxu0 %v566
    %1328 = vmatprep.subr.bf16.mxu0 0
    %1329 = vmatpush1.bf16.msra.mxu0 %v567
    %1330 = vmatprep.subr.bf16.mxu0 0
    %1331 = vmatpush1.bf16.msra.mxu0 %v568
    %1332 = vmatprep.subr.bf16.mxu0 0
    %1333 = vmatpush1.bf16.msra.mxu0 %v569
    %1334 = vmatprep.subr.bf16.mxu0 0
    %1335 = vmatpush1.bf16.msra.mxu0 %v570
    %1336 = vmatprep.subr.bf16.mxu0 0
    %1337 = vmatpush1.bf16.msra.mxu0 %v571
    %1338 = vmatprep.subr.bf16.mxu0 0
    %1339 = vmatpush1.bf16.msra.mxu0 %v572
    %1340 = vmatprep.subr.bf16.mxu0 0
    %1341 = vmatpush1.bf16.msra.mxu0 %v573
    %1342 = vmatprep.subr.bf16.mxu0 0
    %1343 = vmatpush1.bf16.msra.mxu0 %v574
    %1344 = vmatprep.subr.bf16.mxu0 0
    %1345 = vmatpush1.bf16.msra.mxu0 %v575
    %1346 = vmatprep.mubr.bf16.mxu0 %v1268
    %1347 = vmatmul.mubr.bf16.gmra.mrb[0].mxu0 %v1267
    %v1348 = vpop.f32.mrb[0].mxu0
    %v1349 = vadd.f32 %v1309, %v1348
    %v1350 = vpop.f32.mrb[0].mxu0
    %v1351 = vpop.f32.mrb[0].mxu0
    %v1352 = vpop.f32.mrb[0].mxu0
    %1353 = vdwg.mxu0
    %1354 = vmatprep.subr.bf16.mxu0 0
    %1355 = vmatpush1.bf16.msra.mxu0 %v576
    %1356 = vmatprep.subr.bf16.mxu0 0
    %1357 = vmatpush1.bf16.msra.mxu0 %v577
    %1358 = vmatprep.subr.bf16.mxu0 0
    %1359 = vmatpush1.bf16.msra.mxu0 %v578
    %1360 = vmatprep.subr.bf16.mxu0 0
    %1361 = vmatpush1.bf16.msra.mxu0 %v579
    %1362 = vmatprep.subr.bf16.mxu0 0
    %1363 = vmatpush1.bf16.msra.mxu0 %v580
    %1364 = vmatprep.subr.bf16.mxu0 0
    %1365 = vmatpush1.bf16.msra.mxu0 %v581
    %1366 = vmatprep.subr.bf16.mxu0 0
    %1367 = vmatpush1.bf16.msra.mxu0 %v582
    %1368 = vmatprep.subr.bf16.mxu0 0
    %1369 = vmatpush1.bf16.msra.mxu0 %v583
    %1370 = vmatprep.subr.bf16.mxu0 0
    %1371 = vmatpush1.bf16.msra.mxu0 %v584
    %1372 = vmatprep.subr.bf16.mxu0 0
    %1373 = vmatpush1.bf16.msra.mxu0 %v585
    %1374 = vmatprep.subr.bf16.mxu0 0
    %1375 = vmatpush1.bf16.msra.mxu0 %v586
    %1376 = vmatprep.subr.bf16.mxu0 0
    %1377 = vmatpush1.bf16.msra.mxu0 %v587
    %1378 = vmatprep.subr.bf16.mxu0 0
    %1379 = vmatpush1.bf16.msra.mxu0 %v588
    %1380 = vmatprep.subr.bf16.mxu0 0
    %1381 = vmatpush1.bf16.msra.mxu0 %v589
    %1382 = vmatprep.subr.bf16.mxu0 0
    %1383 = vmatpush1.bf16.msra.mxu0 %v590
    %1384 = vmatprep.subr.bf16.mxu0 0
    %1385 = vmatpush1.bf16.msra.mxu0 %v591
    %1386 = vmatprep.mubr.bf16.mxu0 %v1270
    %1387 = vmatmul.mubr.bf16.gmra.mrb[0].mxu0 %v1269
    %v1388 = vpop.f32.mrb[0].mxu0
    %v1389 = vadd.f32 %v1349, %v1388
    %v1390 = vpop.f32.mrb[0].mxu0
    %v1391 = vpop.f32.mrb[0].mxu0
    %v1392 = vpop.f32.mrb[0].mxu0
    %1393 = vdwg.mxu0
    %1394 = vmatprep.subr.bf16.mxu0 0
    %1395 = vmatpush1.bf16.msra.mxu0 %v592
    %1396 = vmatprep.subr.bf16.mxu0 0
    %1397 = vmatpush1.bf16.msra.mxu0 %v593
    %1398 = vmatprep.subr.bf16.mxu0 0
    %1399 = vmatpush1.bf16.msra.mxu0 %v594
    %1400 = vmatprep.subr.bf16.mxu0 0
    %1401 = vmatpush1.bf16.msra.mxu0 %v595
    %1402 = vmatprep.subr.bf16.mxu0 0
    %1403 = vmatpush1.bf16.msra.mxu0 %v596
    %1404 = vmatprep.subr.bf16.mxu0 0
    %1405 = vmatpush1.bf16.msra.mxu0 %v597
    %1406 = vmatprep.subr.bf16.mxu0 0
    %1407 = vmatpush1.bf16.msra.mxu0 %v598
    %1408 = vmatprep.subr.bf16.mxu0 0
    %1409 = vmatpush1.bf16.msra.mxu0 %v599
    %1410 = vmatprep.subr.bf16.mxu0 0
    %1411 = vmatpush1.bf16.msra.mxu0 %v600
    %1412 = vmatprep.subr.bf16.mxu0 0
    %1413 = vmatpush1.bf16.msra.mxu0 %v601
    %1414 = vmatprep.subr.bf16.mxu0 0
    %1415 = vmatpush1.bf16.msra.mxu0 %v602
    %1416 = vmatprep.subr.bf16.mxu0 0
    %1417 = vmatpush1.bf16.msra.mxu0 %v603
    %1418 = vmatprep.subr.bf16.mxu0 0
    %1419 = vmatpush1.bf16.msra.mxu0 %v604
    %1420 = vmatprep.subr.bf16.mxu0 0
    %1421 = vmatpush1.bf16.msra.mxu0 %v605
    %1422 = vmatprep.subr.bf16.mxu0 0
    %1423 = vmatpush1.bf16.msra.mxu0 %v606
    %1424 = vmatprep.subr.bf16.mxu0 0
    %1425 = vmatpush1.bf16.msra.mxu0 %v607
    %1426 = vmatprep.mubr.bf16.mxu0 %v1272
    %1427 = vmatmul.mubr.bf16.gmra.mrb[0].mxu0 %v1271
    %v1428 = vpop.f32.mrb[0].mxu0
    %v1429 = vadd.f32 %v1389, %v1428
    %v1430 = vpop.f32.mrb[0].mxu0
    %v1431 = vpop.f32.mrb[0].mxu0
    %v1432 = vpop.f32.mrb[0].mxu0
    %1433 = vdwg.mxu0
    %1434 = vmatprep.subr.bf16.mxu0 0
    %1435 = vmatpush1.bf16.msra.mxu0 %v608
    %1436 = vmatprep.subr.bf16.mxu0 0
    %1437 = vmatpush1.bf16.msra.mxu0 %v609
    %1438 = vmatprep.subr.bf16.mxu0 0
    %1439 = vmatpush1.bf16.msra.mxu0 %v610
    %1440 = vmatprep.subr.bf16.mxu0 0
    %1441 = vmatpush1.bf16.msra.mxu0 %v611
    %1442 = vmatprep.subr.bf16.mxu0 0
    %1443 = vmatpush1.bf16.msra.mxu0 %v612
    %1444 = vmatprep.subr.bf16.mxu0 0
    %1445 = vmatpush1.bf16.msra.mxu0 %v613
    %1446 = vmatprep.subr.bf16.mxu0 0
    %1447 = vmatpush1.bf16.msra.mxu0 %v614
    %1448 = vmatprep.subr.bf16.mxu0 0
    %1449 = vmatpush1.bf16.msra.mxu0 %v615
    %1450 = vmatprep.subr.bf16.mxu0 0
    %1451 = vmatpush1.bf16.msra.mxu0 0
    %1452 = vmatprep.subr.bf16.mxu0 0
    %1453 = vmatpush1.bf16.msra.mxu0 0
    %1454 = vmatprep.subr.bf16.mxu0 0
    %1455 = vmatpush1.bf16.msra.mxu0 0
    %1456 = vmatprep.subr.bf16.mxu0 0
    %1457 = vmatpush1.bf16.msra.mxu0 0
    %1458 = vmatprep.subr.bf16.mxu0 0
    %1459 = vmatpush1.bf16.msra.mxu0 0
    %1460 = vmatprep.subr.bf16.mxu0 0
    %1461 = vmatpush1.bf16.msra.mxu0 0
    %1462 = vmatprep.subr.bf16.mxu0 0
    %1463 = vmatpush1.bf16.msra.mxu0 0
    %1464 = vmatprep.subr.bf16.mxu0 0
    %1465 = vmatpush1.bf16.msra.mxu0 0
    %1466 = vmatprep.mubr.bf16.mxu0 0
    %1467 = vmatmul.mubr.bf16.gmra.mrb[0].mxu0 %v1273
    %v1468 = vpop.f32.mrb[0].mxu0
    %v1469 = vadd.f32 %v1429, %v1468
    %v1470 = vpop.f32.mrb[0].mxu0
    %v1471 = vpop.f32.mrb[0].mxu0
    %v1472 = vpop.f32.mrb[0].mxu0
    %1473 = vdwg.mxu0
    %v1474 = vmax.f32 %v1469, 0.0
    %1475 = vst [vmem:[#allocation2 + $0x4] sm:$0x3] %v1474
    %v1476 = vld [vmem:[%s0 + $0x1a] sm:$0xff]
    %v1477 = vld [vmem:[%s0 + $0x22] sm:$0xff]
    %v1478 = vld [vmem:[%s0 + $0x2a] sm:$0xf]
    %v1482 = vcombine.high %v1476, %v1476
    %v1484 = vunpack.c.l.s4 1983009808
    %v1485 = vunpack.c.0.s8 %v1484
    %v1486 = vlaneseq
    %v1487 = vshrl.u32 %v1486, 7
    %v1488 = vsub.s32 %v1485, %v1487
    %v1489 = vrot.slane %v1476, %v1488
    %v1491 = vunpack.c.l.s4 1983009808
    %v1492 = vunpack.c.0.s8 %v1491
    %v1493 = vlaneseq
    %v1494 = vshrl.u32 %v1493, 7
    %v1495 = vsub.s32 %v1492, %v1494
    %v1496 = vrot.slane %v1482, %v1495
    %v1497 = vcombine.high %v1489, %v1489
    %v1498 = vcombine.high %v1496, %v1496
    %v1499 = vcombine.high %v1477, %v1477
    %v1501 = vunpack.c.l.s4 1983009808
    %v1502 = vunpack.c.0.s8 %v1501
    %v1503 = vlaneseq
    %v1504 = vshrl.u32 %v1503, 7
    %v1505 = vsub.s32 %v1502, %v1504
    %v1506 = vrot.slane %v1477, %v1505
    %v1508 = vunpack.c.l.s4 1983009808
    %v1509 = vunpack.c.0.s8 %v1508
    %v1510 = vlaneseq
    %v1511 = vshrl.u32 %v1510, 7
    %v1512 = vsub.s32 %v1509, %v1511
    %v1513 = vrot.slane %v1499, %v1512
    %v1514 = vcombine.high %v1506, %v1506
    %v1515 = vcombine.high %v1513, %v1513
    %v1517 = vunpack.c.l.s4 1983009808
    %v1518 = vunpack.c.0.s8 %v1517
    %v1519 = vlaneseq
    %v1520 = vshrl.u32 %v1519, 7
    %v1521 = vsub.s32 %v1518, %v1520
    %v1522 = vrot.slane %v1478, %v1521
    %v1523 = vcombine.high %v1522, %v1522
    %v1534 = vpack.c.bf16 %v1489, %v1489
    %v1535 = vpack.c.bf16 %v1497, %v1497
    %v1536 = vpack.c.bf16 %v1496, %v1496
    %v1537 = vpack.c.bf16 %v1498, %v1498
    %v1538 = vpack.c.bf16 %v1506, %v1506
    %v1539 = vpack.c.bf16 %v1514, %v1514
    %v1540 = vpack.c.bf16 %v1513, %v1513
    %v1541 = vpack.c.bf16 %v1515, %v1515
    %v1542 = vpack.c.bf16 %v1522, %v1522
    %v1543 = vpack.c.bf16 %v1523, %v1523
    %1554 = vrot.lane.b32.xlu0 %v1534, 64
    %v1555 = vpop.permute.xlu0 %1554
    %1556 = vrot.lane.b32.xlu0 %v1535, 64
    %v1557 = vpop.permute.xlu0 %1556
    %1558 = vrot.lane.b32.xlu0 %v1536, 64
    %v1559 = vpop.permute.xlu0 %1558
    %1560 = vrot.lane.b32.xlu0 %v1537, 64
    %v1561 = vpop.permute.xlu0 %1560
    %1562 = vrot.lane.b32.xlu0 %v1538, 64
    %v1563 = vpop.permute.xlu0 %1562
    %1564 = vrot.lane.b32.xlu0 %v1539, 64
    %v1565 = vpop.permute.xlu0 %1564
    %1566 = vrot.lane.b32.xlu0 %v1540, 64
    %v1567 = vpop.permute.xlu0 %1566
    %1568 = vrot.lane.b32.xlu0 %v1541, 64
    %v1569 = vpop.permute.xlu0 %1568
    %1570 = vrot.lane.b32.xlu0 %v1542, 64
    %v1571 = vpop.permute.xlu0 %1570
    %1572 = vrot.lane.b32.xlu0 %v1543, 64
    %v1573 = vpop.permute.xlu0 %1572
    %v1574 = vsel %vm988, %v1555, %v1557
    %v1575 = vsel %vm988, %v1557, %v1559
    %v1576 = vsel %vm988, %v1559, %v1561
    %v1577 = vsel %vm988, %v1561, %v1563
    %v1578 = vsel %vm988, %v1563, %v1565
    %v1579 = vsel %vm988, %v1565, %v1567
    %v1580 = vsel %vm988, %v1567, %v1569
    %v1581 = vsel %vm988, %v1569, %v1571
    %v1582 = vsel %vm988, %v1571, %v1573
    %1592 = vmatprep.subr.bf16.mxu0 0
    %1593 = vmatpush1.bf16.msra.mxu0 %v544
    %1594 = vmatprep.subr.bf16.mxu0 0
    %1595 = vmatpush1.bf16.msra.mxu0 %v545
    %1596 = vmatprep.subr.bf16.mxu0 0
    %1597 = vmatpush1.bf16.msra.mxu0 %v546
    %1598 = vmatprep.subr.bf16.mxu0 0
    %1599 = vmatpush1.bf16.msra.mxu0 %v547
    %1600 = vmatprep.subr.bf16.mxu0 0
    %1601 = vmatpush1.bf16.msra.mxu0 %v548
    %1602 = vmatprep.subr.bf16.mxu0 0
    %1603 = vmatpush1.bf16.msra.mxu0 %v549
    %1604 = vmatprep.subr.bf16.mxu0 0
    %1605 = vmatpush1.bf16.msra.mxu0 %v550
    %1606 = vmatprep.subr.bf16.mxu0 0
    %1607 = vmatpush1.bf16.msra.mxu0 %v551
    %1608 = vmatprep.subr.bf16.mxu0 0
    %1609 = vmatpush1.bf16.msra.mxu0 %v552
    %1610 = vmatprep.subr.bf16.mxu0 0
    %1611 = vmatpush1.bf16.msra.mxu0 %v553
    %1612 = vmatprep.subr.bf16.mxu0 0
    %1613 = vmatpush1.bf16.msra.mxu0 %v554
    %1614 = vmatprep.subr.bf16.mxu0 0
    %1615 = vmatpush1.bf16.msra.mxu0 %v555
    %1616 = vmatprep.subr.bf16.mxu0 0
    %1617 = vmatpush1.bf16.msra.mxu0 %v556
    %1618 = vmatprep.subr.bf16.mxu0 0
    %1619 = vmatpush1.bf16.msra.mxu0 %v557
    %1620 = vmatprep.subr.bf16.mxu0 0
    %1621 = vmatpush1.bf16.msra.mxu0 %v558
    %1622 = vmatprep.subr.bf16.mxu0 0
    %1623 = vmatpush1.bf16.msra.mxu0 %v559
    %1624 = vmatprep.mubr.bf16.mxu0 %v1575
    %1625 = vmatmul.mubr.bf16.gmra.mrb[0].mxu0 %v1574
    %v1626 = vpop.f32.mrb[0].mxu0
    %v1627 = vadd.f32 %v254, %v1626
    %v1628 = vpop.f32.mrb[0].mxu0
    %v1629 = vpop.f32.mrb[0].mxu0
    %v1630 = vpop.f32.mrb[0].mxu0
    %1631 = vdwg.mxu0
    %1632 = vmatprep.subr.bf16.mxu0 0
    %1633 = vmatpush1.bf16.msra.mxu0 %v560
    %1634 = vmatprep.subr.bf16.mxu0 0
    %1635 = vmatpush1.bf16.msra.mxu0 %v561
    %1636 = vmatprep.subr.bf16.mxu0 0
    %1637 = vmatpush1.bf16.msra.mxu0 %v562
    %1638 = vmatprep.subr.bf16.mxu0 0
    %1639 = vmatpush1.bf16.msra.mxu0 %v563
    %1640 = vmatprep.subr.bf16.mxu0 0
    %1641 = vmatpush1.bf16.msra.mxu0 %v564
    %1642 = vmatprep.subr.bf16.mxu0 0
    %1643 = vmatpush1.bf16.msra.mxu0 %v565
    %1644 = vmatprep.subr.bf16.mxu0 0
    %1645 = vmatpush1.bf16.msra.mxu0 %v566
    %1646 = vmatprep.subr.bf16.mxu0 0
    %1647 = vmatpush1.bf16.msra.mxu0 %v567
    %1648 = vmatprep.subr.bf16.mxu0 0
    %1649 = vmatpush1.bf16.msra.mxu0 %v568
    %1650 = vmatprep.subr.bf16.mxu0 0
    %1651 = vmatpush1.bf16.msra.mxu0 %v569
    %1652 = vmatprep.subr.bf16.mxu0 0
    %1653 = vmatpush1.bf16.msra.mxu0 %v570
    %1654 = vmatprep.subr.bf16.mxu0 0
    %1655 = vmatpush1.bf16.msra.mxu0 %v571
    %1656 = vmatprep.subr.bf16.mxu0 0
    %1657 = vmatpush1.bf16.msra.mxu0 %v572
    %1658 = vmatprep.subr.bf16.mxu0 0
    %1659 = vmatpush1.bf16.msra.mxu0 %v573
    %1660 = vmatprep.subr.bf16.mxu0 0
    %1661 = vmatpush1.bf16.msra.mxu0 %v574
    %1662 = vmatprep.subr.bf16.mxu0 0
    %1663 = vmatpush1.bf16.msra.mxu0 %v575
    %1664 = vmatprep.mubr.bf16.mxu0 %v1577
    %1665 = vmatmul.mubr.bf16.gmra.mrb[0].mxu0 %v1576
    %v1666 = vpop.f32.mrb[0].mxu0
    %v1667 = vadd.f32 %v1627, %v1666
    %v1668 = vpop.f32.mrb[0].mxu0
    %v1669 = vpop.f32.mrb[0].mxu0
    %v1670 = vpop.f32.mrb[0].mxu0
    %1671 = vdwg.mxu0
    %1672 = vmatprep.subr.bf16.mxu0 0
    %1673 = vmatpush1.bf16.msra.mxu0 %v576
    %1674 = vmatprep.subr.bf16.mxu0 0
    %1675 = vmatpush1.bf16.msra.mxu0 %v577
    %1676 = vmatprep.subr.bf16.mxu0 0
    %1677 = vmatpush1.bf16.msra.mxu0 %v578
    %1678 = vmatprep.subr.bf16.mxu0 0
    %1679 = vmatpush1.bf16.msra.mxu0 %v579
    %1680 = vmatprep.subr.bf16.mxu0 0
    %1681 = vmatpush1.bf16.msra.mxu0 %v580
    %1682 = vmatprep.subr.bf16.mxu0 0
    %1683 = vmatpush1.bf16.msra.mxu0 %v581
    %1684 = vmatprep.subr.bf16.mxu0 0
    %1685 = vmatpush1.bf16.msra.mxu0 %v582
    %1686 = vmatprep.subr.bf16.mxu0 0
    %1687 = vmatpush1.bf16.msra.mxu0 %v583
    %1688 = vmatprep.subr.bf16.mxu0 0
    %1689 = vmatpush1.bf16.msra.mxu0 %v584
    %1690 = vmatprep.subr.bf16.mxu0 0
    %1691 = vmatpush1.bf16.msra.mxu0 %v585
    %1692 = vmatprep.subr.bf16.mxu0 0
    %1693 = vmatpush1.bf16.msra.mxu0 %v586
    %1694 = vmatprep.subr.bf16.mxu0 0
    %1695 = vmatpush1.bf16.msra.mxu0 %v587
    %1696 = vmatprep.subr.bf16.mxu0 0
    %1697 = vmatpush1.bf16.msra.mxu0 %v588
    %1698 = vmatprep.subr.bf16.mxu0 0
    %1699 = vmatpush1.bf16.msra.mxu0 %v589
    %1700 = vmatprep.subr.bf16.mxu0 0
    %1701 = vmatpush1.bf16.msra.mxu0 %v590
    %1702 = vmatprep.subr.bf16.mxu0 0
    %1703 = vmatpush1.bf16.msra.mxu0 %v591
    %1704 = vmatprep.mubr.bf16.mxu0 %v1579
    %1705 = vmatmul.mubr.bf16.gmra.mrb[0].mxu0 %v1578
    %v1706 = vpop.f32.mrb[0].mxu0
    %v1707 = vadd.f32 %v1667, %v1706
    %v1708 = vpop.f32.mrb[0].mxu0
    %v1709 = vpop.f32.mrb[0].mxu0
    %v1710 = vpop.f32.mrb[0].mxu0
    %1711 = vdwg.mxu0
    %1712 = vmatprep.subr.bf16.mxu0 0
    %1713 = vmatpush1.bf16.msra.mxu0 %v592
    %1714 = vmatprep.subr.bf16.mxu0 0
    %1715 = vmatpush1.bf16.msra.mxu0 %v593
    %1716 = vmatprep.subr.bf16.mxu0 0
    %1717 = vmatpush1.bf16.msra.mxu0 %v594
    %1718 = vmatprep.subr.bf16.mxu0 0
    %1719 = vmatpush1.bf16.msra.mxu0 %v595
    %1720 = vmatprep.subr.bf16.mxu0 0
    %1721 = vmatpush1.bf16.msra.mxu0 %v596
    %1722 = vmatprep.subr.bf16.mxu0 0
    %1723 = vmatpush1.bf16.msra.mxu0 %v597
    %1724 = vmatprep.subr.bf16.mxu0 0
    %1725 = vmatpush1.bf16.msra.mxu0 %v598
    %1726 = vmatprep.subr.bf16.mxu0 0
    %1727 = vmatpush1.bf16.msra.mxu0 %v599
    %1728 = vmatprep.subr.bf16.mxu0 0
    %1729 = vmatpush1.bf16.msra.mxu0 %v600
    %1730 = vmatprep.subr.bf16.mxu0 0
    %1731 = vmatpush1.bf16.msra.mxu0 %v601
    %1732 = vmatprep.subr.bf16.mxu0 0
    %1733 = vmatpush1.bf16.msra.mxu0 %v602
    %1734 = vmatprep.subr.bf16.mxu0 0
    %1735 = vmatpush1.bf16.msra.mxu0 %v603
    %1736 = vmatprep.subr.bf16.mxu0 0
    %1737 = vmatpush1.bf16.msra.mxu0 %v604
    %1738 = vmatprep.subr.bf16.mxu0 0
    %1739 = vmatpush1.bf16.msra.mxu0 %v605
    %1740 = vmatprep.subr.bf16.mxu0 0
    %1741 = vmatpush1.bf16.msra.mxu0 %v606
    %1742 = vmatprep.subr.bf16.mxu0 0
    %1743 = vmatpush1.bf16.msra.mxu0 %v607
    %1744 = vmatprep.mubr.bf16.mxu0 %v1581
    %1745 = vmatmul.mubr.bf16.gmra.mrb[0].mxu0 %v1580
    %v1746 = vpop.f32.mrb[0].mxu0
    %v1747 = vadd.f32 %v1707, %v1746
    %v1748 = vpop.f32.mrb[0].mxu0
    %v1749 = vpop.f32.mrb[0].mxu0
    %v1750 = vpop.f32.mrb[0].mxu0
    %1751 = vdwg.mxu0
    %1752 = vmatprep.subr.bf16.mxu0 0
    %1753 = vmatpush1.bf16.msra.mxu0 %v608
    %1754 = vmatprep.subr.bf16.mxu0 0
    %1755 = vmatpush1.bf16.msra.mxu0 %v609
    %1756 = vmatprep.subr.bf16.mxu0 0
    %1757 = vmatpush1.bf16.msra.mxu0 %v610
    %1758 = vmatprep.subr.bf16.mxu0 0
    %1759 = vmatpush1.bf16.msra.mxu0 %v611
    %1760 = vmatprep.subr.bf16.mxu0 0
    %1761 = vmatpush1.bf16.msra.mxu0 %v612
    %1762 = vmatprep.subr.bf16.mxu0 0
    %1763 = vmatpush1.bf16.msra.mxu0 %v613
    %1764 = vmatprep.subr.bf16.mxu0 0
    %1765 = vmatpush1.bf16.msra.mxu0 %v614
    %1766 = vmatprep.subr.bf16.mxu0 0
    %1767 = vmatpush1.bf16.msra.mxu0 %v615
    %1768 = vmatprep.subr.bf16.mxu0 0
    %1769 = vmatpush1.bf16.msra.mxu0 0
    %1770 = vmatprep.subr.bf16.mxu0 0
    %1771 = vmatpush1.bf16.msra.mxu0 0
    %1772 = vmatprep.subr.bf16.mxu0 0
    %1773 = vmatpush1.bf16.msra.mxu0 0
    %1774 = vmatprep.subr.bf16.mxu0 0
    %1775 = vmatpush1.bf16.msra.mxu0 0
    %1776 = vmatprep.subr.bf16.mxu0 0
    %1777 = vmatpush1.bf16.msra.mxu0 0
    %1778 = vmatprep.subr.bf16.mxu0 0
    %1779 = vmatpush1.bf16.msra.mxu0 0
    %1780 = vmatprep.subr.bf16.mxu0 0
    %1781 = vmatpush1.bf16.msra.mxu0 0
    %1782 = vmatprep.subr.bf16.mxu0 0
    %1783 = vmatpush1.bf16.msra.mxu0 0
    %1784 = vmatprep.mubr.bf16.mxu0 0
    %1785 = vmatmul.mubr.bf16.gmra.mrb[0].mxu0 %v1582
    %v1786 = vpop.f32.mrb[0].mxu0
    %v1787 = vadd.f32 %v1747, %v1786
    %v1788 = vpop.f32.mrb[0].mxu0
    %v1789 = vpop.f32.mrb[0].mxu0
    %v1790 = vpop.f32.mrb[0].mxu0
    %1791 = vdwg.mxu0
    %v1792 = vmax.f32 %v1787, 0.0
    %1793 = vst [vmem:[#allocation2 + $0x6] sm:$0x3] %v1792
    %v1794 = vld [vmem:[%s0 + $0x24] sm:$0xff]
    %v1795 = vld [vmem:[%s0 + $0x2c] sm:$0xff]
    %v1796 = vld [vmem:[%s0 + $0x34] sm:$0x3]
    %v1800 = vcombine.high %v1794, %v1794
    %v1802 = vunpack.c.l.s4 1983009808
    %v1803 = vunpack.c.0.s8 %v1802
    %v1804 = vlaneseq
    %v1805 = vshrl.u32 %v1804, 7
    %v1806 = vsub.s32 %v1803, %v1805
    %v1807 = vrot.slane %v1794, %v1806
    %v1809 = vunpack.c.l.s4 1983009808
    %v1810 = vunpack.c.0.s8 %v1809
    %v1811 = vlaneseq
    %v1812 = vshrl.u32 %v1811, 7
    %v1813 = vsub.s32 %v1810, %v1812
    %v1814 = vrot.slane %v1800, %v1813
    %v1815 = vcombine.high %v1807, %v1807
    %v1816 = vcombine.high %v1814, %v1814
    %v1817 = vcombine.high %v1795, %v1795
    %v1819 = vunpack.c.l.s4 1983009808
    %v1820 = vunpack.c.0.s8 %v1819
    %v1821 = vlaneseq
    %v1822 = vshrl.u32 %v1821, 7
    %v1823 = vsub.s32 %v1820, %v1822
    %v1824 = vrot.slane %v1795, %v1823
    %v1826 = vunpack.c.l.s4 1983009808
    %v1827 = vunpack.c.0.s8 %v1826
    %v1828 = vlaneseq
    %v1829 = vshrl.u32 %v1828, 7
    %v1830 = vsub.s32 %v1827, %v1829
    %v1831 = vrot.slane %v1817, %v1830
    %v1832 = vcombine.high %v1824, %v1824
    %v1833 = vcombine.high %v1831, %v1831
    %v1835 = vunpack.c.l.s4 1983009808
    %v1836 = vunpack.c.0.s8 %v1835
    %v1837 = vlaneseq
    %v1838 = vshrl.u32 %v1837, 7
    %v1839 = vsub.s32 %v1836, %v1838
    %v1840 = vrot.slane %v1796, %v1839
    %v1850 = vpack.c.bf16 %v1807, %v1807
    %v1851 = vpack.c.bf16 %v1815, %v1815
    %v1852 = vpack.c.bf16 %v1814, %v1814
    %v1853 = vpack.c.bf16 %v1816, %v1816
    %v1854 = vpack.c.bf16 %v1824, %v1824
    %v1855 = vpack.c.bf16 %v1832, %v1832
    %v1856 = vpack.c.bf16 %v1831, %v1831
    %v1857 = vpack.c.bf16 %v1833, %v1833
    %v1858 = vpack.c.bf16 %v1840, %v1840
    %1859 = vmatprep.subr.bf16.mxu0 0
    %1860 = vmatpush1.bf16.msra.mxu0 %v544
    %1861 = vmatprep.subr.bf16.mxu0 0
    %1862 = vmatpush1.bf16.msra.mxu0 %v545
    %1863 = vmatprep.subr.bf16.mxu0 0
    %1864 = vmatpush1.bf16.msra.mxu0 %v546
    %1865 = vmatprep.subr.bf16.mxu0 0
    %1866 = vmatpush1.bf16.msra.mxu0 %v547
    %1867 = vmatprep.subr.bf16.mxu0 0
    %1868 = vmatpush1.bf16.msra.mxu0 %v548
    %1869 = vmatprep.subr.bf16.mxu0 0
    %1870 = vmatpush1.bf16.msra.mxu0 %v549
    %1871 = vmatprep.subr.bf16.mxu0 0
    %1872 = vmatpush1.bf16.msra.mxu0 %v550
    %1873 = vmatprep.subr.bf16.mxu0 0
    %1874 = vmatpush1.bf16.msra.mxu0 %v551
    %1875 = vmatprep.subr.bf16.mxu0 0
    %1876 = vmatpush1.bf16.msra.mxu0 %v552
    %1877 = vmatprep.subr.bf16.mxu0 0
    %1878 = vmatpush1.bf16.msra.mxu0 %v553
    %1879 = vmatprep.subr.bf16.mxu0 0
    %1880 = vmatpush1.bf16.msra.mxu0 %v554
    %1881 = vmatprep.subr.bf16.mxu0 0
    %1882 = vmatpush1.bf16.msra.mxu0 %v555
    %1883 = vmatprep.subr.bf16.mxu0 0
    %1884 = vmatpush1.bf16.msra.mxu0 %v556
    %1885 = vmatprep.subr.bf16.mxu0 0
    %1886 = vmatpush1.bf16.msra.mxu0 %v557
    %1887 = vmatprep.subr.bf16.mxu0 0
    %1888 = vmatpush1.bf16.msra.mxu0 %v558
    %1889 = vmatprep.subr.bf16.mxu0 0
    %1890 = vmatpush1.bf16.msra.mxu0 %v559
    %1891 = vmatprep.mubr.bf16.mxu0 %v1851
    %1892 = vmatmul.mubr.bf16.gmra.mrb[0].mxu0 %v1850
    %v1893 = vpop.f32.mrb[0].mxu0
    %v1894 = vadd.f32 %v254, %v1893
    %v1895 = vpop.f32.mrb[0].mxu0
    %v1896 = vpop.f32.mrb[0].mxu0
    %v1897 = vpop.f32.mrb[0].mxu0
    %1898 = vdwg.mxu0
    %1899 = vmatprep.subr.bf16.mxu0 0
    %1900 = vmatpush1.bf16.msra.mxu0 %v560
    %1901 = vmatprep.subr.bf16.mxu0 0
    %1902 = vmatpush1.bf16.msra.mxu0 %v561
    %1903 = vmatprep.subr.bf16.mxu0 0
    %1904 = vmatpush1.bf16.msra.mxu0 %v562
    %1905 = vmatprep.subr.bf16.mxu0 0
    %1906 = vmatpush1.bf16.msra.mxu0 %v563
    %1907 = vmatprep.subr.bf16.mxu0 0
    %1908 = vmatpush1.bf16.msra.mxu0 %v564
    %1909 = vmatprep.subr.bf16.mxu0 0
    %1910 = vmatpush1.bf16.msra.mxu0 %v565
    %1911 = vmatprep.subr.bf16.mxu0 0
    %1912 = vmatpush1.bf16.msra.mxu0 %v566
    %1913 = vmatprep.subr.bf16.mxu0 0
    %1914 = vmatpush1.bf16.msra.mxu0 %v567
    %1915 = vmatprep.subr.bf16.mxu0 0
    %1916 = vmatpush1.bf16.msra.mxu0 %v568
    %1917 = vmatprep.subr.bf16.mxu0 0
    %1918 = vmatpush1.bf16.msra.mxu0 %v569
    %1919 = vmatprep.subr.bf16.mxu0 0
    %1920 = vmatpush1.bf16.msra.mxu0 %v570
    %1921 = vmatprep.subr.bf16.mxu0 0
    %1922 = vmatpush1.bf16.msra.mxu0 %v571
    %1923 = vmatprep.subr.bf16.mxu0 0
    %1924 = vmatpush1.bf16.msra.mxu0 %v572
    %1925 = vmatprep.subr.bf16.mxu0 0
    %1926 = vmatpush1.bf16.msra.mxu0 %v573
    %1927 = vmatprep.subr.bf16.mxu0 0
    %1928 = vmatpush1.bf16.msra.mxu0 %v574
    %1929 = vmatprep.subr.bf16.mxu0 0
    %1930 = vmatpush1.bf16.msra.mxu0 %v575
    %1931 = vmatprep.mubr.bf16.mxu0 %v1853
    %1932 = vmatmul.mubr.bf16.gmra.mrb[0].mxu0 %v1852
    %v1933 = vpop.f32.mrb[0].mxu0
    %v1934 = vadd.f32 %v1894, %v1933
    %v1935 = vpop.f32.mrb[0].mxu0
    %v1936 = vpop.f32.mrb[0].mxu0
    %v1937 = vpop.f32.mrb[0].mxu0
    %1938 = vdwg.mxu0
    %1939 = vmatprep.subr.bf16.mxu0 0
    %1940 = vmatpush1.bf16.msra.mxu0 %v576
    %1941 = vmatprep.subr.bf16.mxu0 0
    %1942 = vmatpush1.bf16.msra.mxu0 %v577
    %1943 = vmatprep.subr.bf16.mxu0 0
    %1944 = vmatpush1.bf16.msra.mxu0 %v578
    %1945 = vmatprep.subr.bf16.mxu0 0
    %1946 = vmatpush1.bf16.msra.mxu0 %v579
    %1947 = vmatprep.subr.bf16.mxu0 0
    %1948 = vmatpush1.bf16.msra.mxu0 %v580
    %1949 = vmatprep.subr.bf16.mxu0 0
    %1950 = vmatpush1.bf16.msra.mxu0 %v581
    %1951 = vmatprep.subr.bf16.mxu0 0
    %1952 = vmatpush1.bf16.msra.mxu0 %v582
    %1953 = vmatprep.subr.bf16.mxu0 0
    %1954 = vmatpush1.bf16.msra.mxu0 %v583
    %1955 = vmatprep.subr.bf16.mxu0 0
    %1956 = vmatpush1.bf16.msra.mxu0 %v584
    %1957 = vmatprep.subr.bf16.mxu0 0
    %1958 = vmatpush1.bf16.msra.mxu0 %v585
    %1959 = vmatprep.subr.bf16.mxu0 0
    %1960 = vmatpush1.bf16.msra.mxu0 %v586
    %1961 = vmatprep.subr.bf16.mxu0 0
    %1962 = vmatpush1.bf16.msra.mxu0 %v587
    %1963 = vmatprep.subr.bf16.mxu0 0
    %1964 = vmatpush1.bf16.msra.mxu0 %v588
    %1965 = vmatprep.subr.bf16.mxu0 0
    %1966 = vmatpush1.bf16.msra.mxu0 %v589
    %1967 = vmatprep.subr.bf16.mxu0 0
    %1968 = vmatpush1.bf16.msra.mxu0 %v590
    %1969 = vmatprep.subr.bf16.mxu0 0
    %1970 = vmatpush1.bf16.msra.mxu0 %v591
    %1971 = vmatprep.mubr.bf16.mxu0 %v1855
    %1972 = vmatmul.mubr.bf16.gmra.mrb[0].mxu0 %v1854
    %v1973 = vpop.f32.mrb[0].mxu0
    %v1974 = vadd.f32 %v1934, %v1973
    %v1975 = vpop.f32.mrb[0].mxu0
    %v1976 = vpop.f32.mrb[0].mxu0
    %v1977 = vpop.f32.mrb[0].mxu0
    %1978 = vdwg.mxu0
    %1979 = vmatprep.subr.bf16.mxu0 0
    %1980 = vmatpush1.bf16.msra.mxu0 %v592
    %1981 = vmatprep.subr.bf16.mxu0 0
    %1982 = vmatpush1.bf16.msra.mxu0 %v593
    %1983 = vmatprep.subr.bf16.mxu0 0
    %1984 = vmatpush1.bf16.msra.mxu0 %v594
    %1985 = vmatprep.subr.bf16.mxu0 0
    %1986 = vmatpush1.bf16.msra.mxu0 %v595
    %1987 = vmatprep.subr.bf16.mxu0 0
    %1988 = vmatpush1.bf16.msra.mxu0 %v596
    %1989 = vmatprep.subr.bf16.mxu0 0
    %1990 = vmatpush1.bf16.msra.mxu0 %v597
    %1991 = vmatprep.subr.bf16.mxu0 0
    %1992 = vmatpush1.bf16.msra.mxu0 %v598
    %1993 = vmatprep.subr.bf16.mxu0 0
    %1994 = vmatpush1.bf16.msra.mxu0 %v599
    %1995 = vmatprep.subr.bf16.mxu0 0
    %1996 = vmatpush1.bf16.msra.mxu0 %v600
    %1997 = vmatprep.subr.bf16.mxu0 0
    %1998 = vmatpush1.bf16.msra.mxu0 %v601
    %1999 = vmatprep.subr.bf16.mxu0 0
    %2000 = vmatpush1.bf16.msra.mxu0 %v602
    %2001 = vmatprep.subr.bf16.mxu0 0
    %2002 = vmatpush1.bf16.msra.mxu0 %v603
    %2003 = vmatprep.subr.bf16.mxu0 0
    %2004 = vmatpush1.bf16.msra.mxu0 %v604
    %2005 = vmatprep.subr.bf16.mxu0 0
    %2006 = vmatpush1.bf16.msra.mxu0 %v605
    %2007 = vmatprep.subr.bf16.mxu0 0
    %2008 = vmatpush1.bf16.msra.mxu0 %v606
    %2009 = vmatprep.subr.bf16.mxu0 0
    %2010 = vmatpush1.bf16.msra.mxu0 %v607
    %2011 = vmatprep.mubr.bf16.mxu0 %v1857
    %2012 = vmatmul.mubr.bf16.gmra.mrb[0].mxu0 %v1856
    %v2013 = vpop.f32.mrb[0].mxu0
    %v2014 = vadd.f32 %v1974, %v2013
    %v2015 = vpop.f32.mrb[0].mxu0
    %v2016 = vpop.f32.mrb[0].mxu0
    %v2017 = vpop.f32.mrb[0].mxu0
    %2018 = vdwg.mxu0
    %2019 = vmatprep.subr.bf16.mxu0 0
    %2020 = vmatpush1.bf16.msra.mxu0 %v608
    %2021 = vmatprep.subr.bf16.mxu0 0
    %2022 = vmatpush1.bf16.msra.mxu0 %v609
    %2023 = vmatprep.subr.bf16.mxu0 0
    %2024 = vmatpush1.bf16.msra.mxu0 %v610
    %2025 = vmatprep.subr.bf16.mxu0 0
    %2026 = vmatpush1.bf16.msra.mxu0 %v611
    %2027 = vmatprep.subr.bf16.mxu0 0
    %2028 = vmatpush1.bf16.msra.mxu0 %v612
    %2029 = vmatprep.subr.bf16.mxu0 0
    %2030 = vmatpush1.bf16.msra.mxu0 %v613
    %2031 = vmatprep.subr.bf16.mxu0 0
    %2032 = vmatpush1.bf16.msra.mxu0 %v614
    %2033 = vmatprep.subr.bf16.mxu0 0
    %2034 = vmatpush1.bf16.msra.mxu0 %v615
    %2035 = vmatprep.subr.bf16.mxu0 0
    %2036 = vmatpush1.bf16.msra.mxu0 0
    %2037 = vmatprep.subr.bf16.mxu0 0
    %2038 = vmatpush1.bf16.msra.mxu0 0
    %2039 = vmatprep.subr.bf16.mxu0 0
    %2040 = vmatpush1.bf16.msra.mxu0 0
    %2041 = vmatprep.subr.bf16.mxu0 0
    %2042 = vmatpush1.bf16.msra.mxu0 0
    %2043 = vmatprep.subr.bf16.mxu0 0
    %2044 = vmatpush1.bf16.msra.mxu0 0
    %2045 = vmatprep.subr.bf16.mxu0 0
    %2046 = vmatpush1.bf16.msra.mxu0 0
    %2047 = vmatprep.subr.bf16.mxu0 0
    %2048 = vmatpush1.bf16.msra.mxu0 0
    %2049 = vmatprep.subr.bf16.mxu0 0
    %2050 = vmatpush1.bf16.msra.mxu0 0
    %2051 = vmatprep.mubr.bf16.mxu0 0
    %2052 = vmatmul.mubr.bf16.gmra.mrb[0].mxu0 %v1858
    %v2053 = vpop.f32.mrb[0].mxu0
    %v2054 = vadd.f32 %v2014, %v2053
    %v2055 = vpop.f32.mrb[0].mxu0
    %v2056 = vpop.f32.mrb[0].mxu0
    %v2057 = vpop.f32.mrb[0].mxu0
    %2058 = vdwg.mxu0
    %v2059 = vmax.f32 %v2054, 0.0
    %2060 = vst [vmem:[#allocation2 + $0x8] sm:$0x3] %v2059
    %v2061 = vld [vmem:[%s0 + $0x2c] sm:$0xff]
    %v2062 = vld [vmem:[%s0 + $0x34] sm:$0xff]
    %v2063 = vld [vmem:[%s0 + $0x3c] sm:$0xf]
    %v2067 = vcombine.high %v2061, %v2061
    %v2069 = vunpack.c.l.s4 1983009808
    %v2070 = vunpack.c.0.s8 %v2069
    %v2071 = vlaneseq
    %v2072 = vshrl.u32 %v2071, 7
    %v2073 = vsub.s32 %v2070, %v2072
    %v2074 = vrot.slane %v2061, %v2073
    %v2076 = vunpack.c.l.s4 1983009808
    %v2077 = vunpack.c.0.s8 %v2076
    %v2078 = vlaneseq
    %v2079 = vshrl.u32 %v2078, 7
    %v2080 = vsub.s32 %v2077, %v2079
    %v2081 = vrot.slane %v2067, %v2080
    %v2082 = vcombine.high %v2074, %v2074
    %v2083 = vcombine.high %v2081, %v2081
    %v2084 = vcombine.high %v2062, %v2062
    %v2086 = vunpack.c.l.s4 1983009808
    %v2087 = vunpack.c.0.s8 %v2086
    %v2088 = vlaneseq
    %v2089 = vshrl.u32 %v2088, 7
    %v2090 = vsub.s32 %v2087, %v2089
    %v2091 = vrot.slane %v2062, %v2090
    %v2093 = vunpack.c.l.s4 1983009808
    %v2094 = vunpack.c.0.s8 %v2093
    %v2095 = vlaneseq
    %v2096 = vshrl.u32 %v2095, 7
    %v2097 = vsub.s32 %v2094, %v2096
    %v2098 = vrot.slane %v2084, %v2097
    %v2099 = vcombine.high %v2091, %v2091
    %v2100 = vcombine.high %v2098, %v2098
    %v2102 = vunpack.c.l.s4 1983009808
    %v2103 = vunpack.c.0.s8 %v2102
    %v2104 = vlaneseq
    %v2105 = vshrl.u32 %v2104, 7
    %v2106 = vsub.s32 %v2103, %v2105
    %v2107 = vrot.slane %v2063, %v2106
    %v2108 = vcombine.high %v2107, %v2107
    %v2119 = vpack.c.bf16 %v2074, %v2074
    %v2120 = vpack.c.bf16 %v2082, %v2082
    %v2121 = vpack.c.bf16 %v2081, %v2081
    %v2122 = vpack.c.bf16 %v2083, %v2083
    %v2123 = vpack.c.bf16 %v2091, %v2091
    %v2124 = vpack.c.bf16 %v2099, %v2099
    %v2125 = vpack.c.bf16 %v2098, %v2098
    %v2126 = vpack.c.bf16 %v2100, %v2100
    %v2127 = vpack.c.bf16 %v2107, %v2107
    %v2128 = vpack.c.bf16 %v2108, %v2108
    %2139 = vrot.lane.b32.xlu0 %v2119, 64
    %v2140 = vpop.permute.xlu0 %2139
    %2141 = vrot.lane.b32.xlu0 %v2120, 64
    %v2142 = vpop.permute.xlu0 %2141
    %2143 = vrot.lane.b32.xlu0 %v2121, 64
    %v2144 = vpop.permute.xlu0 %2143
    %2145 = vrot.lane.b32.xlu0 %v2122, 64
    %v2146 = vpop.permute.xlu0 %2145
    %2147 = vrot.lane.b32.xlu0 %v2123, 64
    %v2148 = vpop.permute.xlu0 %2147
    %2149 = vrot.lane.b32.xlu0 %v2124, 64
    %v2150 = vpop.permute.xlu0 %2149
    %2151 = vrot.lane.b32.xlu0 %v2125, 64
    %v2152 = vpop.permute.xlu0 %2151
    %2153 = vrot.lane.b32.xlu0 %v2126, 64
    %v2154 = vpop.permute.xlu0 %2153
    %2155 = vrot.lane.b32.xlu0 %v2127, 64
    %v2156 = vpop.permute.xlu0 %2155
    %2157 = vrot.lane.b32.xlu0 %v2128, 64
    %v2158 = vpop.permute.xlu0 %2157
    %v2159 = vsel %vm988, %v2140, %v2142
    %v2160 = vsel %vm988, %v2142, %v2144
    %v2161 = vsel %vm988, %v2144, %v2146
    %v2162 = vsel %vm988, %v2146, %v2148
    %v2163 = vsel %vm988, %v2148, %v2150
    %v2164 = vsel %vm988, %v2150, %v2152
    %v2165 = vsel %vm988, %v2152, %v2154
    %v2166 = vsel %vm988, %v2154, %v2156
    %v2167 = vsel %vm988, %v2156, %v2158
    %2177 = vmatprep.subr.bf16.mxu0 0
    %2178 = vmatpush1.bf16.msra.mxu0 %v544
    %2179 = vmatprep.subr.bf16.mxu0 0
    %2180 = vmatpush1.bf16.msra.mxu0 %v545
    %2181 = vmatprep.subr.bf16.mxu0 0
    %2182 = vmatpush1.bf16.msra.mxu0 %v546
    %2183 = vmatprep.subr.bf16.mxu0 0
    %2184 = vmatpush1.bf16.msra.mxu0 %v547
    %2185 = vmatprep.subr.bf16.mxu0 0
    %2186 = vmatpush1.bf16.msra.mxu0 %v548
    %2187 = vmatprep.subr.bf16.mxu0 0
    %2188 = vmatpush1.bf16.msra.mxu0 %v549
    %2189 = vmatprep.subr.bf16.mxu0 0
    %2190 = vmatpush1.bf16.msra.mxu0 %v550
    %2191 = vmatprep.subr.bf16.mxu0 0
    %2192 = vmatpush1.bf16.msra.mxu0 %v551
    %2193 = vmatprep.subr.bf16.mxu0 0
    %2194 = vmatpush1.bf16.msra.mxu0 %v552
    %2195 = vmatprep.subr.bf16.mxu0 0
    %2196 = vmatpush1.bf16.msra.mxu0 %v553
    %2197 = vmatprep.subr.bf16.mxu0 0
    %2198 = vmatpush1.bf16.msra.mxu0 %v554
    %2199 = vmatprep.subr.bf16.mxu0 0
    %2200 = vmatpush1.bf16.msra.mxu0 %v555
    %2201 = vmatprep.subr.bf16.mxu0 0
    %2202 = vmatpush1.bf16.msra.mxu0 %v556
    %2203 = vmatprep.subr.bf16.mxu0 0
    %2204 = vmatpush1.bf16.msra.mxu0 %v557
    %2205 = vmatprep.subr.bf16.mxu0 0
    %2206 = vmatpush1.bf16.msra.mxu0 %v558
    %2207 = vmatprep.subr.bf16.mxu0 0
    %2208 = vmatpush1.bf16.msra.mxu0 %v559
    %2209 = vmatprep.mubr.bf16.mxu0 %v2160
    %2210 = vmatmul.mubr.bf16.gmra.mrb[0].mxu0 %v2159
    %v2211 = vpop.f32.mrb[0].mxu0
    %v2212 = vadd.f32 %v254, %v2211
    %v2213 = vpop.f32.mrb[0].mxu0
    %v2214 = vpop.f32.mrb[0].mxu0
    %v2215 = vpop.f32.mrb[0].mxu0
    %2216 = vdwg.mxu0
    %2217 = vmatprep.subr.bf16.mxu0 0
    %2218 = vmatpush1.bf16.msra.mxu0 %v560
    %2219 = vmatprep.subr.bf16.mxu0 0
    %2220 = vmatpush1.bf16.msra.mxu0 %v561
    %2221 = vmatprep.subr.bf16.mxu0 0
    %2222 = vmatpush1.bf16.msra.mxu0 %v562
    %2223 = vmatprep.subr.bf16.mxu0 0
    %2224 = vmatpush1.bf16.msra.mxu0 %v563
    %2225 = vmatprep.subr.bf16.mxu0 0
    %2226 = vmatpush1.bf16.msra.mxu0 %v564
    %2227 = vmatprep.subr.bf16.mxu0 0
    %2228 = vmatpush1.bf16.msra.mxu0 %v565
    %2229 = vmatprep.subr.bf16.mxu0 0
    %2230 = vmatpush1.bf16.msra.mxu0 %v566
    %2231 = vmatprep.subr.bf16.mxu0 0
    %2232 = vmatpush1.bf16.msra.mxu0 %v567
    %2233 = vmatprep.subr.bf16.mxu0 0
    %2234 = vmatpush1.bf16.msra.mxu0 %v568
    %2235 = vmatprep.subr.bf16.mxu0 0
    %2236 = vmatpush1.bf16.msra.mxu0 %v569
    %2237 = vmatprep.subr.bf16.mxu0 0
    %2238 = vmatpush1.bf16.msra.mxu0 %v570
    %2239 = vmatprep.subr.bf16.mxu0 0
    %2240 = vmatpush1.bf16.msra.mxu0 %v571
    %2241 = vmatprep.subr.bf16.mxu0 0
    %2242 = vmatpush1.bf16.msra.mxu0 %v572
    %2243 = vmatprep.subr.bf16.mxu0 0
    %2244 = vmatpush1.bf16.msra.mxu0 %v573
    %2245 = vmatprep.subr.bf16.mxu0 0
    %2246 = vmatpush1.bf16.msra.mxu0 %v574
    %2247 = vmatprep.subr.bf16.mxu0 0
    %2248 = vmatpush1.bf16.msra.mxu0 %v575
    %2249 = vmatprep.mubr.bf16.mxu0 %v2162
    %2250 = vmatmul.mubr.bf16.gmra.mrb[0].mxu0 %v2161
    %v2251 = vpop.f32.mrb[0].mxu0
    %v2252 = vadd.f32 %v2212, %v2251
    %v2253 = vpop.f32.mrb[0].mxu0
    %v2254 = vpop.f32.mrb[0].mxu0
    %v2255 = vpop.f32.mrb[0].mxu0
    %2256 = vdwg.mxu0
    %2257 = vmatprep.subr.bf16.mxu0 0
    %2258 = vmatpush1.bf16.msra.mxu0 %v576
    %2259 = vmatprep.subr.bf16.mxu0 0
    %2260 = vmatpush1.bf16.msra.mxu0 %v577
    %2261 = vmatprep.subr.bf16.mxu0 0
    %2262 = vmatpush1.bf16.msra.mxu0 %v578
    %2263 = vmatprep.subr.bf16.mxu0 0
    %2264 = vmatpush1.bf16.msra.mxu0 %v579
    %2265 = vmatprep.subr.bf16.mxu0 0
    %2266 = vmatpush1.bf16.msra.mxu0 %v580
    %2267 = vmatprep.subr.bf16.mxu0 0
    %2268 = vmatpush1.bf16.msra.mxu0 %v581
    %2269 = vmatprep.subr.bf16.mxu0 0
    %2270 = vmatpush1.bf16.msra.mxu0 %v582
    %2271 = vmatprep.subr.bf16.mxu0 0
    %2272 = vmatpush1.bf16.msra.mxu0 %v583
    %2273 = vmatprep.subr.bf16.mxu0 0
    %2274 = vmatpush1.bf16.msra.mxu0 %v584
    %2275 = vmatprep.subr.bf16.mxu0 0
    %2276 = vmatpush1.bf16.msra.mxu0 %v585
    %2277 = vmatprep.subr.bf16.mxu0 0
    %2278 = vmatpush1.bf16.msra.mxu0 %v586
    %2279 = vmatprep.subr.bf16.mxu0 0
    %2280 = vmatpush1.bf16.msra.mxu0 %v587
    %2281 = vmatprep.subr.bf16.mxu0 0
    %2282 = vmatpush1.bf16.msra.mxu0 %v588
    %2283 = vmatprep.subr.bf16.mxu0 0
    %2284 = vmatpush1.bf16.msra.mxu0 %v589
    %2285 = vmatprep.subr.bf16.mxu0 0
    %2286 = vmatpush1.bf16.msra.mxu0 %v590
    %2287 = vmatprep.subr.bf16.mxu0 0
    %2288 = vmatpush1.bf16.msra.mxu0 %v591
    %2289 = vmatprep.mubr.bf16.mxu0 %v2164
    %2290 = vmatmul.mubr.bf16.gmra.mrb[0].mxu0 %v2163
    %v2291 = vpop.f32.mrb[0].mxu0
    %v2292 = vadd.f32 %v2252, %v2291
    %v2293 = vpop.f32.mrb[0].mxu0
    %v2294 = vpop.f32.mrb[0].mxu0
    %v2295 = vpop.f32.mrb[0].mxu0
    %2296 = vdwg.mxu0
    %2297 = vmatprep.subr.bf16.mxu0 0
    %2298 = vmatpush1.bf16.msra.mxu0 %v592
    %2299 = vmatprep.subr.bf16.mxu0 0
    %2300 = vmatpush1.bf16.msra.mxu0 %v593
    %2301 = vmatprep.subr.bf16.mxu0 0
    %2302 = vmatpush1.bf16.msra.mxu0 %v594
    %2303 = vmatprep.subr.bf16.mxu0 0
    %2304 = vmatpush1.bf16.msra.mxu0 %v595
    %2305 = vmatprep.subr.bf16.mxu0 0
    %2306 = vmatpush1.bf16.msra.mxu0 %v596
    %2307 = vmatprep.subr.bf16.mxu0 0
    %2308 = vmatpush1.bf16.msra.mxu0 %v597
    %2309 = vmatprep.subr.bf16.mxu0 0
    %2310 = vmatpush1.bf16.msra.mxu0 %v598
    %2311 = vmatprep.subr.bf16.mxu0 0
    %2312 = vmatpush1.bf16.msra.mxu0 %v599
    %2313 = vmatprep.subr.bf16.mxu0 0
    %2314 = vmatpush1.bf16.msra.mxu0 %v600
    %2315 = vmatprep.subr.bf16.mxu0 0
    %2316 = vmatpush1.bf16.msra.mxu0 %v601
    %2317 = vmatprep.subr.bf16.mxu0 0
    %2318 = vmatpush1.bf16.msra.mxu0 %v602
    %2319 = vmatprep.subr.bf16.mxu0 0
    %2320 = vmatpush1.bf16.msra.mxu0 %v603
    %2321 = vmatprep.subr.bf16.mxu0 0
    %2322 = vmatpush1.bf16.msra.mxu0 %v604
    %2323 = vmatprep.subr.bf16.mxu0 0
    %2324 = vmatpush1.bf16.msra.mxu0 %v605
    %2325 = vmatprep.subr.bf16.mxu0 0
    %2326 = vmatpush1.bf16.msra.mxu0 %v606
    %2327 = vmatprep.subr.bf16.mxu0 0
    %2328 = vmatpush1.bf16.msra.mxu0 %v607
    %2329 = vmatprep.mubr.bf16.mxu0 %v2166
    %2330 = vmatmul.mubr.bf16.gmra.mrb[0].mxu0 %v2165
    %v2331 = vpop.f32.mrb[0].mxu0
    %v2332 = vadd.f32 %v2292, %v2331
    %v2333 = vpop.f32.mrb[0].mxu0
    %v2334 = vpop.f32.mrb[0].mxu0
    %v2335 = vpop.f32.mrb[0].mxu0
    %2336 = vdwg.mxu0
    %2337 = vmatprep.subr.bf16.mxu0 0
    %2338 = vmatpush1.bf16.msra.mxu0 %v608
    %2339 = vmatprep.subr.bf16.mxu0 0
    %2340 = vmatpush1.bf16.msra.mxu0 %v609
    %2341 = vmatprep.subr.bf16.mxu0 0
    %2342 = vmatpush1.bf16.msra.mxu0 %v610
    %2343 = vmatprep.subr.bf16.mxu0 0
    %2344 = vmatpush1.bf16.msra.mxu0 %v611
    %2345 = vmatprep.subr.bf16.mxu0 0
    %2346 = vmatpush1.bf16.msra.mxu0 %v612
    %2347 = vmatprep.subr.bf16.mxu0 0
    %2348 = vmatpush1.bf16.msra.mxu0 %v613
    %2349 = vmatprep.subr.bf16.mxu0 0
    %2350 = vmatpush1.bf16.msra.mxu0 %v614
    %2351 = vmatprep.subr.bf16.mxu0 0
    %2352 = vmatpush1.bf16.msra.mxu0 %v615
    %2353 = vmatprep.subr.bf16.mxu0 0
    %2354 = vmatpush1.bf16.msra.mxu0 0
    %2355 = vmatprep.subr.bf16.mxu0 0
    %2356 = vmatpush1.bf16.msra.mxu0 0
    %2357 = vmatprep.subr.bf16.mxu0 0
    %2358 = vmatpush1.bf16.msra.mxu0 0
    %2359 = vmatprep.subr.bf16.mxu0 0
    %2360 = vmatpush1.bf16.msra.mxu0 0
    %2361 = vmatprep.subr.bf16.mxu0 0
    %2362 = vmatpush1.bf16.msra.mxu0 0
    %2363 = vmatprep.subr.bf16.mxu0 0
    %2364 = vmatpush1.bf16.msra.mxu0 0
    %2365 = vmatprep.subr.bf16.mxu0 0
    %2366 = vmatpush1.bf16.msra.mxu0 0
    %2367 = vmatprep.subr.bf16.mxu0 0
    %2368 = vmatpush1.bf16.msra.mxu0 0
    %2369 = vmatprep.mubr.bf16.mxu0 0
    %2370 = vmatmul.mubr.bf16.gmra.mrb[0].mxu0 %v2167
    %v2371 = vpop.f32.mrb[0].mxu0
    %v2372 = vadd.f32 %v2332, %v2371
    %v2373 = vpop.f32.mrb[0].mxu0
    %v2374 = vpop.f32.mrb[0].mxu0
    %v2375 = vpop.f32.mrb[0].mxu0
    %2376 = vdwg.mxu0
    %v2377 = vmax.f32 %v2372, 0.0
    %2378 = vst [vmem:[#allocation2 + $0xa] sm:$0x3] %v2377
    %v2379 = vld [vmem:[%s0 + $0x36] sm:$0xff]
    %v2380 = vld [vmem:[%s0 + $0x3e] sm:$0xff]
    %v2381 = vld [vmem:[%s0 + $0x46] sm:$0x3]
    %v2385 = vcombine.high %v2379, %v2379
    %v2387 = vunpack.c.l.s4 1983009808
    %v2388 = vunpack.c.0.s8 %v2387
    %v2389 = vlaneseq
    %v2390 = vshrl.u32 %v2389, 7
    %v2391 = vsub.s32 %v2388, %v2390
    %v2392 = vrot.slane %v2379, %v2391
    %v2394 = vunpack.c.l.s4 1983009808
    %v2395 = vunpack.c.0.s8 %v2394
    %v2396 = vlaneseq
    %v2397 = vshrl.u32 %v2396, 7
    %v2398 = vsub.s32 %v2395, %v2397
    %v2399 = vrot.slane %v2385, %v2398
    %v2400 = vcombine.high %v2392, %v2392
    %v2401 = vcombine.high %v2399, %v2399
    %v2402 = vcombine.high %v2380, %v2380
    %v2404 = vunpack.c.l.s4 1983009808
    %v2405 = vunpack.c.0.s8 %v2404
    %v2406 = vlaneseq
    %v2407 = vshrl.u32 %v2406, 7
    %v2408 = vsub.s32 %v2405, %v2407
    %v2409 = vrot.slane %v2380, %v2408
    %v2411 = vunpack.c.l.s4 1983009808
    %v2412 = vunpack.c.0.s8 %v2411
    %v2413 = vlaneseq
    %v2414 = vshrl.u32 %v2413, 7
    %v2415 = vsub.s32 %v2412, %v2414
    %v2416 = vrot.slane %v2402, %v2415
    %v2417 = vcombine.high %v2409, %v2409
    %v2418 = vcombine.high %v2416, %v2416
    %v2420 = vunpack.c.l.s4 1983009808
    %v2421 = vunpack.c.0.s8 %v2420
    %v2422 = vlaneseq
    %v2423 = vshrl.u32 %v2422, 7
    %v2424 = vsub.s32 %v2421, %v2423
    %v2425 = vrot.slane %v2381, %v2424
    %v2435 = vpack.c.bf16 %v2392, %v2392
    %v2436 = vpack.c.bf16 %v2400, %v2400
    %v2437 = vpack.c.bf16 %v2399, %v2399
    %v2438 = vpack.c.bf16 %v2401, %v2401
    %v2439 = vpack.c.bf16 %v2409, %v2409
    %v2440 = vpack.c.bf16 %v2417, %v2417
    %v2441 = vpack.c.bf16 %v2416, %v2416
    %v2442 = vpack.c.bf16 %v2418, %v2418
    %v2443 = vpack.c.bf16 %v2425, %v2425
    %2444 = vmatprep.subr.bf16.mxu0 0
    %2445 = vmatpush1.bf16.msra.mxu0 %v544
    %2446 = vmatprep.subr.bf16.mxu0 0
    %2447 = vmatpush1.bf16.msra.mxu0 %v545
    %2448 = vmatprep.subr.bf16.mxu0 0
    %2449 = vmatpush1.bf16.msra.mxu0 %v546
    %2450 = vmatprep.subr.bf16.mxu0 0
    %2451 = vmatpush1.bf16.msra.mxu0 %v547
    %2452 = vmatprep.subr.bf16.mxu0 0
    %2453 = vmatpush1.bf16.msra.mxu0 %v548
    %2454 = vmatprep.subr.bf16.mxu0 0
    %2455 = vmatpush1.bf16.msra.mxu0 %v549
    %2456 = vmatprep.subr.bf16.mxu0 0
    %2457 = vmatpush1.bf16.msra.mxu0 %v550
    %2458 = vmatprep.subr.bf16.mxu0 0
    %2459 = vmatpush1.bf16.msra.mxu0 %v551
    %2460 = vmatprep.subr.bf16.mxu0 0
    %2461 = vmatpush1.bf16.msra.mxu0 %v552
    %2462 = vmatprep.subr.bf16.mxu0 0
    %2463 = vmatpush1.bf16.msra.mxu0 %v553
    %2464 = vmatprep.subr.bf16.mxu0 0
    %2465 = vmatpush1.bf16.msra.mxu0 %v554
    %2466 = vmatprep.subr.bf16.mxu0 0
    %2467 = vmatpush1.bf16.msra.mxu0 %v555
    %2468 = vmatprep.subr.bf16.mxu0 0
    %2469 = vmatpush1.bf16.msra.mxu0 %v556
    %2470 = vmatprep.subr.bf16.mxu0 0
    %2471 = vmatpush1.bf16.msra.mxu0 %v557
    %2472 = vmatprep.subr.bf16.mxu0 0
    %2473 = vmatpush1.bf16.msra.mxu0 %v558
    %2474 = vmatprep.subr.bf16.mxu0 0
    %2475 = vmatpush1.bf16.msra.mxu0 %v559
    %2476 = vmatprep.mubr.bf16.mxu0 %v2436
    %2477 = vmatmul.mubr.bf16.gmra.mrb[0].mxu0 %v2435
    %v2478 = vpop.f32.mrb[0].mxu0
    %v2479 = vadd.f32 %v254, %v2478
    %v2480 = vpop.f32.mrb[0].mxu0
    %v2481 = vpop.f32.mrb[0].mxu0
    %v2482 = vpop.f32.mrb[0].mxu0
    %2483 = vdwg.mxu0
    %2484 = vmatprep.subr.bf16.mxu0 0
    %2485 = vmatpush1.bf16.msra.mxu0 %v560
    %2486 = vmatprep.subr.bf16.mxu0 0
    %2487 = vmatpush1.bf16.msra.mxu0 %v561
    %2488 = vmatprep.subr.bf16.mxu0 0
    %2489 = vmatpush1.bf16.msra.mxu0 %v562
    %2490 = vmatprep.subr.bf16.mxu0 0
    %2491 = vmatpush1.bf16.msra.mxu0 %v563
    %2492 = vmatprep.subr.bf16.mxu0 0
    %2493 = vmatpush1.bf16.msra.mxu0 %v564
    %2494 = vmatprep.subr.bf16.mxu0 0
    %2495 = vmatpush1.bf16.msra.mxu0 %v565
    %2496 = vmatprep.subr.bf16.mxu0 0
    %2497 = vmatpush1.bf16.msra.mxu0 %v566
    %2498 = vmatprep.subr.bf16.mxu0 0
    %2499 = vmatpush1.bf16.msra.mxu0 %v567
    %2500 = vmatprep.subr.bf16.mxu0 0
    %2501 = vmatpush1.bf16.msra.mxu0 %v568
    %2502 = vmatprep.subr.bf16.mxu0 0
    %2503 = vmatpush1.bf16.msra.mxu0 %v569
    %2504 = vmatprep.subr.bf16.mxu0 0
    %2505 = vmatpush1.bf16.msra.mxu0 %v570
    %2506 = vmatprep.subr.bf16.mxu0 0
    %2507 = vmatpush1.bf16.msra.mxu0 %v571
    %2508 = vmatprep.subr.bf16.mxu0 0
    %2509 = vmatpush1.bf16.msra.mxu0 %v572
    %2510 = vmatprep.subr.bf16.mxu0 0
    %2511 = vmatpush1.bf16.msra.mxu0 %v573
    %2512 = vmatprep.subr.bf16.mxu0 0
    %2513 = vmatpush1.bf16.msra.mxu0 %v574
    %2514 = vmatprep.subr.bf16.mxu0 0
    %2515 = vmatpush1.bf16.msra.mxu0 %v575
    %2516 = vmatprep.mubr.bf16.mxu0 %v2438
    %2517 = vmatmul.mubr.bf16.gmra.mrb[0].mxu0 %v2437
    %v2518 = vpop.f32.mrb[0].mxu0
    %v2519 = vadd.f32 %v2479, %v2518
    %v2520 = vpop.f32.mrb[0].mxu0
    %v2521 = vpop.f32.mrb[0].mxu0
    %v2522 = vpop.f32.mrb[0].mxu0
    %2523 = vdwg.mxu0
    %2524 = vmatprep.subr.bf16.mxu0 0
    %2525 = vmatpush1.bf16.msra.mxu0 %v576
    %2526 = vmatprep.subr.bf16.mxu0 0
    %2527 = vmatpush1.bf16.msra.mxu0 %v577
    %2528 = vmatprep.subr.bf16.mxu0 0
    %2529 = vmatpush1.bf16.msra.mxu0 %v578
    %2530 = vmatprep.subr.bf16.mxu0 0
    %2531 = vmatpush1.bf16.msra.mxu0 %v579
    %2532 = vmatprep.subr.bf16.mxu0 0
    %2533 = vmatpush1.bf16.msra.mxu0 %v580
    %2534 = vmatprep.subr.bf16.mxu0 0
    %2535 = vmatpush1.bf16.msra.mxu0 %v581
    %2536 = vmatprep.subr.bf16.mxu0 0
    %2537 = vmatpush1.bf16.msra.mxu0 %v582
    %2538 = vmatprep.subr.bf16.mxu0 0
    %2539 = vmatpush1.bf16.msra.mxu0 %v583
    %2540 = vmatprep.subr.bf16.mxu0 0
    %2541 = vmatpush1.bf16.msra.mxu0 %v584
    %2542 = vmatprep.subr.bf16.mxu0 0
    %2543 = vmatpush1.bf16.msra.mxu0 %v585
    %2544 = vmatprep.subr.bf16.mxu0 0
    %2545 = vmatpush1.bf16.msra.mxu0 %v586
    %2546 = vmatprep.subr.bf16.mxu0 0
    %2547 = vmatpush1.bf16.msra.mxu0 %v587
    %2548 = vmatprep.subr.bf16.mxu0 0
    %2549 = vmatpush1.bf16.msra.mxu0 %v588
    %2550 = vmatprep.subr.bf16.mxu0 0
    %2551 = vmatpush1.bf16.msra.mxu0 %v589
    %2552 = vmatprep.subr.bf16.mxu0 0
    %2553 = vmatpush1.bf16.msra.mxu0 %v590
    %2554 = vmatprep.subr.bf16.mxu0 0
    %2555 = vmatpush1.bf16.msra.mxu0 %v591
    %2556 = vmatprep.mubr.bf16.mxu0 %v2440
    %2557 = vmatmul.mubr.bf16.gmra.mrb[0].mxu0 %v2439
    %v2558 = vpop.f32.mrb[0].mxu0
    %v2559 = vadd.f32 %v2519, %v2558
    %v2560 = vpop.f32.mrb[0].mxu0
    %v2561 = vpop.f32.mrb[0].mxu0
    %v2562 = vpop.f32.mrb[0].mxu0
    %2563 = vdwg.mxu0
    %2564 = vmatprep.subr.bf16.mxu0 0
    %2565 = vmatpush1.bf16.msra.mxu0 %v592
    %2566 = vmatprep.subr.bf16.mxu0 0
    %2567 = vmatpush1.bf16.msra.mxu0 %v593
    %2568 = vmatprep.subr.bf16.mxu0 0
    %2569 = vmatpush1.bf16.msra.mxu0 %v594
    %2570 = vmatprep.subr.bf16.mxu0 0
    %2571 = vmatpush1.bf16.msra.mxu0 %v595
    %2572 = vmatprep.subr.bf16.mxu0 0
    %2573 = vmatpush1.bf16.msra.mxu0 %v596
    %2574 = vmatprep.subr.bf16.mxu0 0
    %2575 = vmatpush1.bf16.msra.mxu0 %v597
    %2576 = vmatprep.subr.bf16.mxu0 0
    %2577 = vmatpush1.bf16.msra.mxu0 %v598
    %2578 = vmatprep.subr.bf16.mxu0 0
    %2579 = vmatpush1.bf16.msra.mxu0 %v599
    %2580 = vmatprep.subr.bf16.mxu0 0
    %2581 = vmatpush1.bf16.msra.mxu0 %v600
    %2582 = vmatprep.subr.bf16.mxu0 0
    %2583 = vmatpush1.bf16.msra.mxu0 %v601
    %2584 = vmatprep.subr.bf16.mxu0 0
    %2585 = vmatpush1.bf16.msra.mxu0 %v602
    %2586 = vmatprep.subr.bf16.mxu0 0
    %2587 = vmatpush1.bf16.msra.mxu0 %v603
    %2588 = vmatprep.subr.bf16.mxu0 0
    %2589 = vmatpush1.bf16.msra.mxu0 %v604
    %2590 = vmatprep.subr.bf16.mxu0 0
    %2591 = vmatpush1.bf16.msra.mxu0 %v605
    %2592 = vmatprep.subr.bf16.mxu0 0
    %2593 = vmatpush1.bf16.msra.mxu0 %v606
    %2594 = vmatprep.subr.bf16.mxu0 0
    %2595 = vmatpush1.bf16.msra.mxu0 %v607
    %2596 = vmatprep.mubr.bf16.mxu0 %v2442
    %2597 = vmatmul.mubr.bf16.gmra.mrb[0].mxu0 %v2441
    %v2598 = vpop.f32.mrb[0].mxu0
    %v2599 = vadd.f32 %v2559, %v2598
    %v2600 = vpop.f32.mrb[0].mxu0
    %v2601 = vpop.f32.mrb[0].mxu0
    %v2602 = vpop.f32.mrb[0].mxu0
    %2603 = vdwg.mxu0
    %2604 = vmatprep.subr.bf16.mxu0 0
    %2605 = vmatpush1.bf16.msra.mxu0 %v608
    %2606 = vmatprep.subr.bf16.mxu0 0
    %2607 = vmatpush1.bf16.msra.mxu0 %v609
    %2608 = vmatprep.subr.bf16.mxu0 0
    %2609 = vmatpush1.bf16.msra.mxu0 %v610
    %2610 = vmatprep.subr.bf16.mxu0 0
    %2611 = vmatpush1.bf16.msra.mxu0 %v611
    %2612 = vmatprep.subr.bf16.mxu0 0
    %2613 = vmatpush1.bf16.msra.mxu0 %v612
    %2614 = vmatprep.subr.bf16.mxu0 0
    %2615 = vmatpush1.bf16.msra.mxu0 %v613
    %2616 = vmatprep.subr.bf16.mxu0 0
    %2617 = vmatpush1.bf16.msra.mxu0 %v614
    %2618 = vmatprep.subr.bf16.mxu0 0
    %2619 = vmatpush1.bf16.msra.mxu0 %v615
    %2620 = vmatprep.subr.bf16.mxu0 0
    %2621 = vmatpush1.bf16.msra.mxu0 0
    %2622 = vmatprep.subr.bf16.mxu0 0
    %2623 = vmatpush1.bf16.msra.mxu0 0
    %2624 = vmatprep.subr.bf16.mxu0 0
    %2625 = vmatpush1.bf16.msra.mxu0 0
    %2626 = vmatprep.subr.bf16.mxu0 0
    %2627 = vmatpush1.bf16.msra.mxu0 0
    %2628 = vmatprep.subr.bf16.mxu0 0
    %2629 = vmatpush1.bf16.msra.mxu0 0
    %2630 = vmatprep.subr.bf16.mxu0 0
    %2631 = vmatpush1.bf16.msra.mxu0 0
    %2632 = vmatprep.subr.bf16.mxu0 0
    %2633 = vmatpush1.bf16.msra.mxu0 0
    %2634 = vmatprep.subr.bf16.mxu0 0
    %2635 = vmatpush1.bf16.msra.mxu0 0
    %2636 = vmatprep.mubr.bf16.mxu0 0
    %2637 = vmatmul.mubr.bf16.gmra.mrb[0].mxu0 %v2443
    %v2638 = vpop.f32.mrb[0].mxu0
    %v2639 = vadd.f32 %v2599, %v2638
    %v2640 = vpop.f32.mrb[0].mxu0
    %v2641 = vpop.f32.mrb[0].mxu0
    %v2642 = vpop.f32.mrb[0].mxu0
    %2643 = vdwg.mxu0
    %v2644 = vmax.f32 %v2639, 0.0
    %2645 = vst [vmem:[#allocation2 + $0xc] sm:$0x3] %v2644
    %v2646 = vld [vmem:[%s0 + $0x3e] sm:$0xff]
    %v2647 = vld [vmem:[%s0 + $0x46] sm:$0xff]
    %v2648 = vld [vmem:[%s0 + $0x4e] sm:$0xf]
    %v2652 = vcombine.high %v2646, %v2646
    %v2654 = vunpack.c.l.s4 1983009808
    %v2655 = vunpack.c.0.s8 %v2654
    %v2656 = vlaneseq
    %v2657 = vshrl.u32 %v2656, 7
    %v2658 = vsub.s32 %v2655, %v2657
    %v2659 = vrot.slane %v2646, %v2658
    %v2661 = vunpack.c.l.s4 1983009808
    %v2662 = vunpack.c.0.s8 %v2661
    %v2663 = vlaneseq
    %v2664 = vshrl.u32 %v2663, 7
    %v2665 = vsub.s32 %v2662, %v2664
    %v2666 = vrot.slane %v2652, %v2665
    %v2667 = vcombine.high %v2659, %v2659
    %v2668 = vcombine.high %v2666, %v2666
    %v2669 = vcombine.high %v2647, %v2647
    %v2671 = vunpack.c.l.s4 1983009808
    %v2672 = vunpack.c.0.s8 %v2671
    %v2673 = vlaneseq
    %v2674 = vshrl.u32 %v2673, 7
    %v2675 = vsub.s32 %v2672, %v2674
    %v2676 = vrot.slane %v2647, %v2675
    %v2678 = vunpack.c.l.s4 1983009808
    %v2679 = vunpack.c.0.s8 %v2678
    %v2680 = vlaneseq
    %v2681 = vshrl.u32 %v2680, 7
    %v2682 = vsub.s32 %v2679, %v2681
    %v2683 = vrot.slane %v2669, %v2682
    %v2684 = vcombine.high %v2676, %v2676
    %v2685 = vcombine.high %v2683, %v2683
    %v2687 = vunpack.c.l.s4 1983009808
    %v2688 = vunpack.c.0.s8 %v2687
    %v2689 = vlaneseq
    %v2690 = vshrl.u32 %v2689, 7
    %v2691 = vsub.s32 %v2688, %v2690
    %v2692 = vrot.slane %v2648, %v2691
    %v2693 = vcombine.high %v2692, %v2692
    %v2704 = vpack.c.bf16 %v2659, %v2659
    %v2705 = vpack.c.bf16 %v2667, %v2667
    %v2706 = vpack.c.bf16 %v2666, %v2666
    %v2707 = vpack.c.bf16 %v2668, %v2668
    %v2708 = vpack.c.bf16 %v2676, %v2676
    %v2709 = vpack.c.bf16 %v2684, %v2684
    %v2710 = vpack.c.bf16 %v2683, %v2683
    %v2711 = vpack.c.bf16 %v2685, %v2685
    %v2712 = vpack.c.bf16 %v2692, %v2692
    %v2713 = vpack.c.bf16 %v2693, %v2693
    %2724 = vrot.lane.b32.xlu0 %v2704, 64
    %v2725 = vpop.permute.xlu0 %2724
    %2726 = vrot.lane.b32.xlu0 %v2705, 64
    %v2727 = vpop.permute.xlu0 %2726
    %2728 = vrot.lane.b32.xlu0 %v2706, 64
    %v2729 = vpop.permute.xlu0 %2728
    %2730 = vrot.lane.b32.xlu0 %v2707, 64
    %v2731 = vpop.permute.xlu0 %2730
    %2732 = vrot.lane.b32.xlu0 %v2708, 64
    %v2733 = vpop.permute.xlu0 %2732
    %2734 = vrot.lane.b32.xlu0 %v2709, 64
    %v2735 = vpop.permute.xlu0 %2734
    %2736 = vrot.lane.b32.xlu0 %v2710, 64
    %v2737 = vpop.permute.xlu0 %2736
    %2738 = vrot.lane.b32.xlu0 %v2711, 64
    %v2739 = vpop.permute.xlu0 %2738
    %2740 = vrot.lane.b32.xlu0 %v2712, 64
    %v2741 = vpop.permute.xlu0 %2740
    %2742 = vrot.lane.b32.xlu0 %v2713, 64
    %v2743 = vpop.permute.xlu0 %2742
    %v2744 = vsel %vm988, %v2725, %v2727
    %v2745 = vsel %vm988, %v2727, %v2729
    %v2746 = vsel %vm988, %v2729, %v2731
    %v2747 = vsel %vm988, %v2731, %v2733
    %v2748 = vsel %vm988, %v2733, %v2735
    %v2749 = vsel %vm988, %v2735, %v2737
    %v2750 = vsel %vm988, %v2737, %v2739
    %v2751 = vsel %vm988, %v2739, %v2741
    %v2752 = vsel %vm988, %v2741, %v2743
    %2762 = vmatprep.subr.bf16.mxu0 0
    %2763 = vmatpush1.bf16.msra.mxu0 %v544
    %2764 = vmatprep.subr.bf16.mxu0 0
    %2765 = vmatpush1.bf16.msra.mxu0 %v545
    %2766 = vmatprep.subr.bf16.mxu0 0
    %2767 = vmatpush1.bf16.msra.mxu0 %v546
    %2768 = vmatprep.subr.bf16.mxu0 0
    %2769 = vmatpush1.bf16.msra.mxu0 %v547
    %2770 = vmatprep.subr.bf16.mxu0 0
    %2771 = vmatpush1.bf16.msra.mxu0 %v548
    %2772 = vmatprep.subr.bf16.mxu0 0
    %2773 = vmatpush1.bf16.msra.mxu0 %v549
    %2774 = vmatprep.subr.bf16.mxu0 0
    %2775 = vmatpush1.bf16.msra.mxu0 %v550
    %2776 = vmatprep.subr.bf16.mxu0 0
    %2777 = vmatpush1.bf16.msra.mxu0 %v551
    %2778 = vmatprep.subr.bf16.mxu0 0
    %2779 = vmatpush1.bf16.msra.mxu0 %v552
    %2780 = vmatprep.subr.bf16.mxu0 0
    %2781 = vmatpush1.bf16.msra.mxu0 %v553
    %2782 = vmatprep.subr.bf16.mxu0 0
    %2783 = vmatpush1.bf16.msra.mxu0 %v554
    %2784 = vmatprep.subr.bf16.mxu0 0
    %2785 = vmatpush1.bf16.msra.mxu0 %v555
    %2786 = vmatprep.subr.bf16.mxu0 0
    %2787 = vmatpush1.bf16.msra.mxu0 %v556
    %2788 = vmatprep.subr.bf16.mxu0 0
    %2789 = vmatpush1.bf16.msra.mxu0 %v557
    %2790 = vmatprep.subr.bf16.mxu0 0
    %2791 = vmatpush1.bf16.msra.mxu0 %v558
    %2792 = vmatprep.subr.bf16.mxu0 0
    %2793 = vmatpush1.bf16.msra.mxu0 %v559
    %2794 = vmatprep.mubr.bf16.mxu0 %v2745
    %2795 = vmatmul.mubr.bf16.gmra.mrb[0].mxu0 %v2744
    %v2796 = vpop.f32.mrb[0].mxu0
    %v2797 = vadd.f32 %v254, %v2796
    %v2798 = vpop.f32.mrb[0].mxu0
    %v2799 = vpop.f32.mrb[0].mxu0
    %v2800 = vpop.f32.mrb[0].mxu0
    %2801 = vdwg.mxu0
    %2802 = vmatprep.subr.bf16.mxu0 0
    %2803 = vmatpush1.bf16.msra.mxu0 %v560
    %2804 = vmatprep.subr.bf16.mxu0 0
    %2805 = vmatpush1.bf16.msra.mxu0 %v561
    %2806 = vmatprep.subr.bf16.mxu0 0
    %2807 = vmatpush1.bf16.msra.mxu0 %v562
    %2808 = vmatprep.subr.bf16.mxu0 0
    %2809 = vmatpush1.bf16.msra.mxu0 %v563
    %2810 = vmatprep.subr.bf16.mxu0 0
    %2811 = vmatpush1.bf16.msra.mxu0 %v564
    %2812 = vmatprep.subr.bf16.mxu0 0
    %2813 = vmatpush1.bf16.msra.mxu0 %v565
    %2814 = vmatprep.subr.bf16.mxu0 0
    %2815 = vmatpush1.bf16.msra.mxu0 %v566
    %2816 = vmatprep.subr.bf16.mxu0 0
    %2817 = vmatpush1.bf16.msra.mxu0 %v567
    %2818 = vmatprep.subr.bf16.mxu0 0
    %2819 = vmatpush1.bf16.msra.mxu0 %v568
    %2820 = vmatprep.subr.bf16.mxu0 0
    %2821 = vmatpush1.bf16.msra.mxu0 %v569
    %2822 = vmatprep.subr.bf16.mxu0 0
    %2823 = vmatpush1.bf16.msra.mxu0 %v570
    %2824 = vmatprep.subr.bf16.mxu0 0
    %2825 = vmatpush1.bf16.msra.mxu0 %v571
    %2826 = vmatprep.subr.bf16.mxu0 0
    %2827 = vmatpush1.bf16.msra.mxu0 %v572
    %2828 = vmatprep.subr.bf16.mxu0 0
    %2829 = vmatpush1.bf16.msra.mxu0 %v573
    %2830 = vmatprep.subr.bf16.mxu0 0
    %2831 = vmatpush1.bf16.msra.mxu0 %v574
    %2832 = vmatprep.subr.bf16.mxu0 0
    %2833 = vmatpush1.bf16.msra.mxu0 %v575
    %2834 = vmatprep.mubr.bf16.mxu0 %v2747
    %2835 = vmatmul.mubr.bf16.gmra.mrb[0].mxu0 %v2746
    %v2836 = vpop.f32.mrb[0].mxu0
    %v2837 = vadd.f32 %v2797, %v2836
    %v2838 = vpop.f32.mrb[0].mxu0
    %v2839 = vpop.f32.mrb[0].mxu0
    %v2840 = vpop.f32.mrb[0].mxu0
    %2841 = vdwg.mxu0
    %2842 = vmatprep.subr.bf16.mxu0 0
    %2843 = vmatpush1.bf16.msra.mxu0 %v576
    %2844 = vmatprep.subr.bf16.mxu0 0
    %2845 = vmatpush1.bf16.msra.mxu0 %v577
    %2846 = vmatprep.subr.bf16.mxu0 0
    %2847 = vmatpush1.bf16.msra.mxu0 %v578
    %2848 = vmatprep.subr.bf16.mxu0 0
    %2849 = vmatpush1.bf16.msra.mxu0 %v579
    %2850 = vmatprep.subr.bf16.mxu0 0
    %2851 = vmatpush1.bf16.msra.mxu0 %v580
    %2852 = vmatprep.subr.bf16.mxu0 0
    %2853 = vmatpush1.bf16.msra.mxu0 %v581
    %2854 = vmatprep.subr.bf16.mxu0 0
    %2855 = vmatpush1.bf16.msra.mxu0 %v582
    %2856 = vmatprep.subr.bf16.mxu0 0
    %2857 = vmatpush1.bf16.msra.mxu0 %v583
    %2858 = vmatprep.subr.bf16.mxu0 0
    %2859 = vmatpush1.bf16.msra.mxu0 %v584
    %2860 = vmatprep.subr.bf16.mxu0 0
    %2861 = vmatpush1.bf16.msra.mxu0 %v585
    %2862 = vmatprep.subr.bf16.mxu0 0
    %2863 = vmatpush1.bf16.msra.mxu0 %v586
    %2864 = vmatprep.subr.bf16.mxu0 0
    %2865 = vmatpush1.bf16.msra.mxu0 %v587
    %2866 = vmatprep.subr.bf16.mxu0 0
    %2867 = vmatpush1.bf16.msra.mxu0 %v588
    %2868 = vmatprep.subr.bf16.mxu0 0
    %2869 = vmatpush1.bf16.msra.mxu0 %v589
    %2870 = vmatprep.subr.bf16.mxu0 0
    %2871 = vmatpush1.bf16.msra.mxu0 %v590
    %2872 = vmatprep.subr.bf16.mxu0 0
    %2873 = vmatpush1.bf16.msra.mxu0 %v591
    %2874 = vmatprep.mubr.bf16.mxu0 %v2749
    %2875 = vmatmul.mubr.bf16.gmra.mrb[0].mxu0 %v2748
    %v2876 = vpop.f32.mrb[0].mxu0
    %v2877 = vadd.f32 %v2837, %v2876
    %v2878 = vpop.f32.mrb[0].mxu0
    %v2879 = vpop.f32.mrb[0].mxu0
    %v2880 = vpop.f32.mrb[0].mxu0
    %2881 = vdwg.mxu0
    %2882 = vmatprep.subr.bf16.mxu0 0
    %2883 = vmatpush1.bf16.msra.mxu0 %v592
    %2884 = vmatprep.subr.bf16.mxu0 0
    %2885 = vmatpush1.bf16.msra.mxu0 %v593
    %2886 = vmatprep.subr.bf16.mxu0 0
    %2887 = vmatpush1.bf16.msra.mxu0 %v594
    %2888 = vmatprep.subr.bf16.mxu0 0
    %2889 = vmatpush1.bf16.msra.mxu0 %v595
    %2890 = vmatprep.subr.bf16.mxu0 0
    %2891 = vmatpush1.bf16.msra.mxu0 %v596
    %2892 = vmatprep.subr.bf16.mxu0 0
    %2893 = vmatpush1.bf16.msra.mxu0 %v597
    %2894 = vmatprep.subr.bf16.mxu0 0
    %2895 = vmatpush1.bf16.msra.mxu0 %v598
    %2896 = vmatprep.subr.bf16.mxu0 0
    %2897 = vmatpush1.bf16.msra.mxu0 %v599
    %2898 = vmatprep.subr.bf16.mxu0 0
    %2899 = vmatpush1.bf16.msra.mxu0 %v600
    %2900 = vmatprep.subr.bf16.mxu0 0
    %2901 = vmatpush1.bf16.msra.mxu0 %v601
    %2902 = vmatprep.subr.bf16.mxu0 0
    %2903 = vmatpush1.bf16.msra.mxu0 %v602
    %2904 = vmatprep.subr.bf16.mxu0 0
    %2905 = vmatpush1.bf16.msra.mxu0 %v603
    %2906 = vmatprep.subr.bf16.mxu0 0
    %2907 = vmatpush1.bf16.msra.mxu0 %v604
    %2908 = vmatprep.subr.bf16.mxu0 0
    %2909 = vmatpush1.bf16.msra.mxu0 %v605
    %2910 = vmatprep.subr.bf16.mxu0 0
    %2911 = vmatpush1.bf16.msra.mxu0 %v606
    %2912 = vmatprep.subr.bf16.mxu0 0
    %2913 = vmatpush1.bf16.msra.mxu0 %v607
    %2914 = vmatprep.mubr.bf16.mxu0 %v2751
    %2915 = vmatmul.mubr.bf16.gmra.mrb[0].mxu0 %v2750
    %v2916 = vpop.f32.mrb[0].mxu0
    %v2917 = vadd.f32 %v2877, %v2916
    %v2918 = vpop.f32.mrb[0].mxu0
    %v2919 = vpop.f32.mrb[0].mxu0
    %v2920 = vpop.f32.mrb[0].mxu0
    %2921 = vdwg.mxu0
    %2922 = vmatprep.subr.bf16.mxu0 0
    %2923 = vmatpush1.bf16.msra.mxu0 %v608
    %2924 = vmatprep.subr.bf16.mxu0 0
    %2925 = vmatpush1.bf16.msra.mxu0 %v609
    %2926 = vmatprep.subr.bf16.mxu0 0
    %2927 = vmatpush1.bf16.msra.mxu0 %v610
    %2928 = vmatprep.subr.bf16.mxu0 0
    %2929 = vmatpush1.bf16.msra.mxu0 %v611
    %2930 = vmatprep.subr.bf16.mxu0 0
    %2931 = vmatpush1.bf16.msra.mxu0 %v612
    %2932 = vmatprep.subr.bf16.mxu0 0
    %2933 = vmatpush1.bf16.msra.mxu0 %v613
    %2934 = vmatprep.subr.bf16.mxu0 0
    %2935 = vmatpush1.bf16.msra.mxu0 %v614
    %2936 = vmatprep.subr.bf16.mxu0 0
    %2937 = vmatpush1.bf16.msra.mxu0 %v615
    %2938 = vmatprep.subr.bf16.mxu0 0
    %2939 = vmatpush1.bf16.msra.mxu0 0
    %2940 = vmatprep.subr.bf16.mxu0 0
    %2941 = vmatpush1.bf16.msra.mxu0 0
    %2942 = vmatprep.subr.bf16.mxu0 0
    %2943 = vmatpush1.bf16.msra.mxu0 0
    %2944 = vmatprep.subr.bf16.mxu0 0
    %2945 = vmatpush1.bf16.msra.mxu0 0
    %2946 = vmatprep.subr.bf16.mxu0 0
    %2947 = vmatpush1.bf16.msra.mxu0 0
    %2948 = vmatprep.subr.bf16.mxu0 0
    %2949 = vmatpush1.bf16.msra.mxu0 0
    %2950 = vmatprep.subr.bf16.mxu0 0
    %2951 = vmatpush1.bf16.msra.mxu0 0
    %2952 = vmatprep.subr.bf16.mxu0 0
    %2953 = vmatpush1.bf16.msra.mxu0 0
    %2954 = vmatprep.mubr.bf16.mxu0 0
    %2955 = vmatmul.mubr.bf16.gmra.mrb[0].mxu0 %v2752
    %v2956 = vpop.f32.mrb[0].mxu0
    %v2957 = vadd.f32 %v2917, %v2956
    %v2958 = vpop.f32.mrb[0].mxu0
    %v2959 = vpop.f32.mrb[0].mxu0
    %v2960 = vpop.f32.mrb[0].mxu0
    %2961 = vdwg.mxu0
    %v2962 = vmax.f32 %v2957, 0.0
    %2963 = vst [vmem:[#allocation2 + $0xe] sm:$0x3] %v2962
    %v2964 = vld [vmem:[#allocation2] sm:$0xff]
    %v2965 = vld [vmem:[#allocation2 + $0x8] sm:$0xff]
    %v2968 = vcombine.high %v2964, %v2964
    %v2970 = vunpack.c.l.s4 1983009808
    %v2971 = vunpack.c.0.s8 %v2970
    %v2972 = vlaneseq
    %v2973 = vshrl.u32 %v2972, 7
    %v2974 = vsub.s32 %v2971, %v2973
    %v2975 = vrot.slane %v2964, %v2974
    %v2977 = vunpack.c.l.s4 1983009808
    %v2978 = vunpack.c.0.s8 %v2977
    %v2979 = vlaneseq
    %v2980 = vshrl.u32 %v2979, 7
    %v2981 = vsub.s32 %v2978, %v2980
    %v2982 = vrot.slane %v2968, %v2981
    %v2983 = vcombine.high %v2975, %v2975
    %v2984 = vcombine.high %v2982, %v2982
    %v2985 = vcombine.high %v2965, %v2965
    %v2987 = vunpack.c.l.s4 1983009808
    %v2988 = vunpack.c.0.s8 %v2987
    %v2989 = vlaneseq
    %v2990 = vshrl.u32 %v2989, 7
    %v2991 = vsub.s32 %v2988, %v2990
    %v2992 = vrot.slane %v2965, %v2991
    %v2994 = vunpack.c.l.s4 1983009808
    %v2995 = vunpack.c.0.s8 %v2994
    %v2996 = vlaneseq
    %v2997 = vshrl.u32 %v2996, 7
    %v2998 = vsub.s32 %v2995, %v2997
    %v2999 = vrot.slane %v2985, %v2998
    %v3000 = vcombine.high %v2992, %v2992
    %v3001 = vcombine.high %v2999, %v2999
    %v3010 = vpack.c.bf16 %v2975, %v2975
    %v3011 = vpack.c.bf16 %v2983, %v2983
    %v3012 = vpack.c.bf16 %v2982, %v2982
    %v3013 = vpack.c.bf16 %v2984, %v2984
    %v3014 = vpack.c.bf16 %v2992, %v2992
    %v3015 = vpack.c.bf16 %v3000, %v3000
    %v3016 = vpack.c.bf16 %v2999, %v2999
    %v3017 = vpack.c.bf16 %v3001, %v3001
    %v3018 = vld [vmem:[%s3] sm:$0xff]
    %v3019 = vld [vmem:[%s3 + $0x8] sm:$0xf]
    %v3020 = vld [vmem:[%s3 + $0xc] sm:$0xff]
    %v3021 = vld [vmem:[%s3 + $0x14] sm:$0xf]
    %v3022 = vld [vmem:[%s3 + $0x18] sm:$0xff]
    %v3023 = vld [vmem:[%s3 + $0x20] sm:$0xf]
    %v3024 = vld [vmem:[%s3 + $0x24] sm:$0xff]
    %v3025 = vld [vmem:[%s3 + $0x2c] sm:$0xf]
    %v3026 = vld [vmem:[%s3 + $0x30] sm:$0xff]
    %v3027 = vld [vmem:[%s3 + $0x38] sm:$0xf]
    %v3028 = vld [vmem:[%s3 + $0x3c] sm:$0xff]
    %v3029 = vld [vmem:[%s3 + $0x44] sm:$0xf]
    %v3030 = vld [vmem:[%s3 + $0x48] sm:$0xff]
    %v3031 = vld [vmem:[%s3 + $0x50] sm:$0xf]
    %v3032 = vld [vmem:[%s3 + $0x54] sm:$0xff]
    %v3033 = vld [vmem:[%s3 + $0x5c] sm:$0xf]
    %v3034 = vld [vmem:[%s3 + $0x60] sm:$0xff]
    %v3035 = vld [vmem:[%s3 + $0x68] sm:$0xf]
    %v3036 = vld [vmem:[%s3 + $0x6c] sm:$0xff]
    %v3037 = vld [vmem:[%s3 + $0x74] sm:$0xf]
    %v3038 = vld [vmem:[%s3 + $0x78] sm:$0xff]
    %v3039 = vld [vmem:[%s3 + $0x80] sm:$0xf]
    %v3040 = vld [vmem:[%s3 + $0x84] sm:$0xff]
    %v3041 = vld [vmem:[%s3 + $0x8c] sm:$0xf]
    %v3042 = vld [vmem:[%s3 + $0x90] sm:$0xff]
    %v3043 = vld [vmem:[%s3 + $0x98] sm:$0xf]
    %v3044 = vld [vmem:[%s3 + $0x9c] sm:$0xff]
    %v3045 = vld [vmem:[%s3 + $0xa4] sm:$0xf]
    %v3046 = vld [vmem:[%s3 + $0xa8] sm:$0xff]
    %v3047 = vld [vmem:[%s3 + $0xb0] sm:$0xf]
    %v3048 = vld [vmem:[%s3 + $0xb4] sm:$0xff]
    %v3049 = vld [vmem:[%s3 + $0xbc] sm:$0xf]
    %v3050 = vld [vmem:[%s3 + $0xc0] sm:$0xff]
    %v3051 = vld [vmem:[%s3 + $0xc8] sm:$0xf]
    %v3052 = vld [vmem:[%s3 + $0xcc] sm:$0xff]
    %v3053 = vld [vmem:[%s3 + $0xd4] sm:$0xf]
    %v3054 = vld [vmem:[%s3 + $0xd8] sm:$0xff]
    %v3055 = vld [vmem:[%s3 + $0xe0] sm:$0xf]
    %v3056 = vld [vmem:[%s3 + $0xe4] sm:$0xff]
    %v3057 = vld [vmem:[%s3 + $0xec] sm:$0xf]
    %v3058 = vld [vmem:[%s3 + $0xf0] sm:$0xff]
    %v3059 = vld [vmem:[%s3 + $0xf8] sm:$0xf]
    %v3060 = vld [vmem:[%s3 + $0xfc] sm:$0xff]
    %v3061 = vld [vmem:[%s3 + $0x104] sm:$0xf]
    %v3062 = vld [vmem:[%s3 + $0x108] sm:$0xff]
    %v3063 = vld [vmem:[%s3 + $0x110] sm:$0xf]
    %v3064 = vld [vmem:[%s3 + $0x114] sm:$0xff]
    %v3065 = vld [vmem:[%s3 + $0x11c] sm:$0xf]
    %v3066 = vld [vmem:[%s3 + $0x120] sm:$0xff]
    %v3067 = vld [vmem:[%s3 + $0x128] sm:$0xf]
    %v3068 = vld [vmem:[%s3 + $0x12c] sm:$0xff]
    %v3069 = vld [vmem:[%s3 + $0x134] sm:$0xf]
    %v3070 = vld [vmem:[%s3 + $0x138] sm:$0xff]
    %v3071 = vld [vmem:[%s3 + $0x140] sm:$0xf]
    %v3072 = vld [vmem:[%s3 + $0x144] sm:$0xff]
    %v3073 = vld [vmem:[%s3 + $0x14c] sm:$0xf]
    %v3074 = vld [vmem:[%s3 + $0x150] sm:$0xff]
    %v3075 = vld [vmem:[%s3 + $0x158] sm:$0xf]
    %v3076 = vld [vmem:[%s3 + $0x15c] sm:$0xff]
    %v3077 = vld [vmem:[%s3 + $0x164] sm:$0xf]
    %v3078 = vld [vmem:[%s3 + $0x168] sm:$0xff]
    %v3079 = vld [vmem:[%s3 + $0x170] sm:$0xf]
    %v3080 = vld [vmem:[%s3 + $0x174] sm:$0xff]
    %v3081 = vld [vmem:[%s3 + $0x17c] sm:$0xf]
    %v3082 = vld [vmem:[%s3 + $0x180] sm:$0xff]
    %v3083 = vld [vmem:[%s3 + $0x188] sm:$0xf]
    %v3084 = vld [vmem:[%s3 + $0x18c] sm:$0xff]
    %v3085 = vld [vmem:[%s3 + $0x194] sm:$0xf]
    %v3086 = vld [vmem:[%s3 + $0x198] sm:$0xff]
    %v3087 = vld [vmem:[%s3 + $0x1a0] sm:$0xf]
    %v3088 = vld [vmem:[%s3 + $0x1a4] sm:$0xff]
    %v3089 = vld [vmem:[%s3 + $0x1ac] sm:$0xf]
    %v3090 = vld [vmem:[%s3 + $0x1b0] sm:$0xff]
    %v3091 = vld [vmem:[%s3 + $0x1b8] sm:$0xf]
    %v3092 = vld [vmem:[%s3 + $0x1bc] sm:$0xff]
    %v3093 = vld [vmem:[%s3 + $0x1c4] sm:$0xf]
    %v3094 = vld [vmem:[%s3 + $0x1c8] sm:$0xff]
    %v3095 = vld [vmem:[%s3 + $0x1d0] sm:$0xf]
    %v3096 = vld [vmem:[%s3 + $0x1d4] sm:$0xff]
    %v3097 = vld [vmem:[%s3 + $0x1dc] sm:$0xf]
    %v3098 = vld [vmem:[%s3 + $0x1e0] sm:$0xff]
    %v3099 = vld [vmem:[%s3 + $0x1e8] sm:$0xf]
    %v3100 = vld [vmem:[%s3 + $0x1ec] sm:$0xff]
    %v3101 = vld [vmem:[%s3 + $0x1f4] sm:$0xf]
    %v3102 = vld [vmem:[%s3 + $0x1f8] sm:$0xff]
    %v3103 = vld [vmem:[%s3 + $0x200] sm:$0xf]
    %v3104 = vld [vmem:[%s3 + $0x204] sm:$0xff]
    %v3105 = vld [vmem:[%s3 + $0x20c] sm:$0xf]
    %v3106 = vld [vmem:[%s3 + $0x210] sm:$0xff]
    %v3107 = vld [vmem:[%s3 + $0x218] sm:$0xf]
    %v3108 = vld [vmem:[%s3 + $0x21c] sm:$0xff]
    %v3109 = vld [vmem:[%s3 + $0x224] sm:$0xf]
    %v3110 = vld [vmem:[%s3 + $0x228] sm:$0xff]
    %v3111 = vld [vmem:[%s3 + $0x230] sm:$0xf]
    %v3112 = vld [vmem:[%s3 + $0x234] sm:$0xff]
    %v3113 = vld [vmem:[%s3 + $0x23c] sm:$0xf]
    %v3114 = vld [vmem:[%s3 + $0x240] sm:$0xff]
    %v3115 = vld [vmem:[%s3 + $0x248] sm:$0xf]
    %v3116 = vld [vmem:[%s3 + $0x24c] sm:$0xff]
    %v3117 = vld [vmem:[%s3 + $0x254] sm:$0xf]
    %v3118 = vld [vmem:[%s3 + $0x258] sm:$0xff]
    %v3119 = vld [vmem:[%s3 + $0x260] sm:$0xf]
    %v3120 = vld [vmem:[%s3 + $0x264] sm:$0xff]
    %v3121 = vld [vmem:[%s3 + $0x26c] sm:$0xf]
    %v3122 = vld [vmem:[%s3 + $0x270] sm:$0xff]
    %v3123 = vld [vmem:[%s3 + $0x278] sm:$0xf]
    %v3124 = vld [vmem:[%s3 + $0x27c] sm:$0xff]
    %v3125 = vld [vmem:[%s3 + $0x284] sm:$0xf]
    %v3126 = vld [vmem:[%s3 + $0x288] sm:$0xff]
    %v3127 = vld [vmem:[%s3 + $0x290] sm:$0xf]
    %v3128 = vld [vmem:[%s3 + $0x294] sm:$0xff]
    %v3129 = vld [vmem:[%s3 + $0x29c] sm:$0xf]
    %v3130 = vld [vmem:[%s3 + $0x2a0] sm:$0xff]
    %v3131 = vld [vmem:[%s3 + $0x2a8] sm:$0xf]
    %v3132 = vld [vmem:[%s3 + $0x2ac] sm:$0xff]
    %v3133 = vld [vmem:[%s3 + $0x2b4] sm:$0xf]
    %v3134 = vld [vmem:[%s3 + $0x2b8] sm:$0xff]
    %v3135 = vld [vmem:[%s3 + $0x2c0] sm:$0xf]
    %v3136 = vld [vmem:[%s3 + $0x2c4] sm:$0xff]
    %v3137 = vld [vmem:[%s3 + $0x2cc] sm:$0xf]
    %v3138 = vld [vmem:[%s3 + $0x2d0] sm:$0xff]
    %v3139 = vld [vmem:[%s3 + $0x2d8] sm:$0xf]
    %v3140 = vld [vmem:[%s3 + $0x2dc] sm:$0xff]
    %v3141 = vld [vmem:[%s3 + $0x2e4] sm:$0xf]
    %v3142 = vld [vmem:[%s3 + $0x2e8] sm:$0xff]
    %v3143 = vld [vmem:[%s3 + $0x2f0] sm:$0xf]
    %v3144 = vld [vmem:[%s3 + $0x2f4] sm:$0xff]
    %v3145 = vld [vmem:[%s3 + $0x2fc] sm:$0xf]
    %v3146 = vld [vmem:[%s3 + $0x300] sm:$0xff]
    %v3147 = vld [vmem:[%s3 + $0x308] sm:$0xf]
    %v3148 = vld [vmem:[%s3 + $0x30c] sm:$0xff]
    %v3149 = vld [vmem:[%s3 + $0x314] sm:$0xf]
    %v3150 = vld [vmem:[%s3 + $0x318] sm:$0xff]
    %v3151 = vld [vmem:[%s3 + $0x320] sm:$0xf]
    %v3152 = vld [vmem:[%s3 + $0x324] sm:$0xff]
    %v3153 = vld [vmem:[%s3 + $0x32c] sm:$0xf]
    %v3154 = vld [vmem:[%s3 + $0x330] sm:$0xff]
    %v3155 = vld [vmem:[%s3 + $0x338] sm:$0xf]
    %v3156 = vld [vmem:[%s3 + $0x33c] sm:$0xff]
    %v3157 = vld [vmem:[%s3 + $0x344] sm:$0xf]
    %v3158 = vld [vmem:[%s3 + $0x348] sm:$0xff]
    %v3159 = vld [vmem:[%s3 + $0x350] sm:$0xf]
    %v3160 = vld [vmem:[%s3 + $0x354] sm:$0xff]
    %v3161 = vld [vmem:[%s3 + $0x35c] sm:$0xf]
    %v3162 = vld [vmem:[%s3 + $0x360] sm:$0xff]
    %v3163 = vld [vmem:[%s3 + $0x368] sm:$0xf]
    %v3164 = vld [vmem:[%s3 + $0x36c] sm:$0xff]
    %v3165 = vld [vmem:[%s3 + $0x374] sm:$0xf]
    %v3166 = vld [vmem:[%s3 + $0x378] sm:$0xff]
    %v3167 = vld [vmem:[%s3 + $0x380] sm:$0xf]
    %v3168 = vld [vmem:[%s3 + $0x384] sm:$0xff]
    %v3169 = vld [vmem:[%s3 + $0x38c] sm:$0xf]
    %v3170 = vld [vmem:[%s3 + $0x390] sm:$0xff]
    %v3171 = vld [vmem:[%s3 + $0x398] sm:$0xf]
    %v3172 = vld [vmem:[%s3 + $0x39c] sm:$0xff]
    %v3173 = vld [vmem:[%s3 + $0x3a4] sm:$0xf]
    %v3174 = vld [vmem:[%s3 + $0x3a8] sm:$0xff]
    %v3175 = vld [vmem:[%s3 + $0x3b0] sm:$0xf]
    %v3176 = vld [vmem:[%s3 + $0x3b4] sm:$0xff]
    %v3177 = vld [vmem:[%s3 + $0x3bc] sm:$0xf]
    %v3178 = vld [vmem:[%s3 + $0x3c0] sm:$0xff]
    %v3179 = vld [vmem:[%s3 + $0x3c8] sm:$0xf]
    %v3180 = vld [vmem:[%s3 + $0x3cc] sm:$0xff]
    %v3181 = vld [vmem:[%s3 + $0x3d4] sm:$0xf]
    %v3182 = vld [vmem:[%s3 + $0x3d8] sm:$0xff]
    %v3183 = vld [vmem:[%s3 + $0x3e0] sm:$0xf]
    %v3184 = vld [vmem:[%s3 + $0x3e4] sm:$0xff]
    %v3185 = vld [vmem:[%s3 + $0x3ec] sm:$0xf]
    %v3186 = vld [vmem:[%s3 + $0x3f0] sm:$0xff]
    %v3187 = vld [vmem:[%s3 + $0x3f8] sm:$0xf]
    %v3188 = vld [vmem:[%s3 + $0x3fc] sm:$0xff]
    %v3189 = vld [vmem:[%s3 + $0x404] sm:$0xf]
    %v3190 = vld [vmem:[%s3 + $0x408] sm:$0xff]
    %v3191 = vld [vmem:[%s3 + $0x410] sm:$0xf]
    %v3192 = vld [vmem:[%s3 + $0x414] sm:$0xff]
    %v3193 = vld [vmem:[%s3 + $0x41c] sm:$0xf]
    %v3194 = vld [vmem:[%s3 + $0x420] sm:$0xff]
    %v3195 = vld [vmem:[%s3 + $0x428] sm:$0xf]
    %v3196 = vld [vmem:[%s3 + $0x42c] sm:$0xff]
    %v3197 = vld [vmem:[%s3 + $0x434] sm:$0xf]
    %v3198 = vld [vmem:[%s3 + $0x438] sm:$0xff]
    %v3199 = vld [vmem:[%s3 + $0x440] sm:$0xf]
    %v3200 = vld [vmem:[%s3 + $0x444] sm:$0xff]
    %v3201 = vld [vmem:[%s3 + $0x44c] sm:$0xf]
    %v3202 = vld [vmem:[%s3 + $0x450] sm:$0xff]
    %v3203 = vld [vmem:[%s3 + $0x458] sm:$0xf]
    %v3204 = vld [vmem:[%s3 + $0x45c] sm:$0xff]
    %v3205 = vld [vmem:[%s3 + $0x464] sm:$0xf]
    %v3206 = vld [vmem:[%s3 + $0x468] sm:$0xff]
    %v3207 = vld [vmem:[%s3 + $0x470] sm:$0xf]
    %v3208 = vld [vmem:[%s3 + $0x474] sm:$0xff]
    %v3209 = vld [vmem:[%s3 + $0x47c] sm:$0xf]
    %v3210 = vld [vmem:[%s3 + $0x480] sm:$0xff]
    %v3211 = vld [vmem:[%s3 + $0x488] sm:$0xf]
    %v3212 = vld [vmem:[%s3 + $0x48c] sm:$0xff]
    %v3213 = vld [vmem:[%s3 + $0x494] sm:$0xf]
    %v3214 = vld [vmem:[%s3 + $0x498] sm:$0xff]
    %v3215 = vld [vmem:[%s3 + $0x4a0] sm:$0xf]
    %v3216 = vld [vmem:[%s3 + $0x4a4] sm:$0xff]
    %v3217 = vld [vmem:[%s3 + $0x4ac] sm:$0xf]
    %v3218 = vld [vmem:[%s3 + $0x4b0] sm:$0xff]
    %v3219 = vld [vmem:[%s3 + $0x4b8] sm:$0xf]
    %v3220 = vld [vmem:[%s3 + $0x4bc] sm:$0xff]
    %v3221 = vld [vmem:[%s3 + $0x4c4] sm:$0xf]
    %v3222 = vld [vmem:[%s3 + $0x4c8] sm:$0xff]
    %v3223 = vld [vmem:[%s3 + $0x4d0] sm:$0xf]
    %v3224 = vld [vmem:[%s3 + $0x4d4] sm:$0xff]
    %v3225 = vld [vmem:[%s3 + $0x4dc] sm:$0xf]
    %v3226 = vld [vmem:[%s3 + $0x4e0] sm:$0xff]
    %v3227 = vld [vmem:[%s3 + $0x4e8] sm:$0xf]
    %v3228 = vld [vmem:[%s3 + $0x4ec] sm:$0xff]
    %v3229 = vld [vmem:[%s3 + $0x4f4] sm:$0xf]
    %v3230 = vld [vmem:[%s3 + $0x4f8] sm:$0xff]
    %v3231 = vld [vmem:[%s3 + $0x500] sm:$0xf]
    %v3232 = vld [vmem:[%s3 + $0x504] sm:$0xff]
    %v3233 = vld [vmem:[%s3 + $0x50c] sm:$0xf]
    %v3234 = vld [vmem:[%s3 + $0x510] sm:$0xff]
    %v3235 = vld [vmem:[%s3 + $0x518] sm:$0xf]
    %v3236 = vld [vmem:[%s3 + $0x51c] sm:$0xff]
    %v3237 = vld [vmem:[%s3 + $0x524] sm:$0xf]
    %v3238 = vld [vmem:[%s3 + $0x528] sm:$0xff]
    %v3239 = vld [vmem:[%s3 + $0x530] sm:$0xf]
    %v3240 = vld [vmem:[%s3 + $0x534] sm:$0xff]
    %v3241 = vld [vmem:[%s3 + $0x53c] sm:$0xf]
    %v3242 = vld [vmem:[%s3 + $0x540] sm:$0xff]
    %v3243 = vld [vmem:[%s3 + $0x548] sm:$0xf]
    %v3244 = vld [vmem:[%s3 + $0x54c] sm:$0xff]
    %v3245 = vld [vmem:[%s3 + $0x554] sm:$0xf]
    %v3246 = vld [vmem:[%s3 + $0x558] sm:$0xff]
    %v3247 = vld [vmem:[%s3 + $0x560] sm:$0xf]
    %v3248 = vld [vmem:[%s3 + $0x564] sm:$0xff]
    %v3249 = vld [vmem:[%s3 + $0x56c] sm:$0xf]
    %v3250 = vld [vmem:[%s3 + $0x570] sm:$0xff]
    %v3251 = vld [vmem:[%s3 + $0x578] sm:$0xf]
    %v3252 = vld [vmem:[%s3 + $0x57c] sm:$0xff]
    %v3253 = vld [vmem:[%s3 + $0x584] sm:$0xf]
    %v3254 = vld [vmem:[%s3 + $0x588] sm:$0xff]
    %v3255 = vld [vmem:[%s3 + $0x590] sm:$0xf]
    %v3256 = vld [vmem:[%s3 + $0x594] sm:$0xff]
    %v3257 = vld [vmem:[%s3 + $0x59c] sm:$0xf]
    %v3258 = vld [vmem:[%s3 + $0x5a0] sm:$0xff]
    %v3259 = vld [vmem:[%s3 + $0x5a8] sm:$0xf]
    %v3260 = vld [vmem:[%s3 + $0x5ac] sm:$0xff]
    %v3261 = vld [vmem:[%s3 + $0x5b4] sm:$0xf]
    %v3262 = vld [vmem:[%s3 + $0x5b8] sm:$0xff]
    %v3263 = vld [vmem:[%s3 + $0x5c0] sm:$0xf]
    %v3264 = vld [vmem:[%s3 + $0x5c4] sm:$0xff]
    %v3265 = vld [vmem:[%s3 + $0x5cc] sm:$0xf]
    %v3266 = vld [vmem:[%s3 + $0x5d0] sm:$0xff]
    %v3267 = vld [vmem:[%s3 + $0x5d8] sm:$0xf]
    %v3268 = vld [vmem:[%s3 + $0x5dc] sm:$0xff]
    %v3269 = vld [vmem:[%s3 + $0x5e4] sm:$0xf]
    %v3270 = vld [vmem:[%s3 + $0x5e8] sm:$0xff]
    %v3271 = vld [vmem:[%s3 + $0x5f0] sm:$0xf]
    %v3272 = vld [vmem:[%s3 + $0x5f4] sm:$0xff]
    %v3273 = vld [vmem:[%s3 + $0x5fc] sm:$0xf]
    %v3274 = vld [vmem:[%s4] sm:$0x7]
    %v3276 = vlaneseq
    %v3277 = vshrl.u32 %v3276, 7
    %v3278 = vsub.s32 0, %v3277
    %v3279 = vrot.slane %v3274, %v3278
    %v3280 = vlaneseq
    %v3281 = vshrl.u32 %v3280, 7
    %v3282 = vsub.s32 1, %v3281
    %v3283 = vrot.slane %v3274, %v3282
    %v3284 = vlaneseq
    %v3285 = vshrl.u32 %v3284, 7
    %v3286 = vsub.s32 2, %v3285
    %v3287 = vrot.slane %v3274, %v3286
    %v3547 = vunpack.c.l.b16 %v3018
    %v3548 = vunpack.c.h.b16 %v3018
    %v3549 = vunpack.c.l.b16 %v3019
    %v3550 = vunpack.c.l.b16 %v3020
    %v3551 = vunpack.c.h.b16 %v3020
    %v3552 = vunpack.c.l.b16 %v3021
    %v3553 = vunpack.c.l.b16 %v3022
    %v3554 = vunpack.c.h.b16 %v3022
    %v3555 = vunpack.c.l.b16 %v3023
    %v3556 = vunpack.c.l.b16 %v3024
    %v3557 = vunpack.c.h.b16 %v3024
    %v3558 = vunpack.c.l.b16 %v3025
    %v3559 = vunpack.c.l.b16 %v3026
    %v3560 = vunpack.c.h.b16 %v3026
    %v3561 = vunpack.c.l.b16 %v3027
    %v3562 = vunpack.c.l.b16 %v3028
    %v3563 = vunpack.c.h.b16 %v3028
    %v3564 = vunpack.c.l.b16 %v3029
    %v3565 = vunpack.c.l.b16 %v3030
    %v3566 = vunpack.c.h.b16 %v3030
    %v3567 = vunpack.c.l.b16 %v3031
    %v3568 = vunpack.c.l.b16 %v3032
    %v3569 = vunpack.c.h.b16 %v3032
    %v3570 = vunpack.c.l.b16 %v3033
    %v3571 = vunpack.c.l.b16 %v3034
    %v3572 = vunpack.c.h.b16 %v3034
    %v3573 = vunpack.c.l.b16 %v3035
    %v3574 = vunpack.c.l.b16 %v3036
    %v3575 = vunpack.c.h.b16 %v3036
    %v3576 = vunpack.c.l.b16 %v3037
    %v3577 = vunpack.c.l.b16 %v3038
    %v3578 = vunpack.c.h.b16 %v3038
    %v3579 = vunpack.c.l.b16 %v3039
    %v3580 = vunpack.c.l.b16 %v3040
    %v3581 = vunpack.c.h.b16 %v3040
    %v3582 = vunpack.c.l.b16 %v3041
    %v3583 = vunpack.c.l.b16 %v3042
    %v3584 = vunpack.c.h.b16 %v3042
    %v3585 = vunpack.c.l.b16 %v3043
    %v3586 = vunpack.c.l.b16 %v3044
    %v3587 = vunpack.c.h.b16 %v3044
    %v3588 = vunpack.c.l.b16 %v3045
    %v3589 = vunpack.c.l.b16 %v3046
    %v3590 = vunpack.c.h.b16 %v3046
    %v3591 = vunpack.c.l.b16 %v3047
    %v3592 = vunpack.c.l.b16 %v3048
    %v3593 = vunpack.c.h.b16 %v3048
    %v3594 = vunpack.c.l.b16 %v3049
    %v3595 = vunpack.c.l.b16 %v3050
    %v3596 = vunpack.c.h.b16 %v3050
    %v3597 = vunpack.c.l.b16 %v3051
    %v3598 = vunpack.c.l.b16 %v3052
    %v3599 = vunpack.c.h.b16 %v3052
    %v3600 = vunpack.c.l.b16 %v3053
    %v3601 = vunpack.c.l.b16 %v3054
    %v3602 = vunpack.c.h.b16 %v3054
    %v3603 = vunpack.c.l.b16 %v3055
    %v3604 = vunpack.c.l.b16 %v3056
    %v3605 = vunpack.c.h.b16 %v3056
    %v3606 = vunpack.c.l.b16 %v3057
    %v3607 = vunpack.c.l.b16 %v3058
    %v3608 = vunpack.c.h.b16 %v3058
    %v3609 = vunpack.c.l.b16 %v3059
    %v3610 = vunpack.c.l.b16 %v3060
    %v3611 = vunpack.c.h.b16 %v3060
    %v3612 = vunpack.c.l.b16 %v3061
    %v3613 = vunpack.c.l.b16 %v3062
    %v3614 = vunpack.c.h.b16 %v3062
    %v3615 = vunpack.c.l.b16 %v3063
    %v3616 = vunpack.c.l.b16 %v3064
    %v3617 = vunpack.c.h.b16 %v3064
    %v3618 = vunpack.c.l.b16 %v3065
    %v3619 = vunpack.c.l.b16 %v3066
    %v3620 = vunpack.c.h.b16 %v3066
    %v3621 = vunpack.c.l.b16 %v3067
    %v3622 = vunpack.c.l.b16 %v3068
    %v3623 = vunpack.c.h.b16 %v3068
    %v3624 = vunpack.c.l.b16 %v3069
    %v3625 = vunpack.c.l.b16 %v3070
    %v3626 = vunpack.c.h.b16 %v3070
    %v3627 = vunpack.c.l.b16 %v3071
    %v3628 = vunpack.c.l.b16 %v3072
    %v3629 = vunpack.c.h.b16 %v3072
    %v3630 = vunpack.c.l.b16 %v3073
    %v3631 = vunpack.c.l.b16 %v3074
    %v3632 = vunpack.c.h.b16 %v3074
    %v3633 = vunpack.c.l.b16 %v3075
    %v3634 = vunpack.c.l.b16 %v3076
    %v3635 = vunpack.c.h.b16 %v3076
    %v3636 = vunpack.c.l.b16 %v3077
    %v3637 = vunpack.c.l.b16 %v3078
    %v3638 = vunpack.c.h.b16 %v3078
    %v3639 = vunpack.c.l.b16 %v3079
    %v3640 = vunpack.c.l.b16 %v3080
    %v3641 = vunpack.c.h.b16 %v3080
    %v3642 = vunpack.c.l.b16 %v3081
    %v3643 = vunpack.c.l.b16 %v3082
    %v3644 = vunpack.c.h.b16 %v3082
    %v3645 = vunpack.c.l.b16 %v3083
    %v3646 = vunpack.c.l.b16 %v3084
    %v3647 = vunpack.c.h.b16 %v3084
    %v3648 = vunpack.c.l.b16 %v3085
    %v3649 = vunpack.c.l.b16 %v3086
    %v3650 = vunpack.c.h.b16 %v3086
    %v3651 = vunpack.c.l.b16 %v3087
    %v3652 = vunpack.c.l.b16 %v3088
    %v3653 = vunpack.c.h.b16 %v3088
    %v3654 = vunpack.c.l.b16 %v3089
    %v3655 = vunpack.c.l.b16 %v3090
    %v3656 = vunpack.c.h.b16 %v3090
    %v3657 = vunpack.c.l.b16 %v3091
    %v3658 = vunpack.c.l.b16 %v3092
    %v3659 = vunpack.c.h.b16 %v3092
    %v3660 = vunpack.c.l.b16 %v3093
    %v3661 = vunpack.c.l.b16 %v3094
    %v3662 = vunpack.c.h.b16 %v3094
    %v3663 = vunpack.c.l.b16 %v3095
    %v3664 = vunpack.c.l.b16 %v3096
    %v3665 = vunpack.c.h.b16 %v3096
    %v3666 = vunpack.c.l.b16 %v3097
    %v3667 = vunpack.c.l.b16 %v3098
    %v3668 = vunpack.c.h.b16 %v3098
    %v3669 = vunpack.c.l.b16 %v3099
    %v3670 = vunpack.c.l.b16 %v3100
    %v3671 = vunpack.c.h.b16 %v3100
    %v3672 = vunpack.c.l.b16 %v3101
    %v3673 = vunpack.c.l.b16 %v3102
    %v3674 = vunpack.c.h.b16 %v3102
    %v3675 = vunpack.c.l.b16 %v3103
    %v3676 = vunpack.c.l.b16 %v3104
    %v3677 = vunpack.c.h.b16 %v3104
    %v3678 = vunpack.c.l.b16 %v3105
    %v3679 = vunpack.c.l.b16 %v3106
    %v3680 = vunpack.c.h.b16 %v3106
    %v3681 = vunpack.c.l.b16 %v3107
    %v3682 = vunpack.c.l.b16 %v3108
    %v3683 = vunpack.c.h.b16 %v3108
    %v3684 = vunpack.c.l.b16 %v3109
    %v3685 = vunpack.c.l.b16 %v3110
    %v3686 = vunpack.c.h.b16 %v3110
    %v3687 = vunpack.c.l.b16 %v3111
    %v3688 = vunpack.c.l.b16 %v3112
    %v3689 = vunpack.c.h.b16 %v3112
    %v3690 = vunpack.c.l.b16 %v3113
    %v3691 = vunpack.c.l.b16 %v3114
    %v3692 = vunpack.c.h.b16 %v3114
    %v3693 = vunpack.c.l.b16 %v3115
    %v3694 = vunpack.c.l.b16 %v3116
    %v3695 = vunpack.c.h.b16 %v3116
    %v3696 = vunpack.c.l.b16 %v3117
    %v3697 = vunpack.c.l.b16 %v3118
    %v3698 = vunpack.c.h.b16 %v3118
    %v3699 = vunpack.c.l.b16 %v3119
    %v3700 = vunpack.c.l.b16 %v3120
    %v3701 = vunpack.c.h.b16 %v3120
    %v3702 = vunpack.c.l.b16 %v3121
    %v3703 = vunpack.c.l.b16 %v3122
    %v3704 = vunpack.c.h.b16 %v3122
    %v3705 = vunpack.c.l.b16 %v3123
    %v3706 = vunpack.c.l.b16 %v3124
    %v3707 = vunpack.c.h.b16 %v3124
    %v3708 = vunpack.c.l.b16 %v3125
    %v3709 = vunpack.c.l.b16 %v3126
    %v3710 = vunpack.c.h.b16 %v3126
    %v3711 = vunpack.c.l.b16 %v3127
    %v3712 = vunpack.c.l.b16 %v3128
    %v3713 = vunpack.c.h.b16 %v3128
    %v3714 = vunpack.c.l.b16 %v3129
    %v3715 = vunpack.c.l.b16 %v3130
    %v3716 = vunpack.c.h.b16 %v3130
    %v3717 = vunpack.c.l.b16 %v3131
    %v3718 = vunpack.c.l.b16 %v3132
    %v3719 = vunpack.c.h.b16 %v3132
    %v3720 = vunpack.c.l.b16 %v3133
    %v3721 = vunpack.c.l.b16 %v3134
    %v3722 = vunpack.c.h.b16 %v3134
    %v3723 = vunpack.c.l.b16 %v3135
    %v3724 = vunpack.c.l.b16 %v3136
    %v3725 = vunpack.c.h.b16 %v3136
    %v3726 = vunpack.c.l.b16 %v3137
    %v3727 = vunpack.c.l.b16 %v3138
    %v3728 = vunpack.c.h.b16 %v3138
    %v3729 = vunpack.c.l.b16 %v3139
    %v3730 = vunpack.c.l.b16 %v3140
    %v3731 = vunpack.c.h.b16 %v3140
    %v3732 = vunpack.c.l.b16 %v3141
    %v3733 = vunpack.c.l.b16 %v3142
    %v3734 = vunpack.c.h.b16 %v3142
    %v3735 = vunpack.c.l.b16 %v3143
    %v3736 = vunpack.c.l.b16 %v3144
    %v3737 = vunpack.c.h.b16 %v3144
    %v3738 = vunpack.c.l.b16 %v3145
    %v3739 = vunpack.c.l.b16 %v3146
    %v3740 = vunpack.c.h.b16 %v3146
    %v3741 = vunpack.c.l.b16 %v3147
    %v3742 = vunpack.c.l.b16 %v3148
    %v3743 = vunpack.c.h.b16 %v3148
    %v3744 = vunpack.c.l.b16 %v3149
    %v3745 = vunpack.c.l.b16 %v3150
    %v3746 = vunpack.c.h.b16 %v3150
    %v3747 = vunpack.c.l.b16 %v3151
    %v3748 = vunpack.c.l.b16 %v3152
    %v3749 = vunpack.c.h.b16 %v3152
    %v3750 = vunpack.c.l.b16 %v3153
    %v3751 = vunpack.c.l.b16 %v3154
    %v3752 = vunpack.c.h.b16 %v3154
    %v3753 = vunpack.c.l.b16 %v3155
    %v3754 = vunpack.c.l.b16 %v3156
    %v3755 = vunpack.c.h.b16 %v3156
    %v3756 = vunpack.c.l.b16 %v3157
    %v3757 = vunpack.c.l.b16 %v3158
    %v3758 = vunpack.c.h.b16 %v3158
    %v3759 = vunpack.c.l.b16 %v3159
    %v3760 = vunpack.c.l.b16 %v3160
    %v3761 = vunpack.c.h.b16 %v3160
    %v3762 = vunpack.c.l.b16 %v3161
    %v3763 = vunpack.c.l.b16 %v3162
    %v3764 = vunpack.c.h.b16 %v3162
    %v3765 = vunpack.c.l.b16 %v3163
    %v3766 = vunpack.c.l.b16 %v3164
    %v3767 = vunpack.c.h.b16 %v3164
    %v3768 = vunpack.c.l.b16 %v3165
    %v3769 = vunpack.c.l.b16 %v3166
    %v3770 = vunpack.c.h.b16 %v3166
    %v3771 = vunpack.c.l.b16 %v3167
    %v3772 = vunpack.c.l.b16 %v3168
    %v3773 = vunpack.c.h.b16 %v3168
    %v3774 = vunpack.c.l.b16 %v3169
    %v3775 = vunpack.c.l.b16 %v3170
    %v3776 = vunpack.c.h.b16 %v3170
    %v3777 = vunpack.c.l.b16 %v3171
    %v3778 = vunpack.c.l.b16 %v3172
    %v3779 = vunpack.c.h.b16 %v3172
    %v3780 = vunpack.c.l.b16 %v3173
    %v3781 = vunpack.c.l.b16 %v3174
    %v3782 = vunpack.c.h.b16 %v3174
    %v3783 = vunpack.c.l.b16 %v3175
    %v3784 = vunpack.c.l.b16 %v3176
    %v3785 = vunpack.c.h.b16 %v3176
    %v3786 = vunpack.c.l.b16 %v3177
    %v3787 = vunpack.c.l.b16 %v3178
    %v3788 = vunpack.c.h.b16 %v3178
    %v3789 = vunpack.c.l.b16 %v3179
    %v3790 = vunpack.c.l.b16 %v3180
    %v3791 = vunpack.c.h.b16 %v3180
    %v3792 = vunpack.c.l.b16 %v3181
    %v3793 = vunpack.c.l.b16 %v3182
    %v3794 = vunpack.c.h.b16 %v3182
    %v3795 = vunpack.c.l.b16 %v3183
    %v3796 = vunpack.c.l.b16 %v3184
    %v3797 = vunpack.c.h.b16 %v3184
    %v3798 = vunpack.c.l.b16 %v3185
    %v3799 = vunpack.c.l.b16 %v3186
    %v3800 = vunpack.c.h.b16 %v3186
    %v3801 = vunpack.c.l.b16 %v3187
    %v3802 = vunpack.c.l.b16 %v3188
    %v3803 = vunpack.c.h.b16 %v3188
    %v3804 = vunpack.c.l.b16 %v3189
    %v3805 = vunpack.c.l.b16 %v3190
    %v3806 = vunpack.c.h.b16 %v3190
    %v3807 = vunpack.c.l.b16 %v3191
    %v3808 = vunpack.c.l.b16 %v3192
    %v3809 = vunpack.c.h.b16 %v3192
    %v3810 = vunpack.c.l.b16 %v3193
    %v3811 = vunpack.c.l.b16 %v3194
    %v3812 = vunpack.c.h.b16 %v3194
    %v3813 = vunpack.c.l.b16 %v3195
    %v3814 = vunpack.c.l.b16 %v3196
    %v3815 = vunpack.c.h.b16 %v3196
    %v3816 = vunpack.c.l.b16 %v3197
    %v3817 = vunpack.c.l.b16 %v3198
    %v3818 = vunpack.c.h.b16 %v3198
    %v3819 = vunpack.c.l.b16 %v3199
    %v3820 = vunpack.c.l.b16 %v3200
    %v3821 = vunpack.c.h.b16 %v3200
    %v3822 = vunpack.c.l.b16 %v3201
    %v3823 = vunpack.c.l.b16 %v3202
    %v3824 = vunpack.c.h.b16 %v3202
    %v3825 = vunpack.c.l.b16 %v3203
    %v3826 = vunpack.c.l.b16 %v3204
    %v3827 = vunpack.c.h.b16 %v3204
    %v3828 = vunpack.c.l.b16 %v3205
    %v3829 = vunpack.c.l.b16 %v3206
    %v3830 = vunpack.c.h.b16 %v3206
    %v3831 = vunpack.c.l.b16 %v3207
    %v3832 = vunpack.c.l.b16 %v3208
    %v3833 = vunpack.c.h.b16 %v3208
    %v3834 = vunpack.c.l.b16 %v3209
    %v3835 = vunpack.c.l.b16 %v3210
    %v3836 = vunpack.c.h.b16 %v3210
    %v3837 = vunpack.c.l.b16 %v3211
    %v3838 = vunpack.c.l.b16 %v3212
    %v3839 = vunpack.c.h.b16 %v3212
    %v3840 = vunpack.c.l.b16 %v3213
    %v3841 = vunpack.c.l.b16 %v3214
    %v3842 = vunpack.c.h.b16 %v3214
    %v3843 = vunpack.c.l.b16 %v3215
    %v3844 = vunpack.c.l.b16 %v3216
    %v3845 = vunpack.c.h.b16 %v3216
    %v3846 = vunpack.c.l.b16 %v3217
    %v3847 = vunpack.c.l.b16 %v3218
    %v3848 = vunpack.c.h.b16 %v3218
    %v3849 = vunpack.c.l.b16 %v3219
    %v3850 = vunpack.c.l.b16 %v3220
    %v3851 = vunpack.c.h.b16 %v3220
    %v3852 = vunpack.c.l.b16 %v3221
    %v3853 = vunpack.c.l.b16 %v3222
    %v3854 = vunpack.c.h.b16 %v3222
    %v3855 = vunpack.c.l.b16 %v3223
    %v3856 = vunpack.c.l.b16 %v3224
    %v3857 = vunpack.c.h.b16 %v3224
    %v3858 = vunpack.c.l.b16 %v3225
    %v3859 = vunpack.c.l.b16 %v3226
    %v3860 = vunpack.c.h.b16 %v3226
    %v3861 = vunpack.c.l.b16 %v3227
    %v3862 = vunpack.c.l.b16 %v3228
    %v3863 = vunpack.c.h.b16 %v3228
    %v3864 = vunpack.c.l.b16 %v3229
    %v3865 = vunpack.c.l.b16 %v3230
    %v3866 = vunpack.c.h.b16 %v3230
    %v3867 = vunpack.c.l.b16 %v3231
    %v3868 = vunpack.c.l.b16 %v3232
    %v3869 = vunpack.c.h.b16 %v3232
    %v3870 = vunpack.c.l.b16 %v3233
    %v3871 = vunpack.c.l.b16 %v3234
    %v3872 = vunpack.c.h.b16 %v3234
    %v3873 = vunpack.c.l.b16 %v3235
    %v3874 = vunpack.c.l.b16 %v3236
    %v3875 = vunpack.c.h.b16 %v3236
    %v3876 = vunpack.c.l.b16 %v3237
    %v3877 = vunpack.c.l.b16 %v3238
    %v3878 = vunpack.c.h.b16 %v3238
    %v3879 = vunpack.c.l.b16 %v3239
    %v3880 = vunpack.c.l.b16 %v3240
    %v3881 = vunpack.c.h.b16 %v3240
    %v3882 = vunpack.c.l.b16 %v3241
    %v3883 = vunpack.c.l.b16 %v3242
    %v3884 = vunpack.c.h.b16 %v3242
    %v3885 = vunpack.c.l.b16 %v3243
    %v3886 = vunpack.c.l.b16 %v3244
    %v3887 = vunpack.c.h.b16 %v3244
    %v3888 = vunpack.c.l.b16 %v3245
    %v3889 = vunpack.c.l.b16 %v3246
    %v3890 = vunpack.c.h.b16 %v3246
    %v3891 = vunpack.c.l.b16 %v3247
    %v3892 = vunpack.c.l.b16 %v3248
    %v3893 = vunpack.c.h.b16 %v3248
    %v3894 = vunpack.c.l.b16 %v3249
    %v3895 = vunpack.c.l.b16 %v3250
    %v3896 = vunpack.c.h.b16 %v3250
    %v3897 = vunpack.c.l.b16 %v3251
    %v3898 = vunpack.c.l.b16 %v3252
    %v3899 = vunpack.c.h.b16 %v3252
    %v3900 = vunpack.c.l.b16 %v3253
    %v3901 = vunpack.c.l.b16 %v3254
    %v3902 = vunpack.c.h.b16 %v3254
    %v3903 = vunpack.c.l.b16 %v3255
    %v3904 = vunpack.c.l.b16 %v3256
    %v3905 = vunpack.c.h.b16 %v3256
    %v3906 = vunpack.c.l.b16 %v3257
    %v3907 = vunpack.c.l.b16 %v3258
    %v3908 = vunpack.c.h.b16 %v3258
    %v3909 = vunpack.c.l.b16 %v3259
    %v3910 = vunpack.c.l.b16 %v3260
    %v3911 = vunpack.c.h.b16 %v3260
    %v3912 = vunpack.c.l.b16 %v3261
    %v3913 = vunpack.c.l.b16 %v3262
    %v3914 = vunpack.c.h.b16 %v3262
    %v3915 = vunpack.c.l.b16 %v3263
    %v3916 = vunpack.c.l.b16 %v3264
    %v3917 = vunpack.c.h.b16 %v3264
    %v3918 = vunpack.c.l.b16 %v3265
    %v3919 = vunpack.c.l.b16 %v3266
    %v3920 = vunpack.c.h.b16 %v3266
    %v3921 = vunpack.c.l.b16 %v3267
    %v3922 = vunpack.c.l.b16 %v3268
    %v3923 = vunpack.c.h.b16 %v3268
    %v3924 = vunpack.c.l.b16 %v3269
    %v3925 = vunpack.c.l.b16 %v3270
    %v3926 = vunpack.c.h.b16 %v3270
    %v3927 = vunpack.c.l.b16 %v3271
    %v3928 = vunpack.c.l.b16 %v3272
    %v3929 = vunpack.c.h.b16 %v3272
    %v3930 = vunpack.c.l.b16 %v3273
    %v3931 = vpack.c.b16 %v3550, %v3547
    %v3932 = vpack.c.b16 %v3551, %v3548
    %v3933 = vpack.c.b16 %v3552, %v3549
    %v3934 = vpack.c.b16 %v3556, %v3553
    %v3935 = vpack.c.b16 %v3557, %v3554
    %v3936 = vpack.c.b16 %v3558, %v3555
    %v3937 = vpack.c.b16 %v3562, %v3559
    %v3938 = vpack.c.b16 %v3563, %v3560
    %v3939 = vpack.c.b16 %v3564, %v3561
    %v3940 = vpack.c.b16 %v3568, %v3565
    %v3941 = vpack.c.b16 %v3569, %v3566
    %v3942 = vpack.c.b16 %v3570, %v3567
    %v3943 = vpack.c.b16 %v3574, %v3571
    %v3944 = vpack.c.b16 %v3575, %v3572
    %v3945 = vpack.c.b16 %v3576, %v3573
    %v3946 = vpack.c.b16 %v3580, %v3577
    %v3947 = vpack.c.b16 %v3581, %v3578
    %v3948 = vpack.c.b16 %v3582, %v3579
    %v3949 = vpack.c.b16 %v3586, %v3583
    %v3950 = vpack.c.b16 %v3587, %v3584
    %v3951 = vpack.c.b16 %v3588, %v3585
    %v3952 = vpack.c.b16 %v3592, %v3589
    %v3953 = vpack.c.b16 %v3593, %v3590
    %v3954 = vpack.c.b16 %v3594, %v3591
    %v3955 = vpack.c.b16 %v3598, %v3595
    %v3956 = vpack.c.b16 %v3599, %v3596
    %v3957 = vpack.c.b16 %v3600, %v3597
    %v3958 = vpack.c.b16 %v3604, %v3601
    %v3959 = vpack.c.b16 %v3605, %v3602
    %v3960 = vpack.c.b16 %v3606, %v3603
    %v3961 = vpack.c.b16 %v3610, %v3607
    %v3962 = vpack.c.b16 %v3611, %v3608
    %v3963 = vpack.c.b16 %v3612, %v3609
    %v3964 = vpack.c.b16 %v3616, %v3613
    %v3965 = vpack.c.b16 %v3617, %v3614
    %v3966 = vpack.c.b16 %v3618, %v3615
    %v3967 = vpack.c.b16 %v3622, %v3619
    %v3968 = vpack.c.b16 %v3623, %v3620
    %v3969 = vpack.c.b16 %v3624, %v3621
    %v3970 = vpack.c.b16 %v3628, %v3625
    %v3971 = vpack.c.b16 %v3629, %v3626
    %v3972 = vpack.c.b16 %v3630, %v3627
    %v3973 = vpack.c.b16 %v3634, %v3631
    %v3974 = vpack.c.b16 %v3635, %v3632
    %v3975 = vpack.c.b16 %v3636, %v3633
    %v3976 = vpack.c.b16 %v3640, %v3637
    %v3977 = vpack.c.b16 %v3641, %v3638
    %v3978 = vpack.c.b16 %v3642, %v3639
    %v3979 = vpack.c.b16 %v3646, %v3643
    %v3980 = vpack.c.b16 %v3647, %v3644
    %v3981 = vpack.c.b16 %v3648, %v3645
    %v3982 = vpack.c.b16 %v3652, %v3649
    %v3983 = vpack.c.b16 %v3653, %v3650
    %v3984 = vpack.c.b16 %v3654, %v3651
    %v3985 = vpack.c.b16 %v3658, %v3655
    %v3986 = vpack.c.b16 %v3659, %v3656
    %v3987 = vpack.c.b16 %v3660, %v3657
    %v3988 = vpack.c.b16 %v3664, %v3661
    %v3989 = vpack.c.b16 %v3665, %v3662
    %v3990 = vpack.c.b16 %v3666, %v3663
    %v3991 = vpack.c.b16 %v3670, %v3667
    %v3992 = vpack.c.b16 %v3671, %v3668
    %v3993 = vpack.c.b16 %v3672, %v3669
    %v3994 = vpack.c.b16 %v3676, %v3673
    %v3995 = vpack.c.b16 %v3677, %v3674
    %v3996 = vpack.c.b16 %v3678, %v3675
    %v3997 = vpack.c.b16 %v3682, %v3679
    %v3998 = vpack.c.b16 %v3683, %v3680
    %v3999 = vpack.c.b16 %v3684, %v3681
    %v4000 = vpack.c.b16 %v3688, %v3685
    %v4001 = vpack.c.b16 %v3689, %v3686
    %v4002 = vpack.c.b16 %v3690, %v3687
    %v4003 = vpack.c.b16 %v3694, %v3691
    %v4004 = vpack.c.b16 %v3695, %v3692
    %v4005 = vpack.c.b16 %v3696, %v3693
    %v4006 = vpack.c.b16 %v3700, %v3697
    %v4007 = vpack.c.b16 %v3701, %v3698
    %v4008 = vpack.c.b16 %v3702, %v3699
    %v4009 = vpack.c.b16 %v3706, %v3703
    %v4010 = vpack.c.b16 %v3707, %v3704
    %v4011 = vpack.c.b16 %v3708, %v3705
    %v4012 = vpack.c.b16 %v3712, %v3709
    %v4013 = vpack.c.b16 %v3713, %v3710
    %v4014 = vpack.c.b16 %v3714, %v3711
    %v4015 = vpack.c.b16 %v3718, %v3715
    %v4016 = vpack.c.b16 %v3719, %v3716
    %v4017 = vpack.c.b16 %v3720, %v3717
    %v4018 = vpack.c.b16 %v3724, %v3721
    %v4019 = vpack.c.b16 %v3725, %v3722
    %v4020 = vpack.c.b16 %v3726, %v3723
    %v4021 = vpack.c.b16 %v3730, %v3727
    %v4022 = vpack.c.b16 %v3731, %v3728
    %v4023 = vpack.c.b16 %v3732, %v3729
    %v4024 = vpack.c.b16 %v3736, %v3733
    %v4025 = vpack.c.b16 %v3737, %v3734
    %v4026 = vpack.c.b16 %v3738, %v3735
    %v4027 = vpack.c.b16 %v3742, %v3739
    %v4028 = vpack.c.b16 %v3743, %v3740
    %v4029 = vpack.c.b16 %v3744, %v3741
    %v4030 = vpack.c.b16 %v3748, %v3745
    %v4031 = vpack.c.b16 %v3749, %v3746
    %v4032 = vpack.c.b16 %v3750, %v3747
    %v4033 = vpack.c.b16 %v3754, %v3751
    %v4034 = vpack.c.b16 %v3755, %v3752
    %v4035 = vpack.c.b16 %v3756, %v3753
    %v4036 = vpack.c.b16 %v3760, %v3757
    %v4037 = vpack.c.b16 %v3761, %v3758
    %v4038 = vpack.c.b16 %v3762, %v3759
    %v4039 = vpack.c.b16 %v3766, %v3763
    %v4040 = vpack.c.b16 %v3767, %v3764
    %v4041 = vpack.c.b16 %v3768, %v3765
    %v4042 = vpack.c.b16 %v3772, %v3769
    %v4043 = vpack.c.b16 %v3773, %v3770
    %v4044 = vpack.c.b16 %v3774, %v3771
    %v4045 = vpack.c.b16 %v3778, %v3775
    %v4046 = vpack.c.b16 %v3779, %v3776
    %v4047 = vpack.c.b16 %v3780, %v3777
    %v4048 = vpack.c.b16 %v3784, %v3781
    %v4049 = vpack.c.b16 %v3785, %v3782
    %v4050 = vpack.c.b16 %v3786, %v3783
    %v4051 = vpack.c.b16 %v3790, %v3787
    %v4052 = vpack.c.b16 %v3791, %v3788
    %v4053 = vpack.c.b16 %v3792, %v3789
    %v4054 = vpack.c.b16 %v3796, %v3793
    %v4055 = vpack.c.b16 %v3797, %v3794
    %v4056 = vpack.c.b16 %v3798, %v3795
    %v4057 = vpack.c.b16 %v3802, %v3799
    %v4058 = vpack.c.b16 %v3803, %v3800
    %v4059 = vpack.c.b16 %v3804, %v3801
    %v4060 = vpack.c.b16 %v3808, %v3805
    %v4061 = vpack.c.b16 %v3809, %v3806
    %v4062 = vpack.c.b16 %v3810, %v3807
    %v4063 = vpack.c.b16 %v3814, %v3811
    %v4064 = vpack.c.b16 %v3815, %v3812
    %v4065 = vpack.c.b16 %v3816, %v3813
    %v4066 = vpack.c.b16 %v3820, %v3817
    %v4067 = vpack.c.b16 %v3821, %v3818
    %v4068 = vpack.c.b16 %v3822, %v3819
    %v4069 = vpack.c.b16 %v3826, %v3823
    %v4070 = vpack.c.b16 %v3827, %v3824
    %v4071 = vpack.c.b16 %v3828, %v3825
    %v4072 = vpack.c.b16 %v3832, %v3829
    %v4073 = vpack.c.b16 %v3833, %v3830
    %v4074 = vpack.c.b16 %v3834, %v3831
    %v4075 = vpack.c.b16 %v3838, %v3835
    %v4076 = vpack.c.b16 %v3839, %v3836
    %v4077 = vpack.c.b16 %v3840, %v3837
    %v4078 = vpack.c.b16 %v3844, %v3841
    %v4079 = vpack.c.b16 %v3845, %v3842
    %v4080 = vpack.c.b16 %v3846, %v3843
    %v4081 = vpack.c.b16 %v3850, %v3847
    %v4082 = vpack.c.b16 %v3851, %v3848
    %v4083 = vpack.c.b16 %v3852, %v3849
    %v4084 = vpack.c.b16 %v3856, %v3853
    %v4085 = vpack.c.b16 %v3857, %v3854
    %v4086 = vpack.c.b16 %v3858, %v3855
    %v4087 = vpack.c.b16 %v3862, %v3859
    %v4088 = vpack.c.b16 %v3863, %v3860
    %v4089 = vpack.c.b16 %v3864, %v3861
    %v4090 = vpack.c.b16 %v3868, %v3865
    %v4091 = vpack.c.b16 %v3869, %v3866
    %v4092 = vpack.c.b16 %v3870, %v3867
    %v4093 = vpack.c.b16 %v3874, %v3871
    %v4094 = vpack.c.b16 %v3875, %v3872
    %v4095 = vpack.c.b16 %v3876, %v3873
    %v4096 = vpack.c.b16 %v3880, %v3877
    %v4097 = vpack.c.b16 %v3881, %v3878
    %v4098 = vpack.c.b16 %v3882, %v3879
    %v4099 = vpack.c.b16 %v3886, %v3883
    %v4100 = vpack.c.b16 %v3887, %v3884
    %v4101 = vpack.c.b16 %v3888, %v3885
    %v4102 = vpack.c.b16 %v3892, %v3889
    %v4103 = vpack.c.b16 %v3893, %v3890
    %v4104 = vpack.c.b16 %v3894, %v3891
    %v4105 = vpack.c.b16 %v3898, %v3895
    %v4106 = vpack.c.b16 %v3899, %v3896
    %v4107 = vpack.c.b16 %v3900, %v3897
    %v4108 = vpack.c.b16 %v3904, %v3901
    %v4109 = vpack.c.b16 %v3905, %v3902
    %v4110 = vpack.c.b16 %v3906, %v3903
    %v4111 = vpack.c.b16 %v3910, %v3907
    %v4112 = vpack.c.b16 %v3911, %v3908
    %v4113 = vpack.c.b16 %v3912, %v3909
    %v4114 = vpack.c.b16 %v3916, %v3913
    %v4115 = vpack.c.b16 %v3917, %v3914
    %v4116 = vpack.c.b16 %v3918, %v3915
    %v4117 = vpack.c.b16 %v3922, %v3919
    %v4118 = vpack.c.b16 %v3923, %v3920
    %v4119 = vpack.c.b16 %v3924, %v3921
    %v4120 = vpack.c.b16 %v3928, %v3925
    %v4121 = vpack.c.b16 %v3929, %v3926
    %v4122 = vpack.c.b16 %v3930, %v3927
    %4315 = vmatprep.subr.bf16.mxu0 %v3932
    %4316 = vmatpush1.bf16.msra.mxu0 %v3931
    %4317 = vmatprep.subr.bf16.mxu0 %v3935
    %4318 = vmatpush1.bf16.msra.mxu0 %v3934
    %4319 = vmatprep.subr.bf16.mxu0 %v3938
    %4320 = vmatpush1.bf16.msra.mxu0 %v3937
    %4321 = vmatprep.subr.bf16.mxu0 %v3941
    %4322 = vmatpush1.bf16.msra.mxu0 %v3940
    %4323 = vmatprep.subr.bf16.mxu0 %v3944
    %4324 = vmatpush1.bf16.msra.mxu0 %v3943
    %4325 = vmatprep.subr.bf16.mxu0 %v3947
    %4326 = vmatpush1.bf16.msra.mxu0 %v3946
    %4327 = vmatprep.subr.bf16.mxu0 %v3950
    %4328 = vmatpush1.bf16.msra.mxu0 %v3949
    %4329 = vmatprep.subr.bf16.mxu0 %v3953
    %4330 = vmatpush1.bf16.msra.mxu0 %v3952
    %4331 = vmatprep.subr.bf16.mxu0 %v3956
    %4332 = vmatpush1.bf16.msra.mxu0 %v3955
    %4333 = vmatprep.subr.bf16.mxu0 %v3959
    %4334 = vmatpush1.bf16.msra.mxu0 %v3958
    %4335 = vmatprep.subr.bf16.mxu0 %v3962
    %4336 = vmatpush1.bf16.msra.mxu0 %v3961
    %4337 = vmatprep.subr.bf16.mxu0 %v3965
    %4338 = vmatpush1.bf16.msra.mxu0 %v3964
    %4339 = vmatprep.subr.bf16.mxu0 %v3968
    %4340 = vmatpush1.bf16.msra.mxu0 %v3967
    %4341 = vmatprep.subr.bf16.mxu0 %v3971
    %4342 = vmatpush1.bf16.msra.mxu0 %v3970
    %4343 = vmatprep.subr.bf16.mxu0 %v3974
    %4344 = vmatpush1.bf16.msra.mxu0 %v3973
    %4345 = vmatprep.subr.bf16.mxu0 %v3977
    %4346 = vmatpush1.bf16.msra.mxu0 %v3976
    %4347 = vmatprep.mubr.bf16.mxu0 %v3011
    %4348 = vmatmul.mubr.bf16.gmra.mrb[0].mxu0 %v3010
    %v4349 = vpop.f32.mrb[0].mxu0
    %v4350 = vadd.f32 %v3279, %v4349
    %v4351 = vpop.f32.mrb[0].mxu0
    %v4352 = vadd.f32 %v3283, %v4351
    %v4353 = vpop.f32.mrb[0].mxu0
    %v4354 = vpop.f32.mrb[0].mxu0
    %4355 = vdwg.mxu0
    %4356 = vmatprep.subr.bf16.mxu0 %v3980
    %4357 = vmatpush1.bf16.msra.mxu0 %v3979
    %4358 = vmatprep.subr.bf16.mxu0 %v3983
    %4359 = vmatpush1.bf16.msra.mxu0 %v3982
    %4360 = vmatprep.subr.bf16.mxu0 %v3986
    %4361 = vmatpush1.bf16.msra.mxu0 %v3985
    %4362 = vmatprep.subr.bf16.mxu0 %v3989
    %4363 = vmatpush1.bf16.msra.mxu0 %v3988
    %4364 = vmatprep.subr.bf16.mxu0 %v3992
    %4365 = vmatpush1.bf16.msra.mxu0 %v3991
    %4366 = vmatprep.subr.bf16.mxu0 %v3995
    %4367 = vmatpush1.bf16.msra.mxu0 %v3994
    %4368 = vmatprep.subr.bf16.mxu0 %v3998
    %4369 = vmatpush1.bf16.msra.mxu0 %v3997
    %4370 = vmatprep.subr.bf16.mxu0 %v4001
    %4371 = vmatpush1.bf16.msra.mxu0 %v4000
    %4372 = vmatprep.subr.bf16.mxu0 %v4004
    %4373 = vmatpush1.bf16.msra.mxu0 %v4003
    %4374 = vmatprep.subr.bf16.mxu0 %v4007
    %4375 = vmatpush1.bf16.msra.mxu0 %v4006
    %4376 = vmatprep.subr.bf16.mxu0 %v4010
    %4377 = vmatpush1.bf16.msra.mxu0 %v4009
    %4378 = vmatprep.subr.bf16.mxu0 %v4013
    %4379 = vmatpush1.bf16.msra.mxu0 %v4012
    %4380 = vmatprep.subr.bf16.mxu0 %v4016
    %4381 = vmatpush1.bf16.msra.mxu0 %v4015
    %4382 = vmatprep.subr.bf16.mxu0 %v4019
    %4383 = vmatpush1.bf16.msra.mxu0 %v4018
    %4384 = vmatprep.subr.bf16.mxu0 %v4022
    %4385 = vmatpush1.bf16.msra.mxu0 %v4021
    %4386 = vmatprep.subr.bf16.mxu0 %v4025
    %4387 = vmatpush1.bf16.msra.mxu0 %v4024
    %4388 = vmatprep.mubr.bf16.mxu0 %v3013
    %4389 = vmatmul.mubr.bf16.gmra.mrb[0].mxu0 %v3012
    %v4390 = vpop.f32.mrb[0].mxu0
    %v4391 = vadd.f32 %v4350, %v4390
    %v4392 = vpop.f32.mrb[0].mxu0
    %v4393 = vadd.f32 %v4352, %v4392
    %v4394 = vpop.f32.mrb[0].mxu0
    %v4395 = vpop.f32.mrb[0].mxu0
    %4396 = vdwg.mxu0
    %4397 = vmatprep.subr.bf16.mxu0 %v4028
    %4398 = vmatpush1.bf16.msra.mxu0 %v4027
    %4399 = vmatprep.subr.bf16.mxu0 %v4031
    %4400 = vmatpush1.bf16.msra.mxu0 %v4030
    %4401 = vmatprep.subr.bf16.mxu0 %v4034
    %4402 = vmatpush1.bf16.msra.mxu0 %v4033
    %4403 = vmatprep.subr.bf16.mxu0 %v4037
    %4404 = vmatpush1.bf16.msra.mxu0 %v4036
    %4405 = vmatprep.subr.bf16.mxu0 %v4040
    %4406 = vmatpush1.bf16.msra.mxu0 %v4039
    %4407 = vmatprep.subr.bf16.mxu0 %v4043
    %4408 = vmatpush1.bf16.msra.mxu0 %v4042
    %4409 = vmatprep.subr.bf16.mxu0 %v4046
    %4410 = vmatpush1.bf16.msra.mxu0 %v4045
    %4411 = vmatprep.subr.bf16.mxu0 %v4049
    %4412 = vmatpush1.bf16.msra.mxu0 %v4048
    %4413 = vmatprep.subr.bf16.mxu0 %v4052
    %4414 = vmatpush1.bf16.msra.mxu0 %v4051
    %4415 = vmatprep.subr.bf16.mxu0 %v4055
    %4416 = vmatpush1.bf16.msra.mxu0 %v4054
    %4417 = vmatprep.subr.bf16.mxu0 %v4058
    %4418 = vmatpush1.bf16.msra.mxu0 %v4057
    %4419 = vmatprep.subr.bf16.mxu0 %v4061
    %4420 = vmatpush1.bf16.msra.mxu0 %v4060
    %4421 = vmatprep.subr.bf16.mxu0 %v4064
    %4422 = vmatpush1.bf16.msra.mxu0 %v4063
    %4423 = vmatprep.subr.bf16.mxu0 %v4067
    %4424 = vmatpush1.bf16.msra.mxu0 %v4066
    %4425 = vmatprep.subr.bf16.mxu0 %v4070
    %4426 = vmatpush1.bf16.msra.mxu0 %v4069
    %4427 = vmatprep.subr.bf16.mxu0 %v4073
    %4428 = vmatpush1.bf16.msra.mxu0 %v4072
    %4429 = vmatprep.mubr.bf16.mxu0 %v3015
    %4430 = vmatmul.mubr.bf16.gmra.mrb[0].mxu0 %v3014
    %v4431 = vpop.f32.mrb[0].mxu0
    %v4432 = vadd.f32 %v4391, %v4431
    %v4433 = vpop.f32.mrb[0].mxu0
    %v4434 = vadd.f32 %v4393, %v4433
    %v4435 = vpop.f32.mrb[0].mxu0
    %v4436 = vpop.f32.mrb[0].mxu0
    %4437 = vdwg.mxu0
    %4438 = vmatprep.subr.bf16.mxu0 %v4076
    %4439 = vmatpush1.bf16.msra.mxu0 %v4075
    %4440 = vmatprep.subr.bf16.mxu0 %v4079
    %4441 = vmatpush1.bf16.msra.mxu0 %v4078
    %4442 = vmatprep.subr.bf16.mxu0 %v4082
    %4443 = vmatpush1.bf16.msra.mxu0 %v4081
    %4444 = vmatprep.subr.bf16.mxu0 %v4085
    %4445 = vmatpush1.bf16.msra.mxu0 %v4084
    %4446 = vmatprep.subr.bf16.mxu0 %v4088
    %4447 = vmatpush1.bf16.msra.mxu0 %v4087
    %4448 = vmatprep.subr.bf16.mxu0 %v4091
    %4449 = vmatpush1.bf16.msra.mxu0 %v4090
    %4450 = vmatprep.subr.bf16.mxu0 %v4094
    %4451 = vmatpush1.bf16.msra.mxu0 %v4093
    %4452 = vmatprep.subr.bf16.mxu0 %v4097
    %4453 = vmatpush1.bf16.msra.mxu0 %v4096
    %4454 = vmatprep.subr.bf16.mxu0 %v4100
    %4455 = vmatpush1.bf16.msra.mxu0 %v4099
    %4456 = vmatprep.subr.bf16.mxu0 %v4103
    %4457 = vmatpush1.bf16.msra.mxu0 %v4102
    %4458 = vmatprep.subr.bf16.mxu0 %v4106
    %4459 = vmatpush1.bf16.msra.mxu0 %v4105
    %4460 = vmatprep.subr.bf16.mxu0 %v4109
    %4461 = vmatpush1.bf16.msra.mxu0 %v4108
    %4462 = vmatprep.subr.bf16.mxu0 %v4112
    %4463 = vmatpush1.bf16.msra.mxu0 %v4111
    %4464 = vmatprep.subr.bf16.mxu0 %v4115
    %4465 = vmatpush1.bf16.msra.mxu0 %v4114
    %4466 = vmatprep.subr.bf16.mxu0 %v4118
    %4467 = vmatpush1.bf16.msra.mxu0 %v4117
    %4468 = vmatprep.subr.bf16.mxu0 %v4121
    %4469 = vmatpush1.bf16.msra.mxu0 %v4120
    %4470 = vmatprep.mubr.bf16.mxu0 %v3017
    %4471 = vmatmul.mubr.bf16.gmra.mrb[0].mxu0 %v3016
    %v4472 = vpop.f32.mrb[0].mxu0
    %v4473 = vadd.f32 %v4432, %v4472
    %v4474 = vpop.f32.mrb[0].mxu0
    %v4475 = vadd.f32 %v4434, %v4474
    %v4476 = vpop.f32.mrb[0].mxu0
    %v4477 = vpop.f32.mrb[0].mxu0
    %4478 = vdwg.mxu0
    %4479 = vmatprep.subr.bf16.mxu0 0
    %4480 = vmatpush1.bf16.msra.mxu0 %v3933
    %4481 = vmatprep.subr.bf16.mxu0 0
    %4482 = vmatpush1.bf16.msra.mxu0 %v3936
    %4483 = vmatprep.subr.bf16.mxu0 0
    %4484 = vmatpush1.bf16.msra.mxu0 %v3939
    %4485 = vmatprep.subr.bf16.mxu0 0
    %4486 = vmatpush1.bf16.msra.mxu0 %v3942
    %4487 = vmatprep.subr.bf16.mxu0 0
    %4488 = vmatpush1.bf16.msra.mxu0 %v3945
    %4489 = vmatprep.subr.bf16.mxu0 0
    %4490 = vmatpush1.bf16.msra.mxu0 %v3948
    %4491 = vmatprep.subr.bf16.mxu0 0
    %4492 = vmatpush1.bf16.msra.mxu0 %v3951
    %4493 = vmatprep.subr.bf16.mxu0 0
    %4494 = vmatpush1.bf16.msra.mxu0 %v3954
    %4495 = vmatprep.subr.bf16.mxu0 0
    %4496 = vmatpush1.bf16.msra.mxu0 %v3957
    %4497 = vmatprep.subr.bf16.mxu0 0
    %4498 = vmatpush1.bf16.msra.mxu0 %v3960
    %4499 = vmatprep.subr.bf16.mxu0 0
    %4500 = vmatpush1.bf16.msra.mxu0 %v3963
    %4501 = vmatprep.subr.bf16.mxu0 0
    %4502 = vmatpush1.bf16.msra.mxu0 %v3966
    %4503 = vmatprep.subr.bf16.mxu0 0
    %4504 = vmatpush1.bf16.msra.mxu0 %v3969
    %4505 = vmatprep.subr.bf16.mxu0 0
    %4506 = vmatpush1.bf16.msra.mxu0 %v3972
    %4507 = vmatprep.subr.bf16.mxu0 0
    %4508 = vmatpush1.bf16.msra.mxu0 %v3975
    %4509 = vmatprep.subr.bf16.mxu0 0
    %4510 = vmatpush1.bf16.msra.mxu0 %v3978
    %4511 = vmatprep.mubr.bf16.mxu0 %v3011
    %4512 = vmatmul.mubr.bf16.gmra.mrb[0].mxu0 %v3010
    %v4513 = vpop.f32.mrb[0].mxu0
    %v4514 = vadd.f32 %v3287, %v4513
    %v4515 = vpop.f32.mrb[0].mxu0
    %v4516 = vpop.f32.mrb[0].mxu0
    %v4517 = vpop.f32.mrb[0].mxu0
    %4518 = vdwg.mxu0
    %4519 = vmatprep.subr.bf16.mxu0 0
    %4520 = vmatpush1.bf16.msra.mxu0 %v3981
    %4521 = vmatprep.subr.bf16.mxu0 0
    %4522 = vmatpush1.bf16.msra.mxu0 %v3984
    %4523 = vmatprep.subr.bf16.mxu0 0
    %4524 = vmatpush1.bf16.msra.mxu0 %v3987
    %4525 = vmatprep.subr.bf16.mxu0 0
    %4526 = vmatpush1.bf16.msra.mxu0 %v3990
    %4527 = vmatprep.subr.bf16.mxu0 0
    %4528 = vmatpush1.bf16.msra.mxu0 %v3993
    %4529 = vmatprep.subr.bf16.mxu0 0
    %4530 = vmatpush1.bf16.msra.mxu0 %v3996
    %4531 = vmatprep.subr.bf16.mxu0 0
    %4532 = vmatpush1.bf16.msra.mxu0 %v3999
    %4533 = vmatprep.subr.bf16.mxu0 0
    %4534 = vmatpush1.bf16.msra.mxu0 %v4002
    %4535 = vmatprep.subr.bf16.mxu0 0
    %4536 = vmatpush1.bf16.msra.mxu0 %v4005
    %4537 = vmatprep.subr.bf16.mxu0 0
    %4538 = vmatpush1.bf16.msra.mxu0 %v4008
    %4539 = vmatprep.subr.bf16.mxu0 0
    %4540 = vmatpush1.bf16.msra.mxu0 %v4011
    %4541 = vmatprep.subr.bf16.mxu0 0
    %4542 = vmatpush1.bf16.msra.mxu0 %v4014
    %4543 = vmatprep.subr.bf16.mxu0 0
    %4544 = vmatpush1.bf16.msra.mxu0 %v4017
    %4545 = vmatprep.subr.bf16.mxu0 0
    %4546 = vmatpush1.bf16.msra.mxu0 %v4020
    %4547 = vmatprep.subr.bf16.mxu0 0
    %4548 = vmatpush1.bf16.msra.mxu0 %v4023
    %4549 = vmatprep.subr.bf16.mxu0 0
    %4550 = vmatpush1.bf16.msra.mxu0 %v4026
    %4551 = vmatprep.mubr.bf16.mxu0 %v3013
    %4552 = vmatmul.mubr.bf16.gmra.mrb[0].mxu0 %v3012
    %v4553 = vpop.f32.mrb[0].mxu0
    %v4554 = vadd.f32 %v4514, %v4553
    %v4555 = vpop.f32.mrb[0].mxu0
    %v4556 = vpop.f32.mrb[0].mxu0
    %v4557 = vpop.f32.mrb[0].mxu0
    %4558 = vdwg.mxu0
    %4559 = vmatprep.subr.bf16.mxu0 0
    %4560 = vmatpush1.bf16.msra.mxu0 %v4029
    %4561 = vmatprep.subr.bf16.mxu0 0
    %4562 = vmatpush1.bf16.msra.mxu0 %v4032
    %4563 = vmatprep.subr.bf16.mxu0 0
    %4564 = vmatpush1.bf16.msra.mxu0 %v4035
    %4565 = vmatprep.subr.bf16.mxu0 0
    %4566 = vmatpush1.bf16.msra.mxu0 %v4038
    %4567 = vmatprep.subr.bf16.mxu0 0
    %4568 = vmatpush1.bf16.msra.mxu0 %v4041
    %4569 = vmatprep.subr.bf16.mxu0 0
    %4570 = vmatpush1.bf16.msra.mxu0 %v4044
    %4571 = vmatprep.subr.bf16.mxu0 0
    %4572 = vmatpush1.bf16.msra.mxu0 %v4047
    %4573 = vmatprep.subr.bf16.mxu0 0
    %4574 = vmatpush1.bf16.msra.mxu0 %v4050
    %4575 = vmatprep.subr.bf16.mxu0 0
    %4576 = vmatpush1.bf16.msra.mxu0 %v4053
    %4577 = vmatprep.subr.bf16.mxu0 0
    %4578 = vmatpush1.bf16.msra.mxu0 %v4056
    %4579 = vmatprep.subr.bf16.mxu0 0
    %4580 = vmatpush1.bf16.msra.mxu0 %v4059
    %4581 = vmatprep.subr.bf16.mxu0 0
    %4582 = vmatpush1.bf16.msra.mxu0 %v4062
    %4583 = vmatprep.subr.bf16.mxu0 0
    %4584 = vmatpush1.bf16.msra.mxu0 %v4065
    %4585 = vmatprep.subr.bf16.mxu0 0
    %4586 = vmatpush1.bf16.msra.mxu0 %v4068
    %4587 = vmatprep.subr.bf16.mxu0 0
    %4588 = vmatpush1.bf16.msra.mxu0 %v4071
    %4589 = vmatprep.subr.bf16.mxu0 0
    %4590 = vmatpush1.bf16.msra.mxu0 %v4074
    %4591 = vmatprep.mubr.bf16.mxu0 %v3015
    %4592 = vmatmul.mubr.bf16.gmra.mrb[0].mxu0 %v3014
    %v4593 = vpop.f32.mrb[0].mxu0
    %v4594 = vadd.f32 %v4554, %v4593
    %v4595 = vpop.f32.mrb[0].mxu0
    %v4596 = vpop.f32.mrb[0].mxu0
    %v4597 = vpop.f32.mrb[0].mxu0
    %4598 = vdwg.mxu0
    %4599 = vmatprep.subr.bf16.mxu0 0
    %4600 = vmatpush1.bf16.msra.mxu0 %v4077
    %4601 = vmatprep.subr.bf16.mxu0 0
    %4602 = vmatpush1.bf16.msra.mxu0 %v4080
    %4603 = vmatprep.subr.bf16.mxu0 0
    %4604 = vmatpush1.bf16.msra.mxu0 %v4083
    %4605 = vmatprep.subr.bf16.mxu0 0
    %4606 = vmatpush1.bf16.msra.mxu0 %v4086
    %4607 = vmatprep.subr.bf16.mxu0 0
    %4608 = vmatpush1.bf16.msra.mxu0 %v4089
    %4609 = vmatprep.subr.bf16.mxu0 0
    %4610 = vmatpush1.bf16.msra.mxu0 %v4092
    %4611 = vmatprep.subr.bf16.mxu0 0
    %4612 = vmatpush1.bf16.msra.mxu0 %v4095
    %4613 = vmatprep.subr.bf16.mxu0 0
    %4614 = vmatpush1.bf16.msra.mxu0 %v4098
    %4615 = vmatprep.subr.bf16.mxu0 0
    %4616 = vmatpush1.bf16.msra.mxu0 %v4101
    %4617 = vmatprep.subr.bf16.mxu0 0
    %4618 = vmatpush1.bf16.msra.mxu0 %v4104
    %4619 = vmatprep.subr.bf16.mxu0 0
    %4620 = vmatpush1.bf16.msra.mxu0 %v4107
    %4621 = vmatprep.subr.bf16.mxu0 0
    %4622 = vmatpush1.bf16.msra.mxu0 %v4110
    %4623 = vmatprep.subr.bf16.mxu0 0
    %4624 = vmatpush1.bf16.msra.mxu0 %v4113
    %4625 = vmatprep.subr.bf16.mxu0 0
    %4626 = vmatpush1.bf16.msra.mxu0 %v4116
    %4627 = vmatprep.subr.bf16.mxu0 0
    %4628 = vmatpush1.bf16.msra.mxu0 %v4119
    %4629 = vmatprep.subr.bf16.mxu0 0
    %4630 = vmatpush1.bf16.msra.mxu0 %v4122
    %4631 = vmatprep.mubr.bf16.mxu0 %v3017
    %4632 = vmatmul.mubr.bf16.gmra.mrb[0].mxu0 %v3016
    %v4633 = vpop.f32.mrb[0].mxu0
    %v4634 = vadd.f32 %v4594, %v4633
    %v4635 = vpop.f32.mrb[0].mxu0
    %v4636 = vpop.f32.mrb[0].mxu0
    %v4637 = vpop.f32.mrb[0].mxu0
    %4638 = vdwg.mxu0
    %v4639 = vmax.f32 %v4473, 0.0
    %v4640 = vmax.f32 %v4475, 0.0
    %v4641 = vmax.f32 %v4634, 0.0
    %v4642 = vpack.c.bf16 %v4639, %v4639
    %v4643 = vpack.c.bf16 %v4640, %v4640
    %v4644 = vpack.c.bf16 %v4641, %v4641
    %v4645 = vld [vmem:[%s5] sm:$0xf]
    %v4646 = vld [vmem:[%s5 + $0x4] sm:$0xf]
    %v4647 = vld [vmem:[%s5 + $0x8] sm:$0xf]
    %v4648 = vld [vmem:[%s5 + $0xc] sm:$0xf]
    %v4649 = vld [vmem:[%s5 + $0x10] sm:$0xf]
    %v4650 = vld [vmem:[%s5 + $0x14] sm:$0xf]
    %v4651 = vld [vmem:[%s5 + $0x18] sm:$0xf]
    %v4652 = vld [vmem:[%s5 + $0x1c] sm:$0xf]
    %v4653 = vld [vmem:[%s5 + $0x20] sm:$0xf]
    %v4654 = vld [vmem:[%s5 + $0x24] sm:$0xf]
    %v4655 = vld [vmem:[%s5 + $0x28] sm:$0xf]
    %v4656 = vld [vmem:[%s5 + $0x2c] sm:$0xf]
    %v4657 = vld [vmem:[%s5 + $0x30] sm:$0xf]
    %v4658 = vld [vmem:[%s5 + $0x34] sm:$0xf]
    %v4659 = vld [vmem:[%s5 + $0x38] sm:$0xf]
    %v4660 = vld [vmem:[%s5 + $0x3c] sm:$0xf]
    %v4661 = vld [vmem:[%s5 + $0x40] sm:$0xf]
    %v4662 = vld [vmem:[%s5 + $0x44] sm:$0xf]
    %v4663 = vld [vmem:[%s5 + $0x48] sm:$0xf]
    %v4664 = vld [vmem:[%s5 + $0x4c] sm:$0xf]
    %v4665 = vld [vmem:[%s5 + $0x50] sm:$0xf]
    %v4666 = vld [vmem:[%s5 + $0x54] sm:$0xf]
    %v4667 = vld [vmem:[%s5 + $0x58] sm:$0xf]
    %v4668 = vld [vmem:[%s5 + $0x5c] sm:$0xf]
    %v4669 = vld [vmem:[%s5 + $0x60] sm:$0xf]
    %v4670 = vld [vmem:[%s5 + $0x64] sm:$0xf]
    %v4671 = vld [vmem:[%s5 + $0x68] sm:$0xf]
    %v4672 = vld [vmem:[%s5 + $0x6c] sm:$0xf]
    %v4673 = vld [vmem:[%s5 + $0x70] sm:$0xf]
    %v4674 = vld [vmem:[%s5 + $0x74] sm:$0xf]
    %v4675 = vld [vmem:[%s5 + $0x78] sm:$0xf]
    %v4676 = vld [vmem:[%s5 + $0x7c] sm:$0xf]
    %v4677 = vld [vmem:[%s5 + $0x80] sm:$0xf]
    %v4678 = vld [vmem:[%s5 + $0x84] sm:$0xf]
    %v4679 = vld [vmem:[%s5 + $0x88] sm:$0xf]
    %v4680 = vld [vmem:[%s5 + $0x8c] sm:$0xf]
    %v4681 = vld [vmem:[%s6] sm:$0x1]
    %v4683 = vlaneseq
    %v4684 = vshrl.u32 %v4683, 7
    %v4685 = vsub.s32 0, %v4684
    %v4686 = vrot.slane %v4681, %v4685
    %v4724 = vunpack.c.l.b16 %v4645
    %v4725 = vunpack.c.l.b16 %v4646
    %v4726 = vunpack.c.l.b16 %v4647
    %v4727 = vunpack.c.l.b16 %v4648
    %v4728 = vunpack.c.l.b16 %v4649
    %v4729 = vunpack.c.l.b16 %v4650
    %v4730 = vunpack.c.l.b16 %v4651
    %v4731 = vunpack.c.l.b16 %v4652
    %v4732 = vunpack.c.l.b16 %v4653
    %v4733 = vunpack.c.l.b16 %v4654
    %v4734 = vunpack.c.l.b16 %v4655
    %v4735 = vunpack.c.l.b16 %v4656
    %v4736 = vunpack.c.l.b16 %v4657
    %v4737 = vunpack.c.l.b16 %v4658
    %v4738 = vunpack.c.l.b16 %v4659
    %v4739 = vunpack.c.l.b16 %v4660
    %v4740 = vunpack.c.l.b16 %v4661
    %v4741 = vunpack.c.l.b16 %v4662
    %v4742 = vunpack.c.l.b16 %v4663
    %v4743 = vunpack.c.l.b16 %v4664
    %v4744 = vunpack.c.l.b16 %v4665
    %v4745 = vunpack.c.l.b16 %v4666
    %v4746 = vunpack.c.l.b16 %v4667
    %v4747 = vunpack.c.l.b16 %v4668
    %v4748 = vunpack.c.l.b16 %v4669
    %v4749 = vunpack.c.l.b16 %v4670
    %v4750 = vunpack.c.l.b16 %v4671
    %v4751 = vunpack.c.l.b16 %v4672
    %v4752 = vunpack.c.l.b16 %v4673
    %v4753 = vunpack.c.l.b16 %v4674
    %v4754 = vunpack.c.l.b16 %v4675
    %v4755 = vunpack.c.l.b16 %v4676
    %v4756 = vunpack.c.l.b16 %v4677
    %v4757 = vunpack.c.l.b16 %v4678
    %v4758 = vunpack.c.l.b16 %v4679
    %v4759 = vunpack.c.l.b16 %v4680
    %v4760 = vpack.c.b16 %v4725, %v4724
    %v4761 = vpack.c.b16 %v4727, %v4726
    %v4762 = vpack.c.b16 %v4729, %v4728
    %v4763 = vpack.c.b16 %v4731, %v4730
    %v4764 = vpack.c.b16 %v4733, %v4732
    %v4765 = vpack.c.b16 %v4735, %v4734
    %v4766 = vpack.c.b16 %v4737, %v4736
    %v4767 = vpack.c.b16 %v4739, %v4738
    %v4768 = vpack.c.b16 %v4741, %v4740
    %v4769 = vpack.c.b16 %v4743, %v4742
    %v4770 = vpack.c.b16 %v4745, %v4744
    %v4771 = vpack.c.b16 %v4747, %v4746
    %v4772 = vpack.c.b16 %v4749, %v4748
    %v4773 = vpack.c.b16 %v4751, %v4750
    %v4774 = vpack.c.b16 %v4753, %v4752
    %v4775 = vpack.c.b16 %v4755, %v4754
    %v4776 = vpack.c.b16 %v4757, %v4756
    %v4777 = vpack.c.b16 %v4759, %v4758
    %vm4796 = vcmask 261120
    %v4798 = vsel %vm4796, %v4644, 0
    %4800 = vmatprep.subr.bf16.mxu0 0
    %4801 = vmatpush1.bf16.msra.mxu0 %v4760
    %4802 = vmatprep.subr.bf16.mxu0 0
    %4803 = vmatpush1.bf16.msra.mxu0 %v4761
    %4804 = vmatprep.subr.bf16.mxu0 0
    %4805 = vmatpush1.bf16.msra.mxu0 %v4762
    %4806 = vmatprep.subr.bf16.mxu0 0
    %4807 = vmatpush1.bf16.msra.mxu0 %v4763
    %4808 = vmatprep.subr.bf16.mxu0 0
    %4809 = vmatpush1.bf16.msra.mxu0 %v4764
    %4810 = vmatprep.subr.bf16.mxu0 0
    %4811 = vmatpush1.bf16.msra.mxu0 %v4765
    %4812 = vmatprep.subr.bf16.mxu0 0
    %4813 = vmatpush1.bf16.msra.mxu0 %v4766
    %4814 = vmatprep.subr.bf16.mxu0 0
    %4815 = vmatpush1.bf16.msra.mxu0 %v4767
    %4816 = vmatprep.subr.bf16.mxu0 0
    %4817 = vmatpush1.bf16.msra.mxu0 %v4768
    %4818 = vmatprep.subr.bf16.mxu0 0
    %4819 = vmatpush1.bf16.msra.mxu0 %v4769
    %4820 = vmatprep.subr.bf16.mxu0 0
    %4821 = vmatpush1.bf16.msra.mxu0 %v4770
    %4822 = vmatprep.subr.bf16.mxu0 0
    %4823 = vmatpush1.bf16.msra.mxu0 %v4771
    %4824 = vmatprep.subr.bf16.mxu0 0
    %4825 = vmatpush1.bf16.msra.mxu0 %v4772
    %4826 = vmatprep.subr.bf16.mxu0 0
    %4827 = vmatpush1.bf16.msra.mxu0 %v4773
    %4828 = vmatprep.subr.bf16.mxu0 0
    %4829 = vmatpush1.bf16.msra.mxu0 %v4774
    %4830 = vmatprep.subr.bf16.mxu0 0
    %4831 = vmatpush1.bf16.msra.mxu0 %v4775
    %4832 = vmatprep.mubr.bf16.mxu0 %v4643
    %4833 = vmatmul.mubr.bf16.gmra.mrb[0].mxu0 %v4642
    %v4834 = vpop.f32.mrb[0].mxu0
    %v4835 = vadd.f32 %v4686, %v4834
    %v4836 = vpop.f32.mrb[0].mxu0
    %v4837 = vpop.f32.mrb[0].mxu0
    %v4838 = vpop.f32.mrb[0].mxu0
    %4839 = vdwg.mxu0
    %4840 = vmatprep.subr.bf16.mxu0 0
    %4841 = vmatpush1.bf16.msra.mxu0 %v4776
    %4842 = vmatprep.subr.bf16.mxu0 0
    %4843 = vmatpush1.bf16.msra.mxu0 %v4777
    %4844 = vmatprep.subr.bf16.mxu0 0
    %4845 = vmatpush1.bf16.msra.mxu0 0
    %4846 = vmatprep.subr.bf16.mxu0 0
    %4847 = vmatpush1.bf16.msra.mxu0 0
    %4848 = vmatprep.subr.bf16.mxu0 0
    %4849 = vmatpush1.bf16.msra.mxu0 0
    %4850 = vmatprep.subr.bf16.mxu0 0
    %4851 = vmatpush1.bf16.msra.mxu0 0
    %4852 = vmatprep.subr.bf16.mxu0 0
    %4853 = vmatpush1.bf16.msra.mxu0 0
    %4854 = vmatprep.subr.bf16.mxu0 0
    %4855 = vmatpush1.bf16.msra.mxu0 0
    %4856 = vmatprep.subr.bf16.mxu0 0
    %4857 = vmatpush1.bf16.msra.mxu0 0
    %4858 = vmatprep.subr.bf16.mxu0 0
    %4859 = vmatpush1.bf16.msra.mxu0 0
    %4860 = vmatprep.subr.bf16.mxu0 0
    %4861 = vmatpush1.bf16.msra.mxu0 0
    %4862 = vmatprep.subr.bf16.mxu0 0
    %4863 = vmatpush1.bf16.msra.mxu0 0
    %4864 = vmatprep.subr.bf16.mxu0 0
    %4865 = vmatpush1.bf16.msra.mxu0 0
    %4866 = vmatprep.subr.bf16.mxu0 0
    %4867 = vmatpush1.bf16.msra.mxu0 0
    %4868 = vmatprep.subr.bf16.mxu0 0
    %4869 = vmatpush1.bf16.msra.mxu0 0
    %4870 = vmatprep.subr.bf16.mxu0 0
    %4871 = vmatpush1.bf16.msra.mxu0 0
    %4872 = vmatprep.mubr.bf16.mxu0 0
    %4873 = vmatmul.mubr.bf16.gmra.mrb[0].mxu0 %v4798
    %v4874 = vpop.f32.mrb[0].mxu0
    %v4875 = vadd.f32 %v4835, %v4874
    %v4876 = vpop.f32.mrb[0].mxu0
    %v4877 = vpop.f32.mrb[0].mxu0
    %v4878 = vpop.f32.mrb[0].mxu0
    %4879 = vdwg.mxu0
    %v4880 = vmax.f32 %v4875, 0.0
    %v4881 = vpack.c.bf16 %v4880, %v4880
    %v4882 = vld [vmem:[%s7] sm:$0xff]
    %v4883 = vld [vmem:[%s7 + $0x8] sm:$0xff]
    %v4884 = vld [vmem:[%s7 + $0x10] sm:$0xff]
    %v4885 = vld [vmem:[%s7 + $0x18] sm:$0xff]
    %v4886 = vld [vmem:[%s7 + $0x20] sm:$0xff]
    %v4887 = vld [vmem:[%s7 + $0x28] sm:$0xff]
    %v4888 = vld [vmem:[%s7 + $0x30] sm:$0xff]
    %v4889 = vld [vmem:[%s7 + $0x38] sm:$0xff]
    %v4890 = vld [vmem:[%s8] sm:$0x3]
    %v4892 = vlaneseq
    %v4893 = vshrl.u32 %v4892, 7
    %v4894 = vsub.s32 0, %v4893
    %v4895 = vrot.slane %v4890, %v4894
    %v4896 = vlaneseq
    %v4897 = vshrl.u32 %v4896, 7
    %v4898 = vsub.s32 1, %v4897
    %v4899 = vrot.slane %v4890, %v4898
    %v4910 = vunpack.c.l.b16 %v4882
    %v4911 = vunpack.c.h.b16 %v4882
    %v4912 = vunpack.c.l.b16 %v4883
    %v4913 = vunpack.c.h.b16 %v4883
    %v4914 = vunpack.c.l.b16 %v4884
    %v4915 = vunpack.c.h.b16 %v4884
    %v4916 = vunpack.c.l.b16 %v4885
    %v4917 = vunpack.c.h.b16 %v4885
    %v4918 = vunpack.c.l.b16 %v4886
    %v4919 = vunpack.c.h.b16 %v4886
    %v4920 = vunpack.c.l.b16 %v4887
    %v4921 = vunpack.c.h.b16 %v4887
    %v4922 = vunpack.c.l.b16 %v4888
    %v4923 = vunpack.c.h.b16 %v4888
    %v4924 = vunpack.c.l.b16 %v4889
    %v4925 = vunpack.c.h.b16 %v4889
    %v4926 = vpack.c.b16 %v4912, %v4910
    %v4927 = vpack.c.b16 %v4913, %v4911
    %v4928 = vpack.c.b16 %v4916, %v4914
    %v4929 = vpack.c.b16 %v4917, %v4915
    %v4930 = vpack.c.b16 %v4920, %v4918
    %v4931 = vpack.c.b16 %v4921, %v4919
    %v4932 = vpack.c.b16 %v4924, %v4922
    %v4933 = vpack.c.b16 %v4925, %v4923
    %vm4942 = vcmask 523264
    %v4944 = vsel %vm4942, %v4881, 0
    %4946 = vmatprep.subr.bf16.mxu0 %v4927
    %4947 = vmatpush1.bf16.msra.mxu0 %v4926
    %4948 = vmatprep.subr.bf16.mxu0 %v4929
    %4949 = vmatpush1.bf16.msra.mxu0 %v4928
    %4950 = vmatprep.subr.bf16.mxu0 %v4931
    %4951 = vmatpush1.bf16.msra.mxu0 %v4930
    %4952 = vmatprep.subr.bf16.mxu0 %v4933
    %4953 = vmatpush1.bf16.msra.mxu0 %v4932
    %4954 = vmatprep.subr.bf16.mxu0 0
    %4955 = vmatpush1.bf16.msra.mxu0 0
    %4956 = vmatprep.subr.bf16.mxu0 0
    %4957 = vmatpush1.bf16.msra.mxu0 0
    %4958 = vmatprep.subr.bf16.mxu0 0
    %4959 = vmatpush1.bf16.msra.mxu0 0
    %4960 = vmatprep.subr.bf16.mxu0 0
    %4961 = vmatpush1.bf16.msra.mxu0 0
    %4962 = vmatprep.subr.bf16.mxu0 0
    %4963 = vmatpush1.bf16.msra.mxu0 0
    %4964 = vmatprep.subr.bf16.mxu0 0
    %4965 = vmatpush1.bf16.msra.mxu0 0
    %4966 = vmatprep.subr.bf16.mxu0 0
    %4967 = vmatpush1.bf16.msra.mxu0 0
    %4968 = vmatprep.subr.bf16.mxu0 0
    %4969 = vmatpush1.bf16.msra.mxu0 0
    %4970 = vmatprep.subr.bf16.mxu0 0
    %4971 = vmatpush1.bf16.msra.mxu0 0
    %4972 = vmatprep.subr.bf16.mxu0 0
    %4973 = vmatpush1.bf16.msra.mxu0 0
    %4974 = vmatprep.subr.bf16.mxu0 0
    %4975 = vmatpush1.bf16.msra.mxu0 0
    %4976 = vmatprep.subr.bf16.mxu0 0
    %4977 = vmatpush1.bf16.msra.mxu0 0
    %4978 = vmatprep.mubr.bf16.mxu0 0
    %4979 = vmatmul.mubr.bf16.gmra.mrb[0].mxu0 %v4944
    %v4980 = vpop.f32.mrb[0].mxu0
    %v4981 = vadd.f32 %v4895, %v4980
    %v4982 = vpop.f32.mrb[0].mxu0
    %v4983 = vadd.f32 %v4899, %v4982
    %v4984 = vpop.f32.mrb[0].mxu0
    %v4985 = vpop.f32.mrb[0].mxu0
    %4986 = vdwg.mxu0
    %v4987 = vmax.f32 %v4981, 0.0
    %v4988 = vmax.f32 %v4983, 0.0
    %v4989 = vpack.c.bf16 %v4987, %v4987
    %v4990 = vpack.c.bf16 %v4988, %v4988
    %v4991 = vld [vmem:[%s9] sm:$0xf]
    %v4992 = vld [vmem:[%s9 + $0x4] sm:$0xf]
    %v4993 = vld [vmem:[%s9 + $0x8] sm:$0xf]
    %v4994 = vld [vmem:[%s9 + $0xc] sm:$0xf]
    %v4995 = vld [vmem:[%s9 + $0x10] sm:$0xf]
    %v4996 = vld [vmem:[%s9 + $0x14] sm:$0xf]
    %v4997 = vld [vmem:[%s9 + $0x18] sm:$0xf]
    %v4998 = vld [vmem:[%s9 + $0x1c] sm:$0xf]
    %v4999 = vld [vmem:[%s9 + $0x20] sm:$0xf]
    %v5000 = vld [vmem:[%s9 + $0x24] sm:$0xf]
    %v5001 = vld [vmem:[%s9 + $0x28] sm:$0xf]
    %v5002 = vld [vmem:[%s9 + $0x2c] sm:$0xf]
    %v5003 = vld [vmem:[%s9 + $0x30] sm:$0xf]
    %v5004 = vld [vmem:[%s9 + $0x34] sm:$0xf]
    %v5005 = vld [vmem:[%s9 + $0x38] sm:$0xf]
    %v5006 = vld [vmem:[%s9 + $0x3c] sm:$0xf]
    %v5007 = vld [vmem:[%s9 + $0x40] sm:$0xf]
    %v5008 = vld [vmem:[%s9 + $0x44] sm:$0xf]
    %v5009 = vld [vmem:[%s9 + $0x48] sm:$0xf]
    %v5010 = vld [vmem:[%s9 + $0x4c] sm:$0xf]
    %v5011 = vld [vmem:[%s9 + $0x50] sm:$0xf]
    %v5012 = vld [vmem:[%s9 + $0x54] sm:$0xf]
    %v5013 = vld [vmem:[%s9 + $0x58] sm:$0xf]
    %v5014 = vld [vmem:[%s9 + $0x5c] sm:$0xf]
    %v5015 = vld [vmem:[%s9 + $0x60] sm:$0xf]
    %v5016 = vld [vmem:[%s9 + $0x64] sm:$0xf]
    %v5017 = vld [vmem:[%s9 + $0x68] sm:$0xf]
    %v5018 = vld [vmem:[%s9 + $0x6c] sm:$0xf]
    %v5019 = vld [vmem:[%s9 + $0x70] sm:$0xf]
    %v5020 = vld [vmem:[%s9 + $0x74] sm:$0xf]
    %v5021 = vld [vmem:[%s9 + $0x78] sm:$0xf]
    %v5022 = vld [vmem:[%s9 + $0x7c] sm:$0xf]
    %v5023 = vld [vmem:[%s10] sm:$0x1]
    %v5025 = vlaneseq
    %v5026 = vshrl.u32 %v5025, 7
    %v5027 = vsub.s32 0, %v5026
    %v5028 = vrot.slane %v5023, %v5027
    %v5062 = vunpack.c.l.b16 %v4991
    %v5063 = vunpack.c.l.b16 %v4992
    %v5064 = vunpack.c.l.b16 %v4993
    %v5065 = vunpack.c.l.b16 %v4994
    %v5066 = vunpack.c.l.b16 %v4995
    %v5067 = vunpack.c.l.b16 %v4996
    %v5068 = vunpack.c.l.b16 %v4997
    %v5069 = vunpack.c.l.b16 %v4998
    %v5070 = vunpack.c.l.b16 %v4999
    %v5071 = vunpack.c.l.b16 %v5000
    %v5072 = vunpack.c.l.b16 %v5001
    %v5073 = vunpack.c.l.b16 %v5002
    %v5074 = vunpack.c.l.b16 %v5003
    %v5075 = vunpack.c.l.b16 %v5004
    %v5076 = vunpack.c.l.b16 %v5005
    %v5077 = vunpack.c.l.b16 %v5006
    %v5078 = vunpack.c.l.b16 %v5007
    %v5079 = vunpack.c.l.b16 %v5008
    %v5080 = vunpack.c.l.b16 %v5009
    %v5081 = vunpack.c.l.b16 %v5010
    %v5082 = vunpack.c.l.b16 %v5011
    %v5083 = vunpack.c.l.b16 %v5012
    %v5084 = vunpack.c.l.b16 %v5013
    %v5085 = vunpack.c.l.b16 %v5014
    %v5086 = vunpack.c.l.b16 %v5015
    %v5087 = vunpack.c.l.b16 %v5016
    %v5088 = vunpack.c.l.b16 %v5017
    %v5089 = vunpack.c.l.b16 %v5018
    %v5090 = vunpack.c.l.b16 %v5019
    %v5091 = vunpack.c.l.b16 %v5020
    %v5092 = vunpack.c.l.b16 %v5021
    %v5093 = vunpack.c.l.b16 %v5022
    %v5094 = vpack.c.b16 %v5063, %v5062
    %v5095 = vpack.c.b16 %v5065, %v5064
    %v5096 = vpack.c.b16 %v5067, %v5066
    %v5097 = vpack.c.b16 %v5069, %v5068
    %v5098 = vpack.c.b16 %v5071, %v5070
    %v5099 = vpack.c.b16 %v5073, %v5072
    %v5100 = vpack.c.b16 %v5075, %v5074
    %v5101 = vpack.c.b16 %v5077, %v5076
    %v5102 = vpack.c.b16 %v5079, %v5078
    %v5103 = vpack.c.b16 %v5081, %v5080
    %v5104 = vpack.c.b16 %v5083, %v5082
    %v5105 = vpack.c.b16 %v5085, %v5084
    %v5106 = vpack.c.b16 %v5087, %v5086
    %v5107 = vpack.c.b16 %v5089, %v5088
    %v5108 = vpack.c.b16 %v5091, %v5090
    %v5109 = vpack.c.b16 %v5093, %v5092
    %5126 = vmatprep.subr.bf16.mxu0 0
    %5127 = vmatpush1.bf16.msra.mxu0 %v5094
    %5128 = vmatprep.subr.bf16.mxu0 0
    %5129 = vmatpush1.bf16.msra.mxu0 %v5095
    %5130 = vmatprep.subr.bf16.mxu0 0
    %5131 = vmatpush1.bf16.msra.mxu0 %v5096
    %5132 = vmatprep.subr.bf16.mxu0 0
    %5133 = vmatpush1.bf16.msra.mxu0 %v5097
    %5134 = vmatprep.subr.bf16.mxu0 0
    %5135 = vmatpush1.bf16.msra.mxu0 %v5098
    %5136 = vmatprep.subr.bf16.mxu0 0
    %5137 = vmatpush1.bf16.msra.mxu0 %v5099
    %5138 = vmatprep.subr.bf16.mxu0 0
    %5139 = vmatpush1.bf16.msra.mxu0 %v5100
    %5140 = vmatprep.subr.bf16.mxu0 0
    %5141 = vmatpush1.bf16.msra.mxu0 %v5101
    %5142 = vmatprep.subr.bf16.mxu0 0
    %5143 = vmatpush1.bf16.msra.mxu0 %v5102
    %5144 = vmatprep.subr.bf16.mxu0 0
    %5145 = vmatpush1.bf16.msra.mxu0 %v5103
    %5146 = vmatprep.subr.bf16.mxu0 0
    %5147 = vmatpush1.bf16.msra.mxu0 %v5104
    %5148 = vmatprep.subr.bf16.mxu0 0
    %5149 = vmatpush1.bf16.msra.mxu0 %v5105
    %5150 = vmatprep.subr.bf16.mxu0 0
    %5151 = vmatpush1.bf16.msra.mxu0 %v5106
    %5152 = vmatprep.subr.bf16.mxu0 0
    %5153 = vmatpush1.bf16.msra.mxu0 %v5107
    %5154 = vmatprep.subr.bf16.mxu0 0
    %5155 = vmatpush1.bf16.msra.mxu0 %v5108
    %5156 = vmatprep.subr.bf16.mxu0 0
    %5157 = vmatpush1.bf16.msra.mxu0 %v5109
    %5158 = vmatprep.mubr.bf16.mxu0 %v4990
    %5159 = vmatmul.mubr.bf16.gmra.mrb[0].mxu0 %v4989
    %v5160 = vpop.f32.mrb[0].mxu0
    %v5161 = vadd.f32 %v5028, %v5160
    %v5162 = vpop.f32.mrb[0].mxu0
    %v5163 = vpop.f32.mrb[0].mxu0
    %v5164 = vpop.f32.mrb[0].mxu0
    %5165 = vdwg.mxu0
    %vm5166 = vcmask 41984
    %5167 = vst.msk [vmem:[#allocation3] sm:$0x3] %vm5166, %v5161
    // Predicated region
    $region46: #{_lambda_.1} parent=1 // pred_check
      _
    $region47: #{_lambda_.1} parent=1 // pred_check_branch
      %5169 = sbr.rel (0) target = $region49
    $region48: #{_lambda_.1} parent=1 // pred_region
      %s5171 = ssub.s32 32, 32
      %5172 = vsyncadd [#allocation4], %s5171
      %s5174 = sshll.u32 [#allocation3], 4
      %s5175 = int_to_ptr.vmem [resolvable:$true] %s5174
      %5177 = dma.vmem_to_hbm [thread:$0]  %s5175, 32, %s11, [#allocation4]
    $region49: #{_lambda_.1} parent=1 // pred_fallthru
      _
    // Predicated region
    $region50: #{_lambda_.1} parent=1 // pred_check
      _
    $region51: #{_lambda_.1} parent=1 // pred_check_branch
      %5179 = sbr.rel (0) target = $region53
    $region52: #{_lambda_.1} parent=1 // pred_region
      %5180 = dma.done [#allocation4], 32
    $region53: #{_lambda_.1} parent=1 // pred_fallthru
      _
    %5181 = vsyncpa [#allocation4], 1

</llo_original>
